<compile_context>
chip_gen: v7x
topology: tpu7x:2x2x1
jax: 0.10.0
libtpu: 0.0.40
codegen_flags: <defaults>
</compile_context>

<pallas_src>
import functools

import jax
import jax.numpy as jnp
from jax.experimental import pallas as pl
from jax.experimental.pallas import tpu as pltpu

_CDT = jnp.bfloat16          # MXU-native dtype for weights / bulk activations


def _round_up(x, m):
    return (x + m - 1) // m * m


# ------------------------------ fused kernel ---------------------------------
def _char_rnn_kernel(x_ref, wih0_ref, wihr_ref, whh_ref, b_ref,
                     wfc_ref, bfc_ref, out_ref, hseq_scr, gx_scr, *, Bp, Tc):
    # Shapes (all padded):
    #   x_ref    : (T_pad*Bp, Vin_p)   bf16  layer-0 input (vocab-padded lanes)
    #   wih0_ref : (Vin_p, 4*Hp)       bf16  layer-0 input->gates (transposed)
    #   wihr_ref : (max(L-1,1), Hp, 4*Hp) bf16  layers 1.. input->gates
    #   whh_ref  : (L, Hp, 4*Hp)       bf16  hidden->gates (transposed)
    #   b_ref    : (L, 1, 4*Hp)        f32   b_ih + b_hh
    #   wfc_ref  : (Hp, Vp)            bf16  FC weight (transposed)
    #   bfc_ref  : (1, Vp)             f32
    #   out_ref  : (T_pad*Bp, Vp)      f32   lane-dense logits
    #   hseq_scr : (T_pad*Bp, Hp)      bf16  layer i/o hidden sequence
    #   gx_scr   : (Tc*Bp, 4*Hp)       f32   one chunk of precomputed x-gates
    TB, Hp = hseq_scr.shape
    T_pad = TB // Bp
    n_chunks = T_pad // Tc
    rows_c = Tc * Bp
    L = whh_ref.shape[0]
    f32 = jnp.float32

    for layer in range(L):                         # static (small) layer loop
        w_hh = whh_ref[layer]                      # (Hp, 4Hp) bf16, layer-resident
        bias = b_ref[layer]                        # (1, 4Hp) f32

        # h / c live in registers for the whole layer (carried, not stored).
        h = jnp.zeros((Bp, Hp), f32)
        c = jnp.zeros((Bp, Hp), f32)

        for ck in range(n_chunks):                 # static T-chunk loop
            base = ck * rows_c
            # Bulk input projection + bias for this chunk of timesteps: one
            # well-shaped MXU matmul, off the serial critical path.
            if layer == 0:
                inp = x_ref[pl.ds(base, rows_c), :]            # (rows_c, Vin_p)
                w_ih = wih0_ref[...]
            else:
                inp = hseq_scr[pl.ds(base, rows_c), :]         # (rows_c, Hp)
                w_ih = wihr_ref[layer - 1]
            gx_scr[...] = (
                jnp.dot(inp, w_ih, preferred_element_type=f32) + bias)

            def step(t, carry, w_hh=w_hh, base=base):
                h, c = carry                                   # f32 (Bp, Hp)
                row = pl.multiple_of(t * Bp, Bp)
                gates = gx_scr[pl.ds(row, Bp), :] + jnp.dot(
                    h.astype(w_hh.dtype), w_hh, preferred_element_type=f32)

                # Packed gate layout [i, f, o, g]: one fused sigmoid over the
                # contiguous (Bp, 3*Hp) slab, one tanh over (Bp, Hp).
                ifo = jax.nn.sigmoid(gates[:, :3 * Hp])
                i = ifo[:, 0 * Hp:1 * Hp]
                f = ifo[:, 1 * Hp:2 * Hp]
                o = ifo[:, 2 * Hp:3 * Hp]
                g = jnp.tanh(gates[:, 3 * Hp:])

                c_new = f * c + i * g
                h_new = o * jnp.tanh(c_new)

                # Single per-step VMEM store (feeds the next layer / FC).
                hseq_scr[pl.ds(pl.multiple_of(base + t * Bp, Bp), Bp), :] = (
                    h_new.astype(hseq_scr.dtype))
                return h_new, c_new

            h, c = jax.lax.fori_loop(0, Tc, step, (h, c), unroll=min(8, Tc))

    # Final FC over the sequence, chunked; lane-dense output stores.
    wfc = wfc_ref[...]
    bfc = bfc_ref[...]
    for ck in range(n_chunks):
        base = ck * rows_c
        out_ref[pl.ds(base, rows_c), :] = (
            jnp.dot(hseq_scr[pl.ds(base, rows_c), :], wfc,
                    preferred_element_type=f32) + bfc).astype(out_ref.dtype)


def _char_rnn_pallas(x_p, packed, *, Bp, Tc):
    TB, _ = x_p.shape
    _, _, Hp, _, Vp, _ = packed["meta"]

    operands = (x_p, packed["wih0"], packed["wihr"], packed["whh"],
                packed["b"], packed["wfc"], packed["bfc"])
    in_bytes = sum(int(a.size) * a.dtype.itemsize for a in operands)
    out_bytes = TB * Vp * 4
    scratch_bytes = TB * Hp * jnp.dtype(_CDT).itemsize + Tc * Bp * 4 * Hp * 4
    vmem_needed = in_bytes + out_bytes + scratch_bytes
    vmem_limit = min(128 * 1024 * 1024,
                     max(32 * 1024 * 1024, int(vmem_needed * 1.5) + (2 << 20)))

    kernel = functools.partial(_char_rnn_kernel, Bp=Bp, Tc=Tc)
    vmem = pl.BlockSpec(memory_space=pltpu.MemorySpace.VMEM)
    return pl.pallas_call(
        kernel,
        out_shape=jax.ShapeDtypeStruct((TB, Vp), jnp.float32),
        in_specs=[vmem] * 7,
        out_specs=vmem,
        scratch_shapes=[
            pltpu.VMEM((TB, Hp), _CDT),                    # hidden sequence
            pltpu.VMEM((Tc * Bp, 4 * Hp), jnp.float32),    # chunk of x-gates
        ],
        compiler_params=pltpu.CompilerParams(vmem_limit_bytes=vmem_limit),
    )(*operands)


# --------------------------- parameter packing --------------------------------
def pack_params(params, vocab_size, hidden_size):
    """One-time packing: zero-pad + transpose PyTorch-convention params into
    MXU-friendly bf16 slabs. Call once and reuse across forward calls."""
    H = hidden_size
    Hp = _round_up(H, 128)                 # padded hidden width (lanes)
    Vin_p = _round_up(vocab_size, 128)     # padded layer-0 input width
    Vp = _round_up(vocab_size, 128)        # padded logit width
    L = len(params["lstm"])
    Lr = max(L - 1, 1)

    # Packed gate order [i, f, o, g]; PyTorch order is [i, f, g, o].
    gate_src = (0, 1, 3, 2)

    wih0 = jnp.zeros((Vin_p, 4 * Hp), jnp.float32)
    wihr = jnp.zeros((Lr, Hp, 4 * Hp), jnp.float32)
    whh = jnp.zeros((L, Hp, 4 * Hp), jnp.float32)
    b = jnp.zeros((L, 1, 4 * Hp), jnp.float32)
    for l, (w_ih, w_hh, b_ih, b_hh) in enumerate(params["lstm"]):
        in_size = w_ih.shape[1]
        bsum = b_ih + b_hh
        for dst, src in enumerate(gate_src):
            wg = jnp.transpose(w_ih[src * H:(src + 1) * H, :])   # (in, H)
            hg = jnp.transpose(w_hh[src * H:(src + 1) * H, :])   # (H, H)
            bg = bsum[src * H:(src + 1) * H]
            if l == 0:
                wih0 = wih0.at[:in_size, dst * Hp:dst * Hp + H].set(wg)
            else:
                wihr = wihr.at[l - 1, :in_size, dst * Hp:dst * Hp + H].set(wg)
            whh = whh.at[l, :H, dst * Hp:dst * Hp + H].set(hg)
            b = b.at[l, 0, dst * Hp:dst * Hp + H].set(bg)

    w_fc, b_fc = params["fc"]
    wfc = jnp.zeros((Hp, Vp), jnp.float32).at[:H, :vocab_size].set(
        jnp.transpose(w_fc))
    bfc = jnp.zeros((1, Vp), jnp.float32).at[0, :vocab_size].set(b_fc)

    return {
        "wih0": wih0.astype(_CDT),
        "wihr": wihr.astype(_CDT),
        "whh": whh.astype(_CDT),
        "b": b,                    # biases stay f32 (added after the matmul)
        "wfc": wfc.astype(_CDT),
        "bfc": bfc,
        "meta": (vocab_size, H, Hp, Vin_p, Vp, L),
    }


# ------------------------------ model wrapper ---------------------------------
def init_params(key, vocab_size, hidden_size, num_layers):
    params = {"lstm": [], "fc": None}
    k = 1.0 / jnp.sqrt(hidden_size)
    for layer in range(num_layers):
        in_size = vocab_size if layer == 0 else hidden_size
        key, k1, k2, k3, k4 = jax.random.split(key, 5)
        w_ih = jax.random.uniform(k1, (4 * hidden_size, in_size), jnp.float32, -k, k)
        w_hh = jax.random.uniform(k2, (4 * hidden_size, hidden_size), jnp.float32, -k, k)
        b_ih = jax.random.uniform(k3, (4 * hidden_size,), jnp.float32, -k, k)
        b_hh = jax.random.uniform(k4, (4 * hidden_size,), jnp.float32, -k, k)
        params["lstm"].append((w_ih, w_hh, b_ih, b_hh))
    key, k1, k2 = jax.random.split(key, 3)
    kf = 1.0 / jnp.sqrt(hidden_size)
    w_fc = jax.random.uniform(k1, (vocab_size, hidden_size), jnp.float32, -kf, kf)
    b_fc = jax.random.uniform(k2, (vocab_size,), jnp.float32, -kf, kf)
    params["fc"] = (w_fc, b_fc)
    return params


def char_rnn_forward(x, packed, *, t_chunk=32):
    """x: (T, B, vocab) -> (T, B, vocab), matching CharRNN.forward."""
    V, H, Hp, Vin_p, Vp, L = packed["meta"]
    T, B, _ = x.shape

    Bp = _round_up(B, 16)           # 16 sublanes = full bf16 tile per timestep
    Tc = min(t_chunk, T)            # x-gates chunk length along T
    T_pad = _round_up(T, Tc)

    x_p = jnp.zeros((T_pad, Bp, Vin_p), _CDT).at[:T, :B, :V].set(x.astype(_CDT))
    x_p = x_p.reshape(T_pad * Bp, Vin_p)

    out_p = _char_rnn_pallas(x_p, packed, Bp=Bp, Tc=Tc)
    return out_p.reshape(T_pad, Bp, Vp)[:T, :B, :V]


# ------------------------- pure-JAX reference check ---------------------------
def _ref_lstm_layer(x, w_ih, w_hh, b_ih, b_hh):
    T, B, _ = x.shape
    H = w_hh.shape[1]

    def step(carry, x_t):
        h, c = carry
        gates = x_t @ w_ih.T + h @ w_hh.T + b_ih + b_hh
        i, f, g, o = jnp.split(gates, 4, axis=-1)
        i, f, o = jax.nn.sigmoid(i), jax.nn.sigmoid(f), jax.nn.sigmoid(o)
        g = jnp.tanh(g)
        c_new = f * c + i * g
        h_new = o * jnp.tanh(c_new)
        return (h_new, c_new), h_new

    init = (jnp.zeros((B, H), jnp.float32), jnp.zeros((B, H), jnp.float32))
    _, ys = jax.lax.scan(step, init, x)
    return ys


def _ref_forward(x, params):
    h = x
    for (w_ih, w_hh, b_ih, b_hh) in params["lstm"]:
        h = _ref_lstm_layer(h, w_ih, w_hh, b_ih, b_hh)
    w_fc, b_fc = params["fc"]
    return h @ w_fc.T + b_fc


if __name__ == "__main__":
    VOCAB, HIDDEN, LAYERS = 16, 32, 2
    SEQ, BATCH = 8, 2

    key = jax.random.PRNGKey(0)
    kp, kx = jax.random.split(key)
    params = init_params(kp, VOCAB, HIDDEN, LAYERS)
    packed = pack_params(params, VOCAB, HIDDEN)     # pack ONCE, reuse
    x = jax.random.normal(kx, (SEQ, BATCH, VOCAB), jnp.float32)

    out = char_rnn_forward(x, packed)
    out = jax.block_until_ready(out)

    ref = _ref_forward(x, params)
    assert out.shape == (SEQ, BATCH, VOCAB)
    # bf16 weights/activations on the MXU: loosened tolerance vs f32 reference.
    assert jnp.allclose(out, ref, atol=3e-2, rtol=3e-2), "mismatch vs reference"

    print("KERNEL_OK")
</pallas_src>

<mosaic_0001>
module attributes {stable_mosaic.version = 11 : i64} {
  func.func @_char_rnn_kernel(%arg0: memref<128x128xbf16, #tpu.memory_space<vmem>>, %arg1: memref<128x512xbf16, #tpu.memory_space<vmem>>, %arg2: memref<1x128x512xbf16, #tpu.memory_space<vmem>>, %arg3: memref<2x128x512xbf16, #tpu.memory_space<vmem>>, %arg4: memref<2x1x512xf32, #tpu.memory_space<vmem>>, %arg5: memref<128x128xbf16, #tpu.memory_space<vmem>>, %arg6: memref<1x128xf32, #tpu.memory_space<vmem>>, %arg7: memref<128x128xf32, #tpu.memory_space<vmem>>, %arg8: memref<128x128xbf16, #tpu.memory_space<vmem>>, %arg9: memref<128x512xf32, #tpu.memory_space<vmem>>) attributes {dimension_semantics = [], scalar_prefetch = 0 : i64, scratch_operands = 2 : i64, tpu.core_type = #tpu.core_type<tc>} {
    %c0 = arith.constant 0 : index
    %c0_0 = arith.constant 0 : index
    %c0_1 = arith.constant 0 : index
    %0 = vector.load %arg3[%c0, %c0_0, %c0_1] : memref<2x128x512xbf16, #tpu.memory_space<vmem>>, vector<1x128x512xbf16>
    %1 = vector.shape_cast %0 : vector<1x128x512xbf16> to vector<128x512xbf16>
    %c0_2 = arith.constant 0 : index
    %c0_3 = arith.constant 0 : index
    %c0_4 = arith.constant 0 : index
    %2 = vector.load %arg4[%c0_2, %c0_3, %c0_4] : memref<2x1x512xf32, #tpu.memory_space<vmem>>, vector<1x1x512xf32>
    %3 = vector.shape_cast %2 : vector<1x1x512xf32> to vector<1x512xf32>
    %cst = arith.constant 0.000000e+00 : f32
    %4 = vector.broadcast %cst : f32 to vector<16x128xf32>
    %cst_5 = arith.constant 0.000000e+00 : f32
    %5 = vector.broadcast %cst_5 : f32 to vector<16x128xf32>
    %c0_6 = arith.constant 0 : index
    %c0_7 = arith.constant 0 : index
    %6 = vector.load %arg0[%c0_6, %c0_7] : memref<128x128xbf16, #tpu.memory_space<vmem>>, vector<128x128xbf16>
    %c0_8 = arith.constant 0 : index
    %c0_9 = arith.constant 0 : index
    %7 = vector.load %arg1[%c0_8, %c0_9] : memref<128x512xbf16, #tpu.memory_space<vmem>>, vector<128x512xbf16>
    %cst_10 = arith.constant dense<0.000000e+00> : vector<128x512xf32>
    %8 = tpu.matmul %6, %7, %cst_10 {dimension_numbers = #tpu.dot_dimension_numbers<[1], [0], [0], [1], [0, 0, 1, 1], [], []>} : vector<128x128xbf16>, vector<128x512xbf16>, vector<128x512xf32> -> vector<128x512xf32>
    %9 = vector.broadcast %3 : vector<1x512xf32> to vector<128x512xf32>
    %10 = arith.addf %8, %9 : vector<128x512xf32>
    %c0_11 = arith.constant 0 : index
    %c0_12 = arith.constant 0 : index
    %11 = vector.load %arg9[%c0_11, %c0_12] : memref<128x512xf32, #tpu.memory_space<vmem>>, vector<128x512xf32>
    tpu.vector_store %arg9[%c0_11, %c0_12], %10 {strides = array<i32>} : memref<128x512xf32, #tpu.memory_space<vmem>>, vector<128x512xf32>,
    %c0_i32 = arith.constant 0 : i32
    %c16_i32 = arith.constant 16 : i32
    %12 = arith.muli %c0_i32, %c16_i32 : i32
    %13 = tpu.assume_multiple %12, 16 : i32
    %14 = arith.index_cast %13 : i32 to index
    %c0_13 = arith.constant 0 : index
    %15 = vector.load %arg9[%14, %c0_13] : memref<128x512xf32, #tpu.memory_space<vmem>>, vector<16x512xf32>
    %16 = arith.truncf %4 : vector<16x128xf32> to vector<16x128xbf16>
    %cst_14 = arith.constant dense<0.000000e+00> : vector<16x512xf32>
    %17 = tpu.matmul %16, %1, %cst_14 {dimension_numbers = #tpu.dot_dimension_numbers<[1], [0], [0], [1], [0, 0, 1, 1], [], []>} : vector<16x128xbf16>, vector<128x512xbf16>, vector<16x512xf32> -> vector<16x512xf32>
    %18 = arith.addf %15, %17 : vector<16x512xf32>
    %19 = vector.extract_strided_slice %18 {offsets = [0, 0], sizes = [16, 384], strides = [1, 1]} : vector<16x512xf32> to vector<16x384xf32>
    %20 = arith.negf %19 : vector<16x384xf32>
    %21 = math.exp %20 : vector<16x384xf32>
    %cst_15 = arith.constant 1.000000e+00 : f32
    %22 = vector.broadcast %cst_15 : f32 to vector<16x384xf32>
    %23 = arith.addf %22, %21 : vector<16x384xf32>
    %24 = arith.divf %22, %23 : vector<16x384xf32>
    %25 = vector.extract_strided_slice %24 {offsets = [0, 0], sizes = [16, 128], strides = [1, 1]} : vector<16x384xf32> to vector<16x128xf32>
    %26 = vector.extract_strided_slice %24 {offsets = [0, 128], sizes = [16, 128], strides = [1, 1]} : vector<16x384xf32> to vector<16x128xf32>
    %27 = vector.extract_strided_slice %24 {offsets = [0, 256], sizes = [16, 128], strides = [1, 1]} : vector<16x384xf32> to vector<16x128xf32>
    %28 = vector.extract_strided_slice %18 {offsets = [0, 384], sizes = [16, 128], strides = [1, 1]} : vector<16x512xf32> to vector<16x128xf32>
    %29 = math.tanh %28 : vector<16x128xf32>
    %30 = arith.mulf %26, %5 : vector<16x128xf32>
    %31 = arith.mulf %25, %29 : vector<16x128xf32>
    %32 = arith.addf %30, %31 : vector<16x128xf32>
    %33 = math.tanh %32 : vector<16x128xf32>
    %34 = arith.mulf %27, %33 : vector<16x128xf32>
    %35 = arith.truncf %34 : vector<16x128xf32> to vector<16x128xbf16>
    %c16_i32_16 = arith.constant 16 : i32
    %36 = arith.muli %c0_i32, %c16_i32_16 : i32
    %c0_i32_17 = arith.constant 0 : i32
    %37 = arith.addi %c0_i32_17, %36 : i32
    %38 = tpu.assume_multiple %37, 16 : i32
    %39 = arith.index_cast %38 : i32 to index
    %c0_18 = arith.constant 0 : index
    %40 = vector.load %arg8[%39, %c0_18] : memref<128x128xbf16, #tpu.memory_space<vmem>>, vector<16x128xbf16>
    tpu.vector_store %arg8[%39, %c0_18], %35 {strides = array<i32>} : memref<128x128xbf16, #tpu.memory_space<vmem>>, vector<16x128xbf16>,
    %c1_i32 = arith.constant 1 : i32
    %c16_i32_19 = arith.constant 16 : i32
    %41 = arith.muli %c1_i32, %c16_i32_19 : i32
    %42 = tpu.assume_multiple %41, 16 : i32
    %43 = arith.index_cast %42 : i32 to index
    %c0_20 = arith.constant 0 : index
    %44 = vector.load %arg9[%43, %c0_20] : memref<128x512xf32, #tpu.memory_space<vmem>>, vector<16x512xf32>
    %45 = arith.truncf %34 : vector<16x128xf32> to vector<16x128xbf16>
    %cst_21 = arith.constant dense<0.000000e+00> : vector<16x512xf32>
    %46 = tpu.matmul %45, %1, %cst_21 {dimension_numbers = #tpu.dot_dimension_numbers<[1], [0], [0], [1], [0, 0, 1, 1], [], []>} : vector<16x128xbf16>, vector<128x512xbf16>, vector<16x512xf32> -> vector<16x512xf32>
    %47 = arith.addf %44, %46 : vector<16x512xf32>
    %48 = vector.extract_strided_slice %47 {offsets = [0, 0], sizes = [16, 384], strides = [1, 1]} : vector<16x512xf32> to vector<16x384xf32>
    %49 = arith.negf %48 : vector<16x384xf32>
    %50 = math.exp %49 : vector<16x384xf32>
    %cst_22 = arith.constant 1.000000e+00 : f32
    %51 = vector.broadcast %cst_22 : f32 to vector<16x384xf32>
    %52 = arith.addf %51, %50 : vector<16x384xf32>
    %53 = arith.divf %51, %52 : vector<16x384xf32>
    %54 = vector.extract_strided_slice %53 {offsets = [0, 0], sizes = [16, 128], strides = [1, 1]} : vector<16x384xf32> to vector<16x128xf32>
    %55 = vector.extract_strided_slice %53 {offsets = [0, 128], sizes = [16, 128], strides = [1, 1]} : vector<16x384xf32> to vector<16x128xf32>
    %56 = vector.extract_strided_slice %53 {offsets = [0, 256], sizes = [16, 128], strides = [1, 1]} : vector<16x384xf32> to vector<16x128xf32>
    %57 = vector.extract_strided_slice %47 {offsets = [0, 384], sizes = [16, 128], strides = [1, 1]} : vector<16x512xf32> to vector<16x128xf32>
    %58 = math.tanh %57 : vector<16x128xf32>
    %59 = arith.mulf %55, %32 : vector<16x128xf32>
    %60 = arith.mulf %54, %58 : vector<16x128xf32>
    %61 = arith.addf %59, %60 : vector<16x128xf32>
    %62 = math.tanh %61 : vector<16x128xf32>
    %63 = arith.mulf %56, %62 : vector<16x128xf32>
    %64 = arith.truncf %63 : vector<16x128xf32> to vector<16x128xbf16>
    %c16_i32_23 = arith.constant 16 : i32
    %65 = arith.muli %c1_i32, %c16_i32_23 : i32
    %c0_i32_24 = arith.constant 0 : i32
    %66 = arith.addi %c0_i32_24, %65 : i32
    %67 = tpu.assume_multiple %66, 16 : i32
    %68 = arith.index_cast %67 : i32 to index
    %c0_25 = arith.constant 0 : index
    %69 = vector.load %arg8[%68, %c0_25] : memref<128x128xbf16, #tpu.memory_space<vmem>>, vector<16x128xbf16>
    tpu.vector_store %arg8[%68, %c0_25], %64 {strides = array<i32>} : memref<128x128xbf16, #tpu.memory_space<vmem>>, vector<16x128xbf16>,
    %c2_i32 = arith.constant 2 : i32
    %c16_i32_26 = arith.constant 16 : i32
    %70 = arith.muli %c2_i32, %c16_i32_26 : i32
    %71 = tpu.assume_multiple %70, 16 : i32
    %72 = arith.index_cast %71 : i32 to index
    %c0_27 = arith.constant 0 : index
    %73 = vector.load %arg9[%72, %c0_27] : memref<128x512xf32, #tpu.memory_space<vmem>>, vector<16x512xf32>
    %74 = arith.truncf %63 : vector<16x128xf32> to vector<16x128xbf16>
    %cst_28 = arith.constant dense<0.000000e+00> : vector<16x512xf32>
    %75 = tpu.matmul %74, %1, %cst_28 {dimension_numbers = #tpu.dot_dimension_numbers<[1], [0], [0], [1], [0, 0, 1, 1], [], []>} : vector<16x128xbf16>, vector<128x512xbf16>, vector<16x512xf32> -> vector<16x512xf32>
    %76 = arith.addf %73, %75 : vector<16x512xf32>
    %77 = vector.extract_strided_slice %76 {offsets = [0, 0], sizes = [16, 384], strides = [1, 1]} : vector<16x512xf32> to vector<16x384xf32>
    %78 = arith.negf %77 : vector<16x384xf32>
    %79 = math.exp %78 : vector<16x384xf32>
    %cst_29 = arith.constant 1.000000e+00 : f32
    %80 = vector.broadcast %cst_29 : f32 to vector<16x384xf32>
    %81 = arith.addf %80, %79 : vector<16x384xf32>
    %82 = arith.divf %80, %81 : vector<16x384xf32>
    %83 = vector.extract_strided_slice %82 {offsets = [0, 0], sizes = [16, 128], strides = [1, 1]} : vector<16x384xf32> to vector<16x128xf32>
    %84 = vector.extract_strided_slice %82 {offsets = [0, 128], sizes = [16, 128], strides = [1, 1]} : vector<16x384xf32> to vector<16x128xf32>
    %85 = vector.extract_strided_slice %82 {offsets = [0, 256], sizes = [16, 128], strides = [1, 1]} : vector<16x384xf32> to vector<16x128xf32>
    %86 = vector.extract_strided_slice %76 {offsets = [0, 384], sizes = [16, 128], strides = [1, 1]} : vector<16x512xf32> to vector<16x128xf32>
    %87 = math.tanh %86 : vector<16x128xf32>
    %88 = arith.mulf %84, %61 : vector<16x128xf32>
    %89 = arith.mulf %83, %87 : vector<16x128xf32>
    %90 = arith.addf %88, %89 : vector<16x128xf32>
    %91 = math.tanh %90 : vector<16x128xf32>
    %92 = arith.mulf %85, %91 : vector<16x128xf32>
    %93 = arith.truncf %92 : vector<16x128xf32> to vector<16x128xbf16>
    %c16_i32_30 = arith.constant 16 : i32
    %94 = arith.muli %c2_i32, %c16_i32_30 : i32
    %c0_i32_31 = arith.constant 0 : i32
    %95 = arith.addi %c0_i32_31, %94 : i32
    %96 = tpu.assume_multiple %95, 16 : i32
    %97 = arith.index_cast %96 : i32 to index
    %c0_32 = arith.constant 0 : index
    %98 = vector.load %arg8[%97, %c0_32] : memref<128x128xbf16, #tpu.memory_space<vmem>>, vector<16x128xbf16>
    tpu.vector_store %arg8[%97, %c0_32], %93 {strides = array<i32>} : memref<128x128xbf16, #tpu.memory_space<vmem>>, vector<16x128xbf16>,
    %c3_i32 = arith.constant 3 : i32
    %c16_i32_33 = arith.constant 16 : i32
    %99 = arith.muli %c3_i32, %c16_i32_33 : i32
    %100 = tpu.assume_multiple %99, 16 : i32
    %101 = arith.index_cast %100 : i32 to index
    %c0_34 = arith.constant 0 : index
    %102 = vector.load %arg9[%101, %c0_34] : memref<128x512xf32, #tpu.memory_space<vmem>>, vector<16x512xf32>
    %103 = arith.truncf %92 : vector<16x128xf32> to vector<16x128xbf16>
    %cst_35 = arith.constant dense<0.000000e+00> : vector<16x512xf32>
    %104 = tpu.matmul %103, %1, %cst_35 {dimension_numbers = #tpu.dot_dimension_numbers<[1], [0], [0], [1], [0, 0, 1, 1], [], []>} : vector<16x128xbf16>, vector<128x512xbf16>, vector<16x512xf32> -> vector<16x512xf32>
    %105 = arith.addf %102, %104 : vector<16x512xf32>
    %106 = vector.extract_strided_slice %105 {offsets = [0, 0], sizes = [16, 384], strides = [1, 1]} : vector<16x512xf32> to vector<16x384xf32>
    %107 = arith.negf %106 : vector<16x384xf32>
    %108 = math.exp %107 : vector<16x384xf32>
    %cst_36 = arith.constant 1.000000e+00 : f32
    %109 = vector.broadcast %cst_36 : f32 to vector<16x384xf32>
    %110 = arith.addf %109, %108 : vector<16x384xf32>
    %111 = arith.divf %109, %110 : vector<16x384xf32>
    %112 = vector.extract_strided_slice %111 {offsets = [0, 0], sizes = [16, 128], strides = [1, 1]} : vector<16x384xf32> to vector<16x128xf32>
    %113 = vector.extract_strided_slice %111 {offsets = [0, 128], sizes = [16, 128], strides = [1, 1]} : vector<16x384xf32> to vector<16x128xf32>
    %114 = vector.extract_strided_slice %111 {offsets = [0, 256], sizes = [16, 128], strides = [1, 1]} : vector<16x384xf32> to vector<16x128xf32>
    %115 = vector.extract_strided_slice %105 {offsets = [0, 384], sizes = [16, 128], strides = [1, 1]} : vector<16x512xf32> to vector<16x128xf32>
    %116 = math.tanh %115 : vector<16x128xf32>
    %117 = arith.mulf %113, %90 : vector<16x128xf32>
    %118 = arith.mulf %112, %116 : vector<16x128xf32>
    %119 = arith.addf %117, %118 : vector<16x128xf32>
    %120 = math.tanh %119 : vector<16x128xf32>
    %121 = arith.mulf %114, %120 : vector<16x128xf32>
    %122 = arith.truncf %121 : vector<16x128xf32> to vector<16x128xbf16>
    %c16_i32_37 = arith.constant 16 : i32
    %123 = arith.muli %c3_i32, %c16_i32_37 : i32
    %c0_i32_38 = arith.constant 0 : i32
    %124 = arith.addi %c0_i32_38, %123 : i32
    %125 = tpu.assume_multiple %124, 16 : i32
    %126 = arith.index_cast %125 : i32 to index
    %c0_39 = arith.constant 0 : index
    %127 = vector.load %arg8[%126, %c0_39] : memref<128x128xbf16, #tpu.memory_space<vmem>>, vector<16x128xbf16>
    tpu.vector_store %arg8[%126, %c0_39], %122 {strides = array<i32>} : memref<128x128xbf16, #tpu.memory_space<vmem>>, vector<16x128xbf16>,
    %c4_i32 = arith.constant 4 : i32
    %c16_i32_40 = arith.constant 16 : i32
    %128 = arith.muli %c4_i32, %c16_i32_40 : i32
    %129 = tpu.assume_multiple %128, 16 : i32
    %130 = arith.index_cast %129 : i32 to index
    %c0_41 = arith.constant 0 : index
    %131 = vector.load %arg9[%130, %c0_41] : memref<128x512xf32, #tpu.memory_space<vmem>>, vector<16x512xf32>
    %132 = arith.truncf %121 : vector<16x128xf32> to vector<16x128xbf16>
    %cst_42 = arith.constant dense<0.000000e+00> : vector<16x512xf32>
    %133 = tpu.matmul %132, %1, %cst_42 {dimension_numbers = #tpu.dot_dimension_numbers<[1], [0], [0], [1], [0, 0, 1, 1], [], []>} : vector<16x128xbf16>, vector<128x512xbf16>, vector<16x512xf32> -> vector<16x512xf32>
    %134 = arith.addf %131, %133 : vector<16x512xf32>
    %135 = vector.extract_strided_slice %134 {offsets = [0, 0], sizes = [16, 384], strides = [1, 1]} : vector<16x512xf32> to vector<16x384xf32>
    %136 = arith.negf %135 : vector<16x384xf32>
    %137 = math.exp %136 : vector<16x384xf32>
    %cst_43 = arith.constant 1.000000e+00 : f32
    %138 = vector.broadcast %cst_43 : f32 to vector<16x384xf32>
    %139 = arith.addf %138, %137 : vector<16x384xf32>
    %140 = arith.divf %138, %139 : vector<16x384xf32>
    %141 = vector.extract_strided_slice %140 {offsets = [0, 0], sizes = [16, 128], strides = [1, 1]} : vector<16x384xf32> to vector<16x128xf32>
    %142 = vector.extract_strided_slice %140 {offsets = [0, 128], sizes = [16, 128], strides = [1, 1]} : vector<16x384xf32> to vector<16x128xf32>
    %143 = vector.extract_strided_slice %140 {offsets = [0, 256], sizes = [16, 128], strides = [1, 1]} : vector<16x384xf32> to vector<16x128xf32>
    %144 = vector.extract_strided_slice %134 {offsets = [0, 384], sizes = [16, 128], strides = [1, 1]} : vector<16x512xf32> to vector<16x128xf32>
    %145 = math.tanh %144 : vector<16x128xf32>
    %146 = arith.mulf %142, %119 : vector<16x128xf32>
    %147 = arith.mulf %141, %145 : vector<16x128xf32>
    %148 = arith.addf %146, %147 : vector<16x128xf32>
    %149 = math.tanh %148 : vector<16x128xf32>
    %150 = arith.mulf %143, %149 : vector<16x128xf32>
    %151 = arith.truncf %150 : vector<16x128xf32> to vector<16x128xbf16>
    %c16_i32_44 = arith.constant 16 : i32
    %152 = arith.muli %c4_i32, %c16_i32_44 : i32
    %c0_i32_45 = arith.constant 0 : i32
    %153 = arith.addi %c0_i32_45, %152 : i32
    %154 = tpu.assume_multiple %153, 16 : i32
    %155 = arith.index_cast %154 : i32 to index
    %c0_46 = arith.constant 0 : index
    %156 = vector.load %arg8[%155, %c0_46] : memref<128x128xbf16, #tpu.memory_space<vmem>>, vector<16x128xbf16>
    tpu.vector_store %arg8[%155, %c0_46], %151 {strides = array<i32>} : memref<128x128xbf16, #tpu.memory_space<vmem>>, vector<16x128xbf16>,
    %c5_i32 = arith.constant 5 : i32
    %c16_i32_47 = arith.constant 16 : i32
    %157 = arith.muli %c5_i32, %c16_i32_47 : i32
    %158 = tpu.assume_multiple %157, 16 : i32
    %159 = arith.index_cast %158 : i32 to index
    %c0_48 = arith.constant 0 : index
    %160 = vector.load %arg9[%159, %c0_48] : memref<128x512xf32, #tpu.memory_space<vmem>>, vector<16x512xf32>
    %161 = arith.truncf %150 : vector<16x128xf32> to vector<16x128xbf16>
    %cst_49 = arith.constant dense<0.000000e+00> : vector<16x512xf32>
    %162 = tpu.matmul %161, %1, %cst_49 {dimension_numbers = #tpu.dot_dimension_numbers<[1], [0], [0], [1], [0, 0, 1, 1], [], []>} : vector<16x128xbf16>, vector<128x512xbf16>, vector<16x512xf32> -> vector<16x512xf32>
    %163 = arith.addf %160, %162 : vector<16x512xf32>
    %164 = vector.extract_strided_slice %163 {offsets = [0, 0], sizes = [16, 384], strides = [1, 1]} : vector<16x512xf32> to vector<16x384xf32>
    %165 = arith.negf %164 : vector<16x384xf32>
    %166 = math.exp %165 : vector<16x384xf32>
    %cst_50 = arith.constant 1.000000e+00 : f32
    %167 = vector.broadcast %cst_50 : f32 to vector<16x384xf32>
    %168 = arith.addf %167, %166 : vector<16x384xf32>
    %169 = arith.divf %167, %168 : vector<16x384xf32>
    %170 = vector.extract_strided_slice %169 {offsets = [0, 0], sizes = [16, 128], strides = [1, 1]} : vector<16x384xf32> to vector<16x128xf32>
    %171 = vector.extract_strided_slice %169 {offsets = [0, 128], sizes = [16, 128], strides = [1, 1]} : vector<16x384xf32> to vector<16x128xf32>
    %172 = vector.extract_strided_slice %169 {offsets = [0, 256], sizes = [16, 128], strides = [1, 1]} : vector<16x384xf32> to vector<16x128xf32>
    %173 = vector.extract_strided_slice %163 {offsets = [0, 384], sizes = [16, 128], strides = [1, 1]} : vector<16x512xf32> to vector<16x128xf32>
    %174 = math.tanh %173 : vector<16x128xf32>
    %175 = arith.mulf %171, %148 : vector<16x128xf32>
    %176 = arith.mulf %170, %174 : vector<16x128xf32>
    %177 = arith.addf %175, %176 : vector<16x128xf32>
    %178 = math.tanh %177 : vector<16x128xf32>
    %179 = arith.mulf %172, %178 : vector<16x128xf32>
    %180 = arith.truncf %179 : vector<16x128xf32> to vector<16x128xbf16>
    %c16_i32_51 = arith.constant 16 : i32
    %181 = arith.muli %c5_i32, %c16_i32_51 : i32
    %c0_i32_52 = arith.constant 0 : i32
    %182 = arith.addi %c0_i32_52, %181 : i32
    %183 = tpu.assume_multiple %182, 16 : i32
    %184 = arith.index_cast %183 : i32 to index
    %c0_53 = arith.constant 0 : index
    %185 = vector.load %arg8[%184, %c0_53] : memref<128x128xbf16, #tpu.memory_space<vmem>>, vector<16x128xbf16>
    tpu.vector_store %arg8[%184, %c0_53], %180 {strides = array<i32>} : memref<128x128xbf16, #tpu.memory_space<vmem>>, vector<16x128xbf16>,
    %c6_i32 = arith.constant 6 : i32
    %c16_i32_54 = arith.constant 16 : i32
    %186 = arith.muli %c6_i32, %c16_i32_54 : i32
    %187 = tpu.assume_multiple %186, 16 : i32
    %188 = arith.index_cast %187 : i32 to index
    %c0_55 = arith.constant 0 : index
    %189 = vector.load %arg9[%188, %c0_55] : memref<128x512xf32, #tpu.memory_space<vmem>>, vector<16x512xf32>
    %190 = arith.truncf %179 : vector<16x128xf32> to vector<16x128xbf16>
    %cst_56 = arith.constant dense<0.000000e+00> : vector<16x512xf32>
    %191 = tpu.matmul %190, %1, %cst_56 {dimension_numbers = #tpu.dot_dimension_numbers<[1], [0], [0], [1], [0, 0, 1, 1], [], []>} : vector<16x128xbf16>, vector<128x512xbf16>, vector<16x512xf32> -> vector<16x512xf32>
    %192 = arith.addf %189, %191 : vector<16x512xf32>
    %193 = vector.extract_strided_slice %192 {offsets = [0, 0], sizes = [16, 384], strides = [1, 1]} : vector<16x512xf32> to vector<16x384xf32>
    %194 = arith.negf %193 : vector<16x384xf32>
    %195 = math.exp %194 : vector<16x384xf32>
    %cst_57 = arith.constant 1.000000e+00 : f32
    %196 = vector.broadcast %cst_57 : f32 to vector<16x384xf32>
    %197 = arith.addf %196, %195 : vector<16x384xf32>
    %198 = arith.divf %196, %197 : vector<16x384xf32>
    %199 = vector.extract_strided_slice %198 {offsets = [0, 0], sizes = [16, 128], strides = [1, 1]} : vector<16x384xf32> to vector<16x128xf32>
    %200 = vector.extract_strided_slice %198 {offsets = [0, 128], sizes = [16, 128], strides = [1, 1]} : vector<16x384xf32> to vector<16x128xf32>
    %201 = vector.extract_strided_slice %198 {offsets = [0, 256], sizes = [16, 128], strides = [1, 1]} : vector<16x384xf32> to vector<16x128xf32>
    %202 = vector.extract_strided_slice %192 {offsets = [0, 384], sizes = [16, 128], strides = [1, 1]} : vector<16x512xf32> to vector<16x128xf32>
    %203 = math.tanh %202 : vector<16x128xf32>
    %204 = arith.mulf %200, %177 : vector<16x128xf32>
    %205 = arith.mulf %199, %203 : vector<16x128xf32>
    %206 = arith.addf %204, %205 : vector<16x128xf32>
    %207 = math.tanh %206 : vector<16x128xf32>
    %208 = arith.mulf %201, %207 : vector<16x128xf32>
    %209 = arith.truncf %208 : vector<16x128xf32> to vector<16x128xbf16>
    %c16_i32_58 = arith.constant 16 : i32
    %210 = arith.muli %c6_i32, %c16_i32_58 : i32
    %c0_i32_59 = arith.constant 0 : i32
    %211 = arith.addi %c0_i32_59, %210 : i32
    %212 = tpu.assume_multiple %211, 16 : i32
    %213 = arith.index_cast %212 : i32 to index
    %c0_60 = arith.constant 0 : index
    %214 = vector.load %arg8[%213, %c0_60] : memref<128x128xbf16, #tpu.memory_space<vmem>>, vector<16x128xbf16>
    tpu.vector_store %arg8[%213, %c0_60], %209 {strides = array<i32>} : memref<128x128xbf16, #tpu.memory_space<vmem>>, vector<16x128xbf16>,
    %c7_i32 = arith.constant 7 : i32
    %c16_i32_61 = arith.constant 16 : i32
    %215 = arith.muli %c7_i32, %c16_i32_61 : i32
    %216 = tpu.assume_multiple %215, 16 : i32
    %217 = arith.index_cast %216 : i32 to index
    %c0_62 = arith.constant 0 : index
    %218 = vector.load %arg9[%217, %c0_62] : memref<128x512xf32, #tpu.memory_space<vmem>>, vector<16x512xf32>
    %219 = arith.truncf %208 : vector<16x128xf32> to vector<16x128xbf16>
    %cst_63 = arith.constant dense<0.000000e+00> : vector<16x512xf32>
    %220 = tpu.matmul %219, %1, %cst_63 {dimension_numbers = #tpu.dot_dimension_numbers<[1], [0], [0], [1], [0, 0, 1, 1], [], []>} : vector<16x128xbf16>, vector<128x512xbf16>, vector<16x512xf32> -> vector<16x512xf32>
    %221 = arith.addf %218, %220 : vector<16x512xf32>
    %222 = vector.extract_strided_slice %221 {offsets = [0, 0], sizes = [16, 384], strides = [1, 1]} : vector<16x512xf32> to vector<16x384xf32>
    %223 = arith.negf %222 : vector<16x384xf32>
    %224 = math.exp %223 : vector<16x384xf32>
    %cst_64 = arith.constant 1.000000e+00 : f32
    %225 = vector.broadcast %cst_64 : f32 to vector<16x384xf32>
    %226 = arith.addf %225, %224 : vector<16x384xf32>
    %227 = arith.divf %225, %226 : vector<16x384xf32>
    %228 = vector.extract_strided_slice %227 {offsets = [0, 0], sizes = [16, 128], strides = [1, 1]} : vector<16x384xf32> to vector<16x128xf32>
    %229 = vector.extract_strided_slice %227 {offsets = [0, 128], sizes = [16, 128], strides = [1, 1]} : vector<16x384xf32> to vector<16x128xf32>
    %230 = vector.extract_strided_slice %227 {offsets = [0, 256], sizes = [16, 128], strides = [1, 1]} : vector<16x384xf32> to vector<16x128xf32>
    %231 = vector.extract_strided_slice %221 {offsets = [0, 384], sizes = [16, 128], strides = [1, 1]} : vector<16x512xf32> to vector<16x128xf32>
    %232 = math.tanh %231 : vector<16x128xf32>
    %233 = arith.mulf %229, %206 : vector<16x128xf32>
    %234 = arith.mulf %228, %232 : vector<16x128xf32>
    %235 = arith.addf %233, %234 : vector<16x128xf32>
    %236 = math.tanh %235 : vector<16x128xf32>
    %237 = arith.mulf %230, %236 : vector<16x128xf32>
    %238 = arith.truncf %237 : vector<16x128xf32> to vector<16x128xbf16>
    %c16_i32_65 = arith.constant 16 : i32
    %239 = arith.muli %c7_i32, %c16_i32_65 : i32
    %c0_i32_66 = arith.constant 0 : i32
    %240 = arith.addi %c0_i32_66, %239 : i32
    %241 = tpu.assume_multiple %240, 16 : i32
    %242 = arith.index_cast %241 : i32 to index
    %c0_67 = arith.constant 0 : index
    %243 = vector.load %arg8[%242, %c0_67] : memref<128x128xbf16, #tpu.memory_space<vmem>>, vector<16x128xbf16>
    tpu.vector_store %arg8[%242, %c0_67], %238 {strides = array<i32>} : memref<128x128xbf16, #tpu.memory_space<vmem>>, vector<16x128xbf16>,
    %c8_i32 = arith.constant 8 : i32
    %c1 = arith.constant 1 : index
    %c0_68 = arith.constant 0 : index
    %c0_69 = arith.constant 0 : index
    %244 = vector.load %arg3[%c1, %c0_68, %c0_69] : memref<2x128x512xbf16, #tpu.memory_space<vmem>>, vector<1x128x512xbf16>
    %245 = vector.shape_cast %244 : vector<1x128x512xbf16> to vector<128x512xbf16>
    %c1_70 = arith.constant 1 : index
    %c0_71 = arith.constant 0 : index
    %c0_72 = arith.constant 0 : index
    %246 = vector.load %arg4[%c1_70, %c0_71, %c0_72] : memref<2x1x512xf32, #tpu.memory_space<vmem>>, vector<1x1x512xf32>
    %247 = vector.shape_cast %246 : vector<1x1x512xf32> to vector<1x512xf32>
    %cst_73 = arith.constant 0.000000e+00 : f32
    %248 = vector.broadcast %cst_73 : f32 to vector<16x128xf32>
    %cst_74 = arith.constant 0.000000e+00 : f32
    %249 = vector.broadcast %cst_74 : f32 to vector<16x128xf32>
    %c0_75 = arith.constant 0 : index
    %c0_76 = arith.constant 0 : index
    %250 = vector.load %arg8[%c0_75, %c0_76] : memref<128x128xbf16, #tpu.memory_space<vmem>>, vector<128x128xbf16>
    %c0_77 = arith.constant 0 : index
    %c0_78 = arith.constant 0 : index
    %c0_79 = arith.constant 0 : index
    %251 = vector.load %arg2[%c0_77, %c0_78, %c0_79] : memref<1x128x512xbf16, #tpu.memory_space<vmem>>, vector<1x128x512xbf16>
    %252 = vector.shape_cast %251 : vector<1x128x512xbf16> to vector<128x512xbf16>
    %cst_80 = arith.constant dense<0.000000e+00> : vector<128x512xf32>
    %253 = tpu.matmul %250, %252, %cst_80 {dimension_numbers = #tpu.dot_dimension_numbers<[1], [0], [0], [1], [0, 0, 1, 1], [], []>} : vector<128x128xbf16>, vector<128x512xbf16>, vector<128x512xf32> -> vector<128x512xf32>
    %254 = vector.broadcast %247 : vector<1x512xf32> to vector<128x512xf32>
    %255 = arith.addf %253, %254 : vector<128x512xf32>
    %c0_81 = arith.constant 0 : index
    %c0_82 = arith.constant 0 : index
    %256 = vector.load %arg9[%c0_81, %c0_82] : memref<128x512xf32, #tpu.memory_space<vmem>>, vector<128x512xf32>
    tpu.vector_store %arg9[%c0_81, %c0_82], %255 {strides = array<i32>} : memref<128x512xf32, #tpu.memory_space<vmem>>, vector<128x512xf32>,
    %c0_i32_83 = arith.constant 0 : i32
    %c16_i32_84 = arith.constant 16 : i32
    %257 = arith.muli %c0_i32_83, %c16_i32_84 : i32
    %258 = tpu.assume_multiple %257, 16 : i32
    %259 = arith.index_cast %258 : i32 to index
    %c0_85 = arith.constant 0 : index
    %260 = vector.load %arg9[%259, %c0_85] : memref<128x512xf32, #tpu.memory_space<vmem>>, vector<16x512xf32>
    %261 = arith.truncf %248 : vector<16x128xf32> to vector<16x128xbf16>
    %cst_86 = arith.constant dense<0.000000e+00> : vector<16x512xf32>
    %262 = tpu.matmul %261, %245, %cst_86 {dimension_numbers = #tpu.dot_dimension_numbers<[1], [0], [0], [1], [0, 0, 1, 1], [], []>} : vector<16x128xbf16>, vector<128x512xbf16>, vector<16x512xf32> -> vector<16x512xf32>
    %263 = arith.addf %260, %262 : vector<16x512xf32>
    %264 = vector.extract_strided_slice %263 {offsets = [0, 0], sizes = [16, 384], strides = [1, 1]} : vector<16x512xf32> to vector<16x384xf32>
    %265 = arith.negf %264 : vector<16x384xf32>
    %266 = math.exp %265 : vector<16x384xf32>
    %cst_87 = arith.constant 1.000000e+00 : f32
    %267 = vector.broadcast %cst_87 : f32 to vector<16x384xf32>
    %268 = arith.addf %267, %266 : vector<16x384xf32>
    %269 = arith.divf %267, %268 : vector<16x384xf32>
    %270 = vector.extract_strided_slice %269 {offsets = [0, 0], sizes = [16, 128], strides = [1, 1]} : vector<16x384xf32> to vector<16x128xf32>
    %271 = vector.extract_strided_slice %269 {offsets = [0, 128], sizes = [16, 128], strides = [1, 1]} : vector<16x384xf32> to vector<16x128xf32>
    %272 = vector.extract_strided_slice %269 {offsets = [0, 256], sizes = [16, 128], strides = [1, 1]} : vector<16x384xf32> to vector<16x128xf32>
    %273 = vector.extract_strided_slice %263 {offsets = [0, 384], sizes = [16, 128], strides = [1, 1]} : vector<16x512xf32> to vector<16x128xf32>
    %274 = math.tanh %273 : vector<16x128xf32>
    %275 = arith.mulf %271, %249 : vector<16x128xf32>
    %276 = arith.mulf %270, %274 : vector<16x128xf32>
    %277 = arith.addf %275, %276 : vector<16x128xf32>
    %278 = math.tanh %277 : vector<16x128xf32>
    %279 = arith.mulf %272, %278 : vector<16x128xf32>
    %280 = arith.truncf %279 : vector<16x128xf32> to vector<16x128xbf16>
    %c16_i32_88 = arith.constant 16 : i32
    %281 = arith.muli %c0_i32_83, %c16_i32_88 : i32
    %c0_i32_89 = arith.constant 0 : i32
    %282 = arith.addi %c0_i32_89, %281 : i32
    %283 = tpu.assume_multiple %282, 16 : i32
    %284 = arith.index_cast %283 : i32 to index
    %c0_90 = arith.constant 0 : index
    %285 = vector.load %arg8[%284, %c0_90] : memref<128x128xbf16, #tpu.memory_space<vmem>>, vector<16x128xbf16>
    tpu.vector_store %arg8[%284, %c0_90], %280 {strides = array<i32>} : memref<128x128xbf16, #tpu.memory_space<vmem>>, vector<16x128xbf16>,
    %c1_i32_91 = arith.constant 1 : i32
    %c16_i32_92 = arith.constant 16 : i32
    %286 = arith.muli %c1_i32_91, %c16_i32_92 : i32
    %287 = tpu.assume_multiple %286, 16 : i32
    %288 = arith.index_cast %287 : i32 to index
    %c0_93 = arith.constant 0 : index
    %289 = vector.load %arg9[%288, %c0_93] : memref<128x512xf32, #tpu.memory_space<vmem>>, vector<16x512xf32>
    %290 = arith.truncf %279 : vector<16x128xf32> to vector<16x128xbf16>
    %cst_94 = arith.constant dense<0.000000e+00> : vector<16x512xf32>
    %291 = tpu.matmul %290, %245, %cst_94 {dimension_numbers = #tpu.dot_dimension_numbers<[1], [0], [0], [1], [0, 0, 1, 1], [], []>} : vector<16x128xbf16>, vector<128x512xbf16>, vector<16x512xf32> -> vector<16x512xf32>
    %292 = arith.addf %289, %291 : vector<16x512xf32>
    %293 = vector.extract_strided_slice %292 {offsets = [0, 0], sizes = [16, 384], strides = [1, 1]} : vector<16x512xf32> to vector<16x384xf32>
    %294 = arith.negf %293 : vector<16x384xf32>
    %295 = math.exp %294 : vector<16x384xf32>
    %cst_95 = arith.constant 1.000000e+00 : f32
    %296 = vector.broadcast %cst_95 : f32 to vector<16x384xf32>
    %297 = arith.addf %296, %295 : vector<16x384xf32>
    %298 = arith.divf %296, %297 : vector<16x384xf32>
    %299 = vector.extract_strided_slice %298 {offsets = [0, 0], sizes = [16, 128], strides = [1, 1]} : vector<16x384xf32> to vector<16x128xf32>
    %300 = vector.extract_strided_slice %298 {offsets = [0, 128], sizes = [16, 128], strides = [1, 1]} : vector<16x384xf32> to vector<16x128xf32>
    %301 = vector.extract_strided_slice %298 {offsets = [0, 256], sizes = [16, 128], strides = [1, 1]} : vector<16x384xf32> to vector<16x128xf32>
    %302 = vector.extract_strided_slice %292 {offsets = [0, 384], sizes = [16, 128], strides = [1, 1]} : vector<16x512xf32> to vector<16x128xf32>
    %303 = math.tanh %302 : vector<16x128xf32>
    %304 = arith.mulf %300, %277 : vector<16x128xf32>
    %305 = arith.mulf %299, %303 : vector<16x128xf32>
    %306 = arith.addf %304, %305 : vector<16x128xf32>
    %307 = math.tanh %306 : vector<16x128xf32>
    %308 = arith.mulf %301, %307 : vector<16x128xf32>
    %309 = arith.truncf %308 : vector<16x128xf32> to vector<16x128xbf16>
    %c16_i32_96 = arith.constant 16 : i32
    %310 = arith.muli %c1_i32_91, %c16_i32_96 : i32
    %c0_i32_97 = arith.constant 0 : i32
    %311 = arith.addi %c0_i32_97, %310 : i32
    %312 = tpu.assume_multiple %311, 16 : i32
    %313 = arith.index_cast %312 : i32 to index
    %c0_98 = arith.constant 0 : index
    %314 = vector.load %arg8[%313, %c0_98] : memref<128x128xbf16, #tpu.memory_space<vmem>>, vector<16x128xbf16>
    tpu.vector_store %arg8[%313, %c0_98], %309 {strides = array<i32>} : memref<128x128xbf16, #tpu.memory_space<vmem>>, vector<16x128xbf16>,
    %c2_i32_99 = arith.constant 2 : i32
    %c16_i32_100 = arith.constant 16 : i32
    %315 = arith.muli %c2_i32_99, %c16_i32_100 : i32
    %316 = tpu.assume_multiple %315, 16 : i32
    %317 = arith.index_cast %316 : i32 to index
    %c0_101 = arith.constant 0 : index
    %318 = vector.load %arg9[%317, %c0_101] : memref<128x512xf32, #tpu.memory_space<vmem>>, vector<16x512xf32>
    %319 = arith.truncf %308 : vector<16x128xf32> to vector<16x128xbf16>
    %cst_102 = arith.constant dense<0.000000e+00> : vector<16x512xf32>
    %320 = tpu.matmul %319, %245, %cst_102 {dimension_numbers = #tpu.dot_dimension_numbers<[1], [0], [0], [1], [0, 0, 1, 1], [], []>} : vector<16x128xbf16>, vector<128x512xbf16>, vector<16x512xf32> -> vector<16x512xf32>
    %321 = arith.addf %318, %320 : vector<16x512xf32>
    %322 = vector.extract_strided_slice %321 {offsets = [0, 0], sizes = [16, 384], strides = [1, 1]} : vector<16x512xf32> to vector<16x384xf32>
    %323 = arith.negf %322 : vector<16x384xf32>
    %324 = math.exp %323 : vector<16x384xf32>
    %cst_103 = arith.constant 1.000000e+00 : f32
    %325 = vector.broadcast %cst_103 : f32 to vector<16x384xf32>
    %326 = arith.addf %325, %324 : vector<16x384xf32>
    %327 = arith.divf %325, %326 : vector<16x384xf32>
    %328 = vector.extract_strided_slice %327 {offsets = [0, 0], sizes = [16, 128], strides = [1, 1]} : vector<16x384xf32> to vector<16x128xf32>
    %329 = vector.extract_strided_slice %327 {offsets = [0, 128], sizes = [16, 128], strides = [1, 1]} : vector<16x384xf32> to vector<16x128xf32>
    %330 = vector.extract_strided_slice %327 {offsets = [0, 256], sizes = [16, 128], strides = [1, 1]} : vector<16x384xf32> to vector<16x128xf32>
    %331 = vector.extract_strided_slice %321 {offsets = [0, 384], sizes = [16, 128], strides = [1, 1]} : vector<16x512xf32> to vector<16x128xf32>
    %332 = math.tanh %331 : vector<16x128xf32>
    %333 = arith.mulf %329, %306 : vector<16x128xf32>
    %334 = arith.mulf %328, %332 : vector<16x128xf32>
    %335 = arith.addf %333, %334 : vector<16x128xf32>
    %336 = math.tanh %335 : vector<16x128xf32>
    %337 = arith.mulf %330, %336 : vector<16x128xf32>
    %338 = arith.truncf %337 : vector<16x128xf32> to vector<16x128xbf16>
    %c16_i32_104 = arith.constant 16 : i32
    %339 = arith.muli %c2_i32_99, %c16_i32_104 : i32
    %c0_i32_105 = arith.constant 0 : i32
    %340 = arith.addi %c0_i32_105, %339 : i32
    %341 = tpu.assume_multiple %340, 16 : i32
    %342 = arith.index_cast %341 : i32 to index
    %c0_106 = arith.constant 0 : index
    %343 = vector.load %arg8[%342, %c0_106] : memref<128x128xbf16, #tpu.memory_space<vmem>>, vector<16x128xbf16>
    tpu.vector_store %arg8[%342, %c0_106], %338 {strides = array<i32>} : memref<128x128xbf16, #tpu.memory_space<vmem>>, vector<16x128xbf16>,
    %c3_i32_107 = arith.constant 3 : i32
    %c16_i32_108 = arith.constant 16 : i32
    %344 = arith.muli %c3_i32_107, %c16_i32_108 : i32
    %345 = tpu.assume_multiple %344, 16 : i32
    %346 = arith.index_cast %345 : i32 to index
    %c0_109 = arith.constant 0 : index
    %347 = vector.load %arg9[%346, %c0_109] : memref<128x512xf32, #tpu.memory_space<vmem>>, vector<16x512xf32>
    %348 = arith.truncf %337 : vector<16x128xf32> to vector<16x128xbf16>
    %cst_110 = arith.constant dense<0.000000e+00> : vector<16x512xf32>
    %349 = tpu.matmul %348, %245, %cst_110 {dimension_numbers = #tpu.dot_dimension_numbers<[1], [0], [0], [1], [0, 0, 1, 1], [], []>} : vector<16x128xbf16>, vector<128x512xbf16>, vector<16x512xf32> -> vector<16x512xf32>
    %350 = arith.addf %347, %349 : vector<16x512xf32>
    %351 = vector.extract_strided_slice %350 {offsets = [0, 0], sizes = [16, 384], strides = [1, 1]} : vector<16x512xf32> to vector<16x384xf32>
    %352 = arith.negf %351 : vector<16x384xf32>
    %353 = math.exp %352 : vector<16x384xf32>
    %cst_111 = arith.constant 1.000000e+00 : f32
    %354 = vector.broadcast %cst_111 : f32 to vector<16x384xf32>
    %355 = arith.addf %354, %353 : vector<16x384xf32>
    %356 = arith.divf %354, %355 : vector<16x384xf32>
    %357 = vector.extract_strided_slice %356 {offsets = [0, 0], sizes = [16, 128], strides = [1, 1]} : vector<16x384xf32> to vector<16x128xf32>
    %358 = vector.extract_strided_slice %356 {offsets = [0, 128], sizes = [16, 128], strides = [1, 1]} : vector<16x384xf32> to vector<16x128xf32>
    %359 = vector.extract_strided_slice %356 {offsets = [0, 256], sizes = [16, 128], strides = [1, 1]} : vector<16x384xf32> to vector<16x128xf32>
    %360 = vector.extract_strided_slice %350 {offsets = [0, 384], sizes = [16, 128], strides = [1, 1]} : vector<16x512xf32> to vector<16x128xf32>
    %361 = math.tanh %360 : vector<16x128xf32>
    %362 = arith.mulf %358, %335 : vector<16x128xf32>
    %363 = arith.mulf %357, %361 : vector<16x128xf32>
    %364 = arith.addf %362, %363 : vector<16x128xf32>
    %365 = math.tanh %364 : vector<16x128xf32>
    %366 = arith.mulf %359, %365 : vector<16x128xf32>
    %367 = arith.truncf %366 : vector<16x128xf32> to vector<16x128xbf16>
    %c16_i32_112 = arith.constant 16 : i32
    %368 = arith.muli %c3_i32_107, %c16_i32_112 : i32
    %c0_i32_113 = arith.constant 0 : i32
    %369 = arith.addi %c0_i32_113, %368 : i32
    %370 = tpu.assume_multiple %369, 16 : i32
    %371 = arith.index_cast %370 : i32 to index
    %c0_114 = arith.constant 0 : index
    %372 = vector.load %arg8[%371, %c0_114] : memref<128x128xbf16, #tpu.memory_space<vmem>>, vector<16x128xbf16>
    tpu.vector_store %arg8[%371, %c0_114], %367 {strides = array<i32>} : memref<128x128xbf16, #tpu.memory_space<vmem>>, vector<16x128xbf16>,
    %c4_i32_115 = arith.constant 4 : i32
    %c16_i32_116 = arith.constant 16 : i32
    %373 = arith.muli %c4_i32_115, %c16_i32_116 : i32
    %374 = tpu.assume_multiple %373, 16 : i32
    %375 = arith.index_cast %374 : i32 to index
    %c0_117 = arith.constant 0 : index
    %376 = vector.load %arg9[%375, %c0_117] : memref<128x512xf32, #tpu.memory_space<vmem>>, vector<16x512xf32>
    %377 = arith.truncf %366 : vector<16x128xf32> to vector<16x128xbf16>
    %cst_118 = arith.constant dense<0.000000e+00> : vector<16x512xf32>
    %378 = tpu.matmul %377, %245, %cst_118 {dimension_numbers = #tpu.dot_dimension_numbers<[1], [0], [0], [1], [0, 0, 1, 1], [], []>} : vector<16x128xbf16>, vector<128x512xbf16>, vector<16x512xf32> -> vector<16x512xf32>
    %379 = arith.addf %376, %378 : vector<16x512xf32>
    %380 = vector.extract_strided_slice %379 {offsets = [0, 0], sizes = [16, 384], strides = [1, 1]} : vector<16x512xf32> to vector<16x384xf32>
    %381 = arith.negf %380 : vector<16x384xf32>
    %382 = math.exp %381 : vector<16x384xf32>
    %cst_119 = arith.constant 1.000000e+00 : f32
    %383 = vector.broadcast %cst_119 : f32 to vector<16x384xf32>
    %384 = arith.addf %383, %382 : vector<16x384xf32>
    %385 = arith.divf %383, %384 : vector<16x384xf32>
    %386 = vector.extract_strided_slice %385 {offsets = [0, 0], sizes = [16, 128], strides = [1, 1]} : vector<16x384xf32> to vector<16x128xf32>
    %387 = vector.extract_strided_slice %385 {offsets = [0, 128], sizes = [16, 128], strides = [1, 1]} : vector<16x384xf32> to vector<16x128xf32>
    %388 = vector.extract_strided_slice %385 {offsets = [0, 256], sizes = [16, 128], strides = [1, 1]} : vector<16x384xf32> to vector<16x128xf32>
    %389 = vector.extract_strided_slice %379 {offsets = [0, 384], sizes = [16, 128], strides = [1, 1]} : vector<16x512xf32> to vector<16x128xf32>
    %390 = math.tanh %389 : vector<16x128xf32>
    %391 = arith.mulf %387, %364 : vector<16x128xf32>
    %392 = arith.mulf %386, %390 : vector<16x128xf32>
    %393 = arith.addf %391, %392 : vector<16x128xf32>
    %394 = math.tanh %393 : vector<16x128xf32>
    %395 = arith.mulf %388, %394 : vector<16x128xf32>
    %396 = arith.truncf %395 : vector<16x128xf32> to vector<16x128xbf16>
    %c16_i32_120 = arith.constant 16 : i32
    %397 = arith.muli %c4_i32_115, %c16_i32_120 : i32
    %c0_i32_121 = arith.constant 0 : i32
    %398 = arith.addi %c0_i32_121, %397 : i32
    %399 = tpu.assume_multiple %398, 16 : i32
    %400 = arith.index_cast %399 : i32 to index
    %c0_122 = arith.constant 0 : index
    %401 = vector.load %arg8[%400, %c0_122] : memref<128x128xbf16, #tpu.memory_space<vmem>>, vector<16x128xbf16>
    tpu.vector_store %arg8[%400, %c0_122], %396 {strides = array<i32>} : memref<128x128xbf16, #tpu.memory_space<vmem>>, vector<16x128xbf16>,
    %c5_i32_123 = arith.constant 5 : i32
    %c16_i32_124 = arith.constant 16 : i32
    %402 = arith.muli %c5_i32_123, %c16_i32_124 : i32
    %403 = tpu.assume_multiple %402, 16 : i32
    %404 = arith.index_cast %403 : i32 to index
    %c0_125 = arith.constant 0 : index
    %405 = vector.load %arg9[%404, %c0_125] : memref<128x512xf32, #tpu.memory_space<vmem>>, vector<16x512xf32>
    %406 = arith.truncf %395 : vector<16x128xf32> to vector<16x128xbf16>
    %cst_126 = arith.constant dense<0.000000e+00> : vector<16x512xf32>
    %407 = tpu.matmul %406, %245, %cst_126 {dimension_numbers = #tpu.dot_dimension_numbers<[1], [0], [0], [1], [0, 0, 1, 1], [], []>} : vector<16x128xbf16>, vector<128x512xbf16>, vector<16x512xf32> -> vector<16x512xf32>
    %408 = arith.addf %405, %407 : vector<16x512xf32>
    %409 = vector.extract_strided_slice %408 {offsets = [0, 0], sizes = [16, 384], strides = [1, 1]} : vector<16x512xf32> to vector<16x384xf32>
    %410 = arith.negf %409 : vector<16x384xf32>
    %411 = math.exp %410 : vector<16x384xf32>
    %cst_127 = arith.constant 1.000000e+00 : f32
    %412 = vector.broadcast %cst_127 : f32 to vector<16x384xf32>
    %413 = arith.addf %412, %411 : vector<16x384xf32>
    %414 = arith.divf %412, %413 : vector<16x384xf32>
    %415 = vector.extract_strided_slice %414 {offsets = [0, 0], sizes = [16, 128], strides = [1, 1]} : vector<16x384xf32> to vector<16x128xf32>
    %416 = vector.extract_strided_slice %414 {offsets = [0, 128], sizes = [16, 128], strides = [1, 1]} : vector<16x384xf32> to vector<16x128xf32>
    %417 = vector.extract_strided_slice %414 {offsets = [0, 256], sizes = [16, 128], strides = [1, 1]} : vector<16x384xf32> to vector<16x128xf32>
    %418 = vector.extract_strided_slice %408 {offsets = [0, 384], sizes = [16, 128], strides = [1, 1]} : vector<16x512xf32> to vector<16x128xf32>
    %419 = math.tanh %418 : vector<16x128xf32>
    %420 = arith.mulf %416, %393 : vector<16x128xf32>
    %421 = arith.mulf %415, %419 : vector<16x128xf32>
    %422 = arith.addf %420, %421 : vector<16x128xf32>
    %423 = math.tanh %422 : vector<16x128xf32>
    %424 = arith.mulf %417, %423 : vector<16x128xf32>
    %425 = arith.truncf %424 : vector<16x128xf32> to vector<16x128xbf16>
    %c16_i32_128 = arith.constant 16 : i32
    %426 = arith.muli %c5_i32_123, %c16_i32_128 : i32
    %c0_i32_129 = arith.constant 0 : i32
    %427 = arith.addi %c0_i32_129, %426 : i32
    %428 = tpu.assume_multiple %427, 16 : i32
    %429 = arith.index_cast %428 : i32 to index
    %c0_130 = arith.constant 0 : index
    %430 = vector.load %arg8[%429, %c0_130] : memref<128x128xbf16, #tpu.memory_space<vmem>>, vector<16x128xbf16>
    tpu.vector_store %arg8[%429, %c0_130], %425 {strides = array<i32>} : memref<128x128xbf16, #tpu.memory_space<vmem>>, vector<16x128xbf16>,
    %c6_i32_131 = arith.constant 6 : i32
    %c16_i32_132 = arith.constant 16 : i32
    %431 = arith.muli %c6_i32_131, %c16_i32_132 : i32
    %432 = tpu.assume_multiple %431, 16 : i32
    %433 = arith.index_cast %432 : i32 to index
    %c0_133 = arith.constant 0 : index
    %434 = vector.load %arg9[%433, %c0_133] : memref<128x512xf32, #tpu.memory_space<vmem>>, vector<16x512xf32>
    %435 = arith.truncf %424 : vector<16x128xf32> to vector<16x128xbf16>
    %cst_134 = arith.constant dense<0.000000e+00> : vector<16x512xf32>
    %436 = tpu.matmul %435, %245, %cst_134 {dimension_numbers = #tpu.dot_dimension_numbers<[1], [0], [0], [1], [0, 0, 1, 1], [], []>} : vector<16x128xbf16>, vector<128x512xbf16>, vector<16x512xf32> -> vector<16x512xf32>
    %437 = arith.addf %434, %436 : vector<16x512xf32>
    %438 = vector.extract_strided_slice %437 {offsets = [0, 0], sizes = [16, 384], strides = [1, 1]} : vector<16x512xf32> to vector<16x384xf32>
    %439 = arith.negf %438 : vector<16x384xf32>
    %440 = math.exp %439 : vector<16x384xf32>
    %cst_135 = arith.constant 1.000000e+00 : f32
    %441 = vector.broadcast %cst_135 : f32 to vector<16x384xf32>
    %442 = arith.addf %441, %440 : vector<16x384xf32>
    %443 = arith.divf %441, %442 : vector<16x384xf32>
    %444 = vector.extract_strided_slice %443 {offsets = [0, 0], sizes = [16, 128], strides = [1, 1]} : vector<16x384xf32> to vector<16x128xf32>
    %445 = vector.extract_strided_slice %443 {offsets = [0, 128], sizes = [16, 128], strides = [1, 1]} : vector<16x384xf32> to vector<16x128xf32>
    %446 = vector.extract_strided_slice %443 {offsets = [0, 256], sizes = [16, 128], strides = [1, 1]} : vector<16x384xf32> to vector<16x128xf32>
    %447 = vector.extract_strided_slice %437 {offsets = [0, 384], sizes = [16, 128], strides = [1, 1]} : vector<16x512xf32> to vector<16x128xf32>
    %448 = math.tanh %447 : vector<16x128xf32>
    %449 = arith.mulf %445, %422 : vector<16x128xf32>
    %450 = arith.mulf %444, %448 : vector<16x128xf32>
    %451 = arith.addf %449, %450 : vector<16x128xf32>
    %452 = math.tanh %451 : vector<16x128xf32>
    %453 = arith.mulf %446, %452 : vector<16x128xf32>
    %454 = arith.truncf %453 : vector<16x128xf32> to vector<16x128xbf16>
    %c16_i32_136 = arith.constant 16 : i32
    %455 = arith.muli %c6_i32_131, %c16_i32_136 : i32
    %c0_i32_137 = arith.constant 0 : i32
    %456 = arith.addi %c0_i32_137, %455 : i32
    %457 = tpu.assume_multiple %456, 16 : i32
    %458 = arith.index_cast %457 : i32 to index
    %c0_138 = arith.constant 0 : index
    %459 = vector.load %arg8[%458, %c0_138] : memref<128x128xbf16, #tpu.memory_space<vmem>>, vector<16x128xbf16>
    tpu.vector_store %arg8[%458, %c0_138], %454 {strides = array<i32>} : memref<128x128xbf16, #tpu.memory_space<vmem>>, vector<16x128xbf16>,
    %c7_i32_139 = arith.constant 7 : i32
    %c16_i32_140 = arith.constant 16 : i32
    %460 = arith.muli %c7_i32_139, %c16_i32_140 : i32
    %461 = tpu.assume_multiple %460, 16 : i32
    %462 = arith.index_cast %461 : i32 to index
    %c0_141 = arith.constant 0 : index
    %463 = vector.load %arg9[%462, %c0_141] : memref<128x512xf32, #tpu.memory_space<vmem>>, vector<16x512xf32>
    %464 = arith.truncf %453 : vector<16x128xf32> to vector<16x128xbf16>
    %cst_142 = arith.constant dense<0.000000e+00> : vector<16x512xf32>
    %465 = tpu.matmul %464, %245, %cst_142 {dimension_numbers = #tpu.dot_dimension_numbers<[1], [0], [0], [1], [0, 0, 1, 1], [], []>} : vector<16x128xbf16>, vector<128x512xbf16>, vector<16x512xf32> -> vector<16x512xf32>
    %466 = arith.addf %463, %465 : vector<16x512xf32>
    %467 = vector.extract_strided_slice %466 {offsets = [0, 0], sizes = [16, 384], strides = [1, 1]} : vector<16x512xf32> to vector<16x384xf32>
    %468 = arith.negf %467 : vector<16x384xf32>
    %469 = math.exp %468 : vector<16x384xf32>
    %cst_143 = arith.constant 1.000000e+00 : f32
    %470 = vector.broadcast %cst_143 : f32 to vector<16x384xf32>
    %471 = arith.addf %470, %469 : vector<16x384xf32>
    %472 = arith.divf %470, %471 : vector<16x384xf32>
    %473 = vector.extract_strided_slice %472 {offsets = [0, 0], sizes = [16, 128], strides = [1, 1]} : vector<16x384xf32> to vector<16x128xf32>
    %474 = vector.extract_strided_slice %472 {offsets = [0, 128], sizes = [16, 128], strides = [1, 1]} : vector<16x384xf32> to vector<16x128xf32>
    %475 = vector.extract_strided_slice %472 {offsets = [0, 256], sizes = [16, 128], strides = [1, 1]} : vector<16x384xf32> to vector<16x128xf32>
    %476 = vector.extract_strided_slice %466 {offsets = [0, 384], sizes = [16, 128], strides = [1, 1]} : vector<16x512xf32> to vector<16x128xf32>
    %477 = math.tanh %476 : vector<16x128xf32>
    %478 = arith.mulf %474, %451 : vector<16x128xf32>
    %479 = arith.mulf %473, %477 : vector<16x128xf32>
    %480 = arith.addf %478, %479 : vector<16x128xf32>
    %481 = math.tanh %480 : vector<16x128xf32>
    %482 = arith.mulf %475, %481 : vector<16x128xf32>
    %483 = arith.truncf %482 : vector<16x128xf32> to vector<16x128xbf16>
    %c16_i32_144 = arith.constant 16 : i32
    %484 = arith.muli %c7_i32_139, %c16_i32_144 : i32
    %c0_i32_145 = arith.constant 0 : i32
    %485 = arith.addi %c0_i32_145, %484 : i32
    %486 = tpu.assume_multiple %485, 16 : i32
    %487 = arith.index_cast %486 : i32 to index
    %c0_146 = arith.constant 0 : index
    %488 = vector.load %arg8[%487, %c0_146] : memref<128x128xbf16, #tpu.memory_space<vmem>>, vector<16x128xbf16>
    tpu.vector_store %arg8[%487, %c0_146], %483 {strides = array<i32>} : memref<128x128xbf16, #tpu.memory_space<vmem>>, vector<16x128xbf16>,
    %c8_i32_147 = arith.constant 8 : i32
    %c0_148 = arith.constant 0 : index
    %c0_149 = arith.constant 0 : index
    %489 = vector.load %arg5[%c0_148, %c0_149] : memref<128x128xbf16, #tpu.memory_space<vmem>>, vector<128x128xbf16>
    %c0_150 = arith.constant 0 : index
    %c0_151 = arith.constant 0 : index
    %490 = vector.load %arg6[%c0_150, %c0_151] : memref<1x128xf32, #tpu.memory_space<vmem>>, vector<1x128xf32>
    %c0_152 = arith.constant 0 : index
    %c0_153 = arith.constant 0 : index
    %491 = vector.load %arg8[%c0_152, %c0_153] : memref<128x128xbf16, #tpu.memory_space<vmem>>, vector<128x128xbf16>
    %cst_154 = arith.constant dense<0.000000e+00> : vector<128x128xf32>
    %492 = tpu.matmul %491, %489, %cst_154 {dimension_numbers = #tpu.dot_dimension_numbers<[1], [0], [0], [1], [0, 0, 1, 1], [], []>} : vector<128x128xbf16>, vector<128x128xbf16>, vector<128x128xf32> -> vector<128x128xf32>
    %493 = vector.broadcast %490 : vector<1x128xf32> to vector<128x128xf32>
    %494 = arith.addf %492, %493 : vector<128x128xf32>
    %c0_155 = arith.constant 0 : index
    %c0_156 = arith.constant 0 : index
    %495 = vector.load %arg7[%c0_155, %c0_156] : memref<128x128xf32, #tpu.memory_space<vmem>>, vector<128x128xf32>
    tpu.vector_store %arg7[%c0_155, %c0_156], %494 {strides = array<i32>} : memref<128x128xf32, #tpu.memory_space<vmem>>, vector<128x128xf32>,
    return
  }
}

</mosaic_0001>

<llo_original>
// kernel: tpu_custom_call.1
$region0: #{tpu_custom_call.1}
  #allocation0 [shape = 'u32[]', space=smem, size = 0x4, offset = 0x4, fixed_abs, tag = 'smem constant byte address 0x4 - core index']
  #allocation1 [shape = 'u32[144,128]{1,0:T(1,128)}', space=vmem, size = 0x12000, scoped, tag = 'internal scratch']
  #allocation2 [shape = 'bf16[128,128]{1,0:T(16,128)(2,1)}', space=vmem, size = 0x8000, scoped, tag = 'scratch operand']
  #allocation3 [shape = 'f32[128,512]{1,0:T(8,128)}', space=vmem, size = 0x40000, scoped, tag = 'scratch operand']
  %s0 = inlined_call_operand.hbm [shape: bf16[128,128], index: 0, kind: input, shape index: {}]
  %s1 = inlined_call_operand.hbm [shape: bf16[128,512], index: 1, kind: input, shape index: {}]
  %s2 = inlined_call_operand.hbm [shape: bf16[1,128,512], index: 2, kind: input, shape index: {}]
  %s3 = inlined_call_operand.hbm [shape: bf16[2,128,512], index: 3, kind: input, shape index: {}]
  %s4 = inlined_call_operand.vmem [shape: f32[2,1,512], index: 4, kind: input, shape index: {}]
  %s5 = inlined_call_operand.hbm [shape: bf16[128,128], index: 5, kind: input, shape index: {}]
  %s6 = inlined_call_operand.vmem [shape: f32[1,128], index: 6, kind: input, shape index: {}]
  %s7 = inlined_call_operand.hbm [shape: f32[128,128], index: 7, kind: output, shape index: {}]
  %s8 = sld [smem:[#allocation0]]
  $region58: #{tpu_custom_call.1} parent=0
    _
  %s10 = ssub.s32 1, %s8
  %s11 = scalar_select 0, %s10, %s8
  $region1: #{tpu_custom_call.1} parent=0
    #allocation4 [shape = 'u8[32768]{0}', space=vmem, size = 0x8000, scoped, tag = 'input window, operand 0, single buffered']
    #allocation5 [shape = 's32[1]{0}', space=sflag, size = 0x4, scoped, tag = 'scoped memory for tpu_custom_call.1']
    #allocation6 [shape = 's32[1]{0}', space=sflag, size = 0x4, scoped, tag = 'scoped memory for tpu_custom_call.1']
    #allocation7 [shape = 'u8[131072]{0}', space=vmem, size = 0x20000, scoped, tag = 'input window, operand 1, single buffered']
    #allocation8 [shape = 's32[1]{0}', space=sflag, size = 0x4, scoped, tag = 'scoped memory for tpu_custom_call.1']
    #allocation9 [shape = 'u8[131072]{0}', space=vmem, size = 0x20000, scoped, tag = 'input window, operand 2, single buffered']
    #allocation10 [shape = 'u8[262144]{0}', space=vmem, size = 0x40000, scoped, tag = 'input window, operand 3, single buffered']
    #allocation11 [shape = 's32[1]{0}', space=sflag, size = 0x4, scoped, tag = 'scoped memory for tpu_custom_call.1']
    #allocation12 [shape = 'u8[32768]{0}', space=vmem, size = 0x8000, scoped, tag = 'input window, operand 5, single buffered']
    #allocation13 [shape = 'u8[65536]{0}', space=vmem, size = 0x10000, scoped, tag = 'output window, operand 0, single buffered']
    %12 = vsyncpa [#allocation5], 0
    %13 = vsyncpa [#allocation8], 0
    %14 = vsyncpa [#allocation11], 0
    %15 = vsyncpa [#allocation6], 0
    // Predicated region
    $region2: #{tpu_custom_call.1} parent=1 // pred_check
      _
    $region3: #{tpu_custom_call.1} parent=1 // pred_check_branch
      %17 = sbr.rel (0) target = $region5
    $region4: #{tpu_custom_call.1} parent=1 // pred_region
      %s19 = ssub.s32 1024, 1024
      %20 = vsyncadd [#allocation5], %s19
      %s21 = sshll.u32 [#allocation4], 4
      %s22 = int_to_ptr.vmem [resolvable:$true] %s21
      %27 = dma.hbm_to_vmem [thread:$0]  %s0, 1024, %s22, [#allocation5], 64, 64, 4
    $region5: #{tpu_custom_call.1} parent=1 // pred_fallthru
      _
    // Predicated region
    $region6: #{tpu_custom_call.1} parent=1 // pred_check
      _
    $region7: #{tpu_custom_call.1} parent=1 // pred_check_branch
      %29 = sbr.rel (0) target = $region9
    $region8: #{tpu_custom_call.1} parent=1 // pred_region
      %s31 = ssub.s32 4096, 4096
      %32 = vsyncadd [#allocation8], %s31
      %s33 = sshll.u32 [#allocation7], 4
      %s34 = int_to_ptr.vmem [resolvable:$true] %s33
      %39 = dma.hbm_to_vmem [thread:$0]  %s1, 4096, %s34, [#allocation8], 256, 256, 16
    $region9: #{tpu_custom_call.1} parent=1 // pred_fallthru
      _
    // Predicated region
    $region10: #{tpu_custom_call.1} parent=1 // pred_check
      _
    $region11: #{tpu_custom_call.1} parent=1 // pred_check_branch
      %41 = sbr.rel (0) target = $region13
    $region12: #{tpu_custom_call.1} parent=1 // pred_region
      %s43 = ssub.s32 4096, 4096
      %44 = vsyncadd [#allocation8], %s43
      %s45 = sshll.u32 [#allocation9], 4
      %s46 = int_to_ptr.vmem [resolvable:$true] %s45
      %51 = dma.hbm_to_vmem [thread:$0]  %s2, 4096, %s46, [#allocation8], 256, 256, 16
    $region13: #{tpu_custom_call.1} parent=1 // pred_fallthru
      _
    // Predicated region
    $region14: #{tpu_custom_call.1} parent=1 // pred_check
      _
    $region15: #{tpu_custom_call.1} parent=1 // pred_check_branch
      %53 = sbr.rel (0) target = $region17
    $region16: #{tpu_custom_call.1} parent=1 // pred_region
      %s55 = ssub.s32 8192, 8192
      %56 = vsyncadd [#allocation11], %s55
      %s57 = sshll.u32 [#allocation10], 4
      %s58 = int_to_ptr.vmem [resolvable:$true] %s57
      %63 = dma.hbm_to_vmem [thread:$0]  %s3, 8192, %s58, [#allocation11], 256, 256, 16
    $region17: #{tpu_custom_call.1} parent=1 // pred_fallthru
      _
    // Predicated region
    $region18: #{tpu_custom_call.1} parent=1 // pred_check
      _
    $region19: #{tpu_custom_call.1} parent=1 // pred_check_branch
      %65 = sbr.rel (0) target = $region21
    $region20: #{tpu_custom_call.1} parent=1 // pred_region
      _
    $region21: #{tpu_custom_call.1} parent=1 // pred_fallthru
      _
    // Predicated region
    $region22: #{tpu_custom_call.1} parent=1 // pred_check
      _
    $region23: #{tpu_custom_call.1} parent=1 // pred_check_branch
      %67 = sbr.rel (0) target = $region25
    $region24: #{tpu_custom_call.1} parent=1 // pred_region
      %s69 = ssub.s32 1024, 1024
      %70 = vsyncadd [#allocation11], %s69
      %s71 = sshll.u32 [#allocation12], 4
      %s72 = int_to_ptr.vmem [resolvable:$true] %s71
      %77 = dma.hbm_to_vmem [thread:$0]  %s5, 1024, %s72, [#allocation11], 64, 64, 4
    $region25: #{tpu_custom_call.1} parent=1 // pred_fallthru
      _
    // Predicated region
    $region26: #{tpu_custom_call.1} parent=1 // pred_check
      _
    $region27: #{tpu_custom_call.1} parent=1 // pred_check_branch
      %79 = sbr.rel (0) target = $region29
    $region28: #{tpu_custom_call.1} parent=1 // pred_region
      _
    $region29: #{tpu_custom_call.1} parent=1 // pred_fallthru
      _
    // Predicated region
    $region30: #{tpu_custom_call.1} parent=1 // pred_check
      _
    $region31: #{tpu_custom_call.1} parent=1 // pred_check_branch
      %81 = sbr.rel (0) target = $region33
    $region32: #{tpu_custom_call.1} parent=1 // pred_region
      %82 = dma.done [#allocation5], 1024
    $region33: #{tpu_custom_call.1} parent=1 // pred_fallthru
      _
    // Predicated region
    $region34: #{tpu_custom_call.1} parent=1 // pred_check
      _
    $region35: #{tpu_custom_call.1} parent=1 // pred_check_branch
      %84 = sbr.rel (0) target = $region37
    $region36: #{tpu_custom_call.1} parent=1 // pred_region
      %85 = dma.done [#allocation8], 4096
    $region37: #{tpu_custom_call.1} parent=1 // pred_fallthru
      _
    // Predicated region
    $region38: #{tpu_custom_call.1} parent=1 // pred_check
      _
    $region39: #{tpu_custom_call.1} parent=1 // pred_check_branch
      %87 = sbr.rel (0) target = $region41
    $region40: #{tpu_custom_call.1} parent=1 // pred_region
      %88 = dma.done [#allocation8], 4096
    $region41: #{tpu_custom_call.1} parent=1 // pred_fallthru
      _
    // Predicated region
    $region42: #{tpu_custom_call.1} parent=1 // pred_check
      _
    $region43: #{tpu_custom_call.1} parent=1 // pred_check_branch
      %90 = sbr.rel (0) target = $region45
    $region44: #{tpu_custom_call.1} parent=1 // pred_region
      %91 = dma.done [#allocation11], 8192
    $region45: #{tpu_custom_call.1} parent=1 // pred_fallthru
      _
    // Predicated region
    $region46: #{tpu_custom_call.1} parent=1 // pred_check
      _
    $region47: #{tpu_custom_call.1} parent=1 // pred_check_branch
      %93 = sbr.rel (0) target = $region49
    $region48: #{tpu_custom_call.1} parent=1 // pred_region
      %94 = dma.done [#allocation11], 1024
    $region49: #{tpu_custom_call.1} parent=1 // pred_fallthru
      _
    %v96 = vld [vmem:[#allocation10] sm:$0xff]
    %v97 = vld [vmem:[#allocation10 + $0x8] sm:$0xff]
    %v98 = vld [vmem:[#allocation10 + $0x10] sm:$0xff]
    %v99 = vld [vmem:[#allocation10 + $0x18] sm:$0xff]
    %v100 = vld [vmem:[#allocation10 + $0x20] sm:$0xff]
    %v101 = vld [vmem:[#allocation10 + $0x28] sm:$0xff]
    %v102 = vld [vmem:[#allocation10 + $0x30] sm:$0xff]
    %v103 = vld [vmem:[#allocation10 + $0x38] sm:$0xff]
    %v104 = vld [vmem:[#allocation10 + $0x40] sm:$0xff]
    %v105 = vld [vmem:[#allocation10 + $0x48] sm:$0xff]
    %v106 = vld [vmem:[#allocation10 + $0x50] sm:$0xff]
    %v107 = vld [vmem:[#allocation10 + $0x58] sm:$0xff]
    %v108 = vld [vmem:[#allocation10 + $0x60] sm:$0xff]
    %v109 = vld [vmem:[#allocation10 + $0x68] sm:$0xff]
    %v110 = vld [vmem:[#allocation10 + $0x70] sm:$0xff]
    %v111 = vld [vmem:[#allocation10 + $0x78] sm:$0xff]
    %v112 = vld [vmem:[#allocation10 + $0x80] sm:$0xff]
    %v113 = vld [vmem:[#allocation10 + $0x88] sm:$0xff]
    %v114 = vld [vmem:[#allocation10 + $0x90] sm:$0xff]
    %v115 = vld [vmem:[#allocation10 + $0x98] sm:$0xff]
    %v116 = vld [vmem:[#allocation10 + $0xa0] sm:$0xff]
    %v117 = vld [vmem:[#allocation10 + $0xa8] sm:$0xff]
    %v118 = vld [vmem:[#allocation10 + $0xb0] sm:$0xff]
    %v119 = vld [vmem:[#allocation10 + $0xb8] sm:$0xff]
    %v120 = vld [vmem:[#allocation10 + $0xc0] sm:$0xff]
    %v121 = vld [vmem:[#allocation10 + $0xc8] sm:$0xff]
    %v122 = vld [vmem:[#allocation10 + $0xd0] sm:$0xff]
    %v123 = vld [vmem:[#allocation10 + $0xd8] sm:$0xff]
    %v124 = vld [vmem:[#allocation10 + $0xe0] sm:$0xff]
    %v125 = vld [vmem:[#allocation10 + $0xe8] sm:$0xff]
    %v126 = vld [vmem:[#allocation10 + $0xf0] sm:$0xff]
    %v127 = vld [vmem:[#allocation10 + $0xf8] sm:$0xff]
    %v128 = vld [vmem:[%s4] sm:$0xf]
    %v129 = vld [vmem:[#allocation4] sm:$0xf]
    %v130 = vld [vmem:[#allocation4 + $0x4] sm:$0xf]
    %v131 = vld [vmem:[#allocation4 + $0x8] sm:$0xf]
    %v132 = vld [vmem:[#allocation4 + $0xc] sm:$0xf]
    %v133 = vld [vmem:[#allocation4 + $0x10] sm:$0xf]
    %v134 = vld [vmem:[#allocation4 + $0x14] sm:$0xf]
    %v135 = vld [vmem:[#allocation4 + $0x18] sm:$0xf]
    %v136 = vld [vmem:[#allocation4 + $0x1c] sm:$0xf]
    %v137 = vld [vmem:[#allocation4 + $0x20] sm:$0xf]
    %v138 = vld [vmem:[#allocation4 + $0x24] sm:$0xf]
    %v139 = vld [vmem:[#allocation4 + $0x28] sm:$0xf]
    %v140 = vld [vmem:[#allocation4 + $0x2c] sm:$0xf]
    %v141 = vld [vmem:[#allocation4 + $0x30] sm:$0xf]
    %v142 = vld [vmem:[#allocation4 + $0x34] sm:$0xf]
    %v143 = vld [vmem:[#allocation4 + $0x38] sm:$0xf]
    %v144 = vld [vmem:[#allocation4 + $0x3c] sm:$0xf]
    %v145 = vld [vmem:[#allocation7] sm:$0xff]
    %v146 = vld [vmem:[#allocation7 + $0x8] sm:$0xff]
    %v147 = vld [vmem:[#allocation7 + $0x10] sm:$0xff]
    %v148 = vld [vmem:[#allocation7 + $0x18] sm:$0xff]
    %v149 = vld [vmem:[#allocation7 + $0x20] sm:$0xff]
    %v150 = vld [vmem:[#allocation7 + $0x28] sm:$0xff]
    %v151 = vld [vmem:[#allocation7 + $0x30] sm:$0xff]
    %v152 = vld [vmem:[#allocation7 + $0x38] sm:$0xff]
    %v153 = vld [vmem:[#allocation7 + $0x40] sm:$0xff]
    %v154 = vld [vmem:[#allocation7 + $0x48] sm:$0xff]
    %v155 = vld [vmem:[#allocation7 + $0x50] sm:$0xff]
    %v156 = vld [vmem:[#allocation7 + $0x58] sm:$0xff]
    %v157 = vld [vmem:[#allocation7 + $0x60] sm:$0xff]
    %v158 = vld [vmem:[#allocation7 + $0x68] sm:$0xff]
    %v159 = vld [vmem:[#allocation7 + $0x70] sm:$0xff]
    %v160 = vld [vmem:[#allocation7 + $0x78] sm:$0xff]
    %v161 = vld [vmem:[#allocation7 + $0x80] sm:$0xff]
    %v162 = vld [vmem:[#allocation7 + $0x88] sm:$0xff]
    %v163 = vld [vmem:[#allocation7 + $0x90] sm:$0xff]
    %v164 = vld [vmem:[#allocation7 + $0x98] sm:$0xff]
    %v165 = vld [vmem:[#allocation7 + $0xa0] sm:$0xff]
    %v166 = vld [vmem:[#allocation7 + $0xa8] sm:$0xff]
    %v167 = vld [vmem:[#allocation7 + $0xb0] sm:$0xff]
    %v168 = vld [vmem:[#allocation7 + $0xb8] sm:$0xff]
    %v169 = vld [vmem:[#allocation7 + $0xc0] sm:$0xff]
    %v170 = vld [vmem:[#allocation7 + $0xc8] sm:$0xff]
    %v171 = vld [vmem:[#allocation7 + $0xd0] sm:$0xff]
    %v172 = vld [vmem:[#allocation7 + $0xd8] sm:$0xff]
    %v173 = vld [vmem:[#allocation7 + $0xe0] sm:$0xff]
    %v174 = vld [vmem:[#allocation7 + $0xe8] sm:$0xff]
    %v175 = vld [vmem:[#allocation7 + $0xf0] sm:$0xff]
    %v176 = vld [vmem:[#allocation7 + $0xf8] sm:$0xff]
    %v178 = vlaneseq
    %v179 = vshrl.u32 %v178, 7
    %v180 = vsub.s32 0, %v179
    %v181 = vrot.slane %v128, %v180
    %v182 = vlaneseq
    %v183 = vshrl.u32 %v182, 7
    %v184 = vsub.s32 1, %v183
    %v185 = vrot.slane %v128, %v184
    %v186 = vlaneseq
    %v187 = vshrl.u32 %v186, 7
    %v188 = vsub.s32 2, %v187
    %v189 = vrot.slane %v128, %v188
    %v190 = vlaneseq
    %v191 = vshrl.u32 %v190, 7
    %v192 = vsub.s32 3, %v191
    %v193 = vrot.slane %v128, %v192
    %v214 = vunpack.c.l.b16 %v129
    %v215 = vunpack.c.l.b16 %v130
    %v216 = vunpack.c.l.b16 %v131
    %v217 = vunpack.c.l.b16 %v132
    %v218 = vunpack.c.l.b16 %v133
    %v219 = vunpack.c.l.b16 %v134
    %v220 = vunpack.c.l.b16 %v135
    %v221 = vunpack.c.l.b16 %v136
    %v222 = vunpack.c.l.b16 %v137
    %v223 = vunpack.c.l.b16 %v138
    %v224 = vunpack.c.l.b16 %v139
    %v225 = vunpack.c.l.b16 %v140
    %v226 = vunpack.c.l.b16 %v141
    %v227 = vunpack.c.l.b16 %v142
    %v228 = vunpack.c.l.b16 %v143
    %v229 = vunpack.c.l.b16 %v144
    %v230 = vpack.c.b16 %v215, %v214
    %v231 = vpack.c.b16 %v217, %v216
    %v232 = vpack.c.b16 %v219, %v218
    %v233 = vpack.c.b16 %v221, %v220
    %v234 = vpack.c.b16 %v223, %v222
    %v235 = vpack.c.b16 %v225, %v224
    %v236 = vpack.c.b16 %v227, %v226
    %v237 = vpack.c.b16 %v229, %v228
    %v278 = vunpack.c.l.b16 %v145
    %v279 = vunpack.c.h.b16 %v145
    %v280 = vunpack.c.l.b16 %v146
    %v281 = vunpack.c.h.b16 %v146
    %v282 = vunpack.c.l.b16 %v147
    %v283 = vunpack.c.h.b16 %v147
    %v284 = vunpack.c.l.b16 %v148
    %v285 = vunpack.c.h.b16 %v148
    %v286 = vunpack.c.l.b16 %v149
    %v287 = vunpack.c.h.b16 %v149
    %v288 = vunpack.c.l.b16 %v150
    %v289 = vunpack.c.h.b16 %v150
    %v290 = vunpack.c.l.b16 %v151
    %v291 = vunpack.c.h.b16 %v151
    %v292 = vunpack.c.l.b16 %v152
    %v293 = vunpack.c.h.b16 %v152
    %v294 = vunpack.c.l.b16 %v153
    %v295 = vunpack.c.h.b16 %v153
    %v296 = vunpack.c.l.b16 %v154
    %v297 = vunpack.c.h.b16 %v154
    %v298 = vunpack.c.l.b16 %v155
    %v299 = vunpack.c.h.b16 %v155
    %v300 = vunpack.c.l.b16 %v156
    %v301 = vunpack.c.h.b16 %v156
    %v302 = vunpack.c.l.b16 %v157
    %v303 = vunpack.c.h.b16 %v157
    %v304 = vunpack.c.l.b16 %v158
    %v305 = vunpack.c.h.b16 %v158
    %v306 = vunpack.c.l.b16 %v159
    %v307 = vunpack.c.h.b16 %v159
    %v308 = vunpack.c.l.b16 %v160
    %v309 = vunpack.c.h.b16 %v160
    %v310 = vunpack.c.l.b16 %v161
    %v311 = vunpack.c.h.b16 %v161
    %v312 = vunpack.c.l.b16 %v162
    %v313 = vunpack.c.h.b16 %v162
    %v314 = vunpack.c.l.b16 %v163
    %v315 = vunpack.c.h.b16 %v163
    %v316 = vunpack.c.l.b16 %v164
    %v317 = vunpack.c.h.b16 %v164
    %v318 = vunpack.c.l.b16 %v165
    %v319 = vunpack.c.h.b16 %v165
    %v320 = vunpack.c.l.b16 %v166
    %v321 = vunpack.c.h.b16 %v166
    %v322 = vunpack.c.l.b16 %v167
    %v323 = vunpack.c.h.b16 %v167
    %v324 = vunpack.c.l.b16 %v168
    %v325 = vunpack.c.h.b16 %v168
    %v326 = vunpack.c.l.b16 %v169
    %v327 = vunpack.c.h.b16 %v169
    %v328 = vunpack.c.l.b16 %v170
    %v329 = vunpack.c.h.b16 %v170
    %v330 = vunpack.c.l.b16 %v171
    %v331 = vunpack.c.h.b16 %v171
    %v332 = vunpack.c.l.b16 %v172
    %v333 = vunpack.c.h.b16 %v172
    %v334 = vunpack.c.l.b16 %v173
    %v335 = vunpack.c.h.b16 %v173
    %v336 = vunpack.c.l.b16 %v174
    %v337 = vunpack.c.h.b16 %v174
    %v338 = vunpack.c.l.b16 %v175
    %v339 = vunpack.c.h.b16 %v175
    %v340 = vunpack.c.l.b16 %v176
    %v341 = vunpack.c.h.b16 %v176
    %v342 = vpack.c.b16 %v282, %v278
    %v343 = vpack.c.b16 %v283, %v279
    %v344 = vpack.c.b16 %v284, %v280
    %v345 = vpack.c.b16 %v285, %v281
    %v346 = vpack.c.b16 %v290, %v286
    %v347 = vpack.c.b16 %v291, %v287
    %v348 = vpack.c.b16 %v292, %v288
    %v349 = vpack.c.b16 %v293, %v289
    %v350 = vpack.c.b16 %v298, %v294
    %v351 = vpack.c.b16 %v299, %v295
    %v352 = vpack.c.b16 %v300, %v296
    %v353 = vpack.c.b16 %v301, %v297
    %v354 = vpack.c.b16 %v306, %v302
    %v355 = vpack.c.b16 %v307, %v303
    %v356 = vpack.c.b16 %v308, %v304
    %v357 = vpack.c.b16 %v309, %v305
    %v358 = vpack.c.b16 %v314, %v310
    %v359 = vpack.c.b16 %v315, %v311
    %v360 = vpack.c.b16 %v316, %v312
    %v361 = vpack.c.b16 %v317, %v313
    %v362 = vpack.c.b16 %v322, %v318
    %v363 = vpack.c.b16 %v323, %v319
    %v364 = vpack.c.b16 %v324, %v320
    %v365 = vpack.c.b16 %v325, %v321
    %v366 = vpack.c.b16 %v330, %v326
    %v367 = vpack.c.b16 %v331, %v327
    %v368 = vpack.c.b16 %v332, %v328
    %v369 = vpack.c.b16 %v333, %v329
    %v370 = vpack.c.b16 %v338, %v334
    %v371 = vpack.c.b16 %v339, %v335
    %v372 = vpack.c.b16 %v340, %v336
    %v373 = vpack.c.b16 %v341, %v337
    %406 = vmatprep.subr.bf16.mxu0 %v343
    %407 = vmatpush1.bf16.msra.mxu0 %v342
    %408 = vmatprep.subr.bf16.mxu0 %v347
    %409 = vmatpush1.bf16.msra.mxu0 %v346
    %410 = vmatprep.subr.bf16.mxu0 %v351
    %411 = vmatpush1.bf16.msra.mxu0 %v350
    %412 = vmatprep.subr.bf16.mxu0 %v355
    %413 = vmatpush1.bf16.msra.mxu0 %v354
    %414 = vmatprep.subr.bf16.mxu0 %v359
    %415 = vmatpush1.bf16.msra.mxu0 %v358
    %416 = vmatprep.subr.bf16.mxu0 %v363
    %417 = vmatpush1.bf16.msra.mxu0 %v362
    %418 = vmatprep.subr.bf16.mxu0 %v367
    %419 = vmatpush1.bf16.msra.mxu0 %v366
    %420 = vmatprep.subr.bf16.mxu0 %v371
    %421 = vmatpush1.bf16.msra.mxu0 %v370
    %422 = vmatprep.subr.bf16.mxu0 0
    %423 = vmatpush1.bf16.msra.mxu0 0
    %424 = vmatprep.subr.bf16.mxu0 0
    %425 = vmatpush1.bf16.msra.mxu0 0
    %426 = vmatprep.subr.bf16.mxu0 0
    %427 = vmatpush1.bf16.msra.mxu0 0
    %428 = vmatprep.subr.bf16.mxu0 0
    %429 = vmatpush1.bf16.msra.mxu0 0
    %430 = vmatprep.subr.bf16.mxu0 0
    %431 = vmatpush1.bf16.msra.mxu0 0
    %432 = vmatprep.subr.bf16.mxu0 0
    %433 = vmatpush1.bf16.msra.mxu0 0
    %434 = vmatprep.subr.bf16.mxu0 0
    %435 = vmatpush1.bf16.msra.mxu0 0
    %436 = vmatprep.subr.bf16.mxu0 0
    %437 = vmatpush1.bf16.msra.mxu0 0
    %438 = vmatprep.mubr.bf16.mxu0 0
    %439 = vmatmul.mubr.bf16.gmra.mrb[0].mxu0 %v230
    %v440 = vpop.f32.mrb[0].mxu0
    %v441 = vadd.f32 %v181, %v440
    %v442 = vpop.f32.mrb[0].mxu0
    %v443 = vadd.f32 %v185, %v442
    %v444 = vpop.f32.mrb[0].mxu0
    %v445 = vadd.f32 %v181, %v444
    %v446 = vpop.f32.mrb[0].mxu0
    %v447 = vadd.f32 %v185, %v446
    %448 = vmatprep.mubr.bf16.mxu0 0
    %449 = vmatmul.mubr.bf16.gmra.mrb[0].mxu0 %v231
    %v450 = vpop.f32.mrb[0].mxu0
    %v451 = vadd.f32 %v181, %v450
    %v452 = vpop.f32.mrb[0].mxu0
    %v453 = vadd.f32 %v185, %v452
    %v454 = vpop.f32.mrb[0].mxu0
    %v455 = vadd.f32 %v181, %v454
    %v456 = vpop.f32.mrb[0].mxu0
    %v457 = vadd.f32 %v185, %v456
    %458 = vmatprep.mubr.bf16.mxu0 0
    %459 = vmatmul.mubr.bf16.gmra.mrb[0].mxu0 %v232
    %v460 = vpop.f32.mrb[0].mxu0
    %v461 = vadd.f32 %v181, %v460
    %v462 = vpop.f32.mrb[0].mxu0
    %v463 = vadd.f32 %v185, %v462
    %v464 = vpop.f32.mrb[0].mxu0
    %v465 = vadd.f32 %v181, %v464
    %v466 = vpop.f32.mrb[0].mxu0
    %v467 = vadd.f32 %v185, %v466
    %468 = vmatprep.mubr.bf16.mxu0 0
    %469 = vmatmul.mubr.bf16.gmra.mrb[0].mxu0 %v233
    %v470 = vpop.f32.mrb[0].mxu0
    %v471 = vadd.f32 %v181, %v470
    %v472 = vpop.f32.mrb[0].mxu0
    %v473 = vadd.f32 %v185, %v472
    %v474 = vpop.f32.mrb[0].mxu0
    %v475 = vadd.f32 %v181, %v474
    %v476 = vpop.f32.mrb[0].mxu0
    %v477 = vadd.f32 %v185, %v476
    %478 = vmatprep.mubr.bf16.mxu0 0
    %479 = vmatmul.mubr.bf16.gmra.mrb[0].mxu0 %v234
    %v480 = vpop.f32.mrb[0].mxu0
    %v481 = vadd.f32 %v181, %v480
    %v482 = vpop.f32.mrb[0].mxu0
    %v483 = vadd.f32 %v185, %v482
    %v484 = vpop.f32.mrb[0].mxu0
    %v485 = vadd.f32 %v181, %v484
    %v486 = vpop.f32.mrb[0].mxu0
    %v487 = vadd.f32 %v185, %v486
    %488 = vmatprep.mubr.bf16.mxu0 0
    %489 = vmatmul.mubr.bf16.gmra.mrb[0].mxu0 %v235
    %v490 = vpop.f32.mrb[0].mxu0
    %v491 = vadd.f32 %v181, %v490
    %v492 = vpop.f32.mrb[0].mxu0
    %v493 = vadd.f32 %v185, %v492
    %v494 = vpop.f32.mrb[0].mxu0
    %v495 = vadd.f32 %v181, %v494
    %v496 = vpop.f32.mrb[0].mxu0
    %v497 = vadd.f32 %v185, %v496
    %498 = vmatprep.mubr.bf16.mxu0 0
    %499 = vmatmul.mubr.bf16.gmra.mrb[0].mxu0 %v236
    %v500 = vpop.f32.mrb[0].mxu0
    %v501 = vadd.f32 %v181, %v500
    %v502 = vpop.f32.mrb[0].mxu0
    %v503 = vadd.f32 %v185, %v502
    %v504 = vpop.f32.mrb[0].mxu0
    %v505 = vadd.f32 %v181, %v504
    %v506 = vpop.f32.mrb[0].mxu0
    %v507 = vadd.f32 %v185, %v506
    %508 = vmatprep.mubr.bf16.mxu0 0
    %509 = vmatmul.mubr.bf16.gmra.mrb[0].mxu0 %v237
    %v510 = vpop.f32.mrb[0].mxu0
    %v511 = vadd.f32 %v181, %v510
    %v512 = vpop.f32.mrb[0].mxu0
    %v513 = vadd.f32 %v185, %v512
    %v514 = vpop.f32.mrb[0].mxu0
    %v515 = vadd.f32 %v181, %v514
    %v516 = vpop.f32.mrb[0].mxu0
    %v517 = vadd.f32 %v185, %v516
    %518 = vdwg.mxu0
    %519 = vmatprep.subr.bf16.mxu0 %v345
    %520 = vmatpush1.bf16.msra.mxu0 %v344
    %521 = vmatprep.subr.bf16.mxu0 %v349
    %522 = vmatpush1.bf16.msra.mxu0 %v348
    %523 = vmatprep.subr.bf16.mxu0 %v353
    %524 = vmatpush1.bf16.msra.mxu0 %v352
    %525 = vmatprep.subr.bf16.mxu0 %v357
    %526 = vmatpush1.bf16.msra.mxu0 %v356
    %527 = vmatprep.subr.bf16.mxu0 %v361
    %528 = vmatpush1.bf16.msra.mxu0 %v360
    %529 = vmatprep.subr.bf16.mxu0 %v365
    %530 = vmatpush1.bf16.msra.mxu0 %v364
    %531 = vmatprep.subr.bf16.mxu0 %v369
    %532 = vmatpush1.bf16.msra.mxu0 %v368
    %533 = vmatprep.subr.bf16.mxu0 %v373
    %534 = vmatpush1.bf16.msra.mxu0 %v372
    %535 = vmatprep.subr.bf16.mxu0 0
    %536 = vmatpush1.bf16.msra.mxu0 0
    %537 = vmatprep.subr.bf16.mxu0 0
    %538 = vmatpush1.bf16.msra.mxu0 0
    %539 = vmatprep.subr.bf16.mxu0 0
    %540 = vmatpush1.bf16.msra.mxu0 0
    %541 = vmatprep.subr.bf16.mxu0 0
    %542 = vmatpush1.bf16.msra.mxu0 0
    %543 = vmatprep.subr.bf16.mxu0 0
    %544 = vmatpush1.bf16.msra.mxu0 0
    %545 = vmatprep.subr.bf16.mxu0 0
    %546 = vmatpush1.bf16.msra.mxu0 0
    %547 = vmatprep.subr.bf16.mxu0 0
    %548 = vmatpush1.bf16.msra.mxu0 0
    %549 = vmatprep.subr.bf16.mxu0 0
    %550 = vmatpush1.bf16.msra.mxu0 0
    %551 = vmatprep.mubr.bf16.mxu0 0
    %552 = vmatmul.mubr.bf16.gmra.mrb[0].mxu0 %v230
    %v553 = vpop.f32.mrb[0].mxu0
    %v554 = vadd.f32 %v189, %v553
    %v555 = vpop.f32.mrb[0].mxu0
    %v556 = vadd.f32 %v193, %v555
    %v557 = vpop.f32.mrb[0].mxu0
    %v558 = vadd.f32 %v189, %v557
    %v559 = vpop.f32.mrb[0].mxu0
    %v560 = vadd.f32 %v193, %v559
    %561 = vmatprep.mubr.bf16.mxu0 0
    %562 = vmatmul.mubr.bf16.gmra.mrb[0].mxu0 %v231
    %v563 = vpop.f32.mrb[0].mxu0
    %v564 = vadd.f32 %v189, %v563
    %v565 = vpop.f32.mrb[0].mxu0
    %v566 = vadd.f32 %v193, %v565
    %v567 = vpop.f32.mrb[0].mxu0
    %v568 = vadd.f32 %v189, %v567
    %v569 = vpop.f32.mrb[0].mxu0
    %v570 = vadd.f32 %v193, %v569
    %571 = vmatprep.mubr.bf16.mxu0 0
    %572 = vmatmul.mubr.bf16.gmra.mrb[0].mxu0 %v232
    %v573 = vpop.f32.mrb[0].mxu0
    %v574 = vadd.f32 %v189, %v573
    %v575 = vpop.f32.mrb[0].mxu0
    %v576 = vadd.f32 %v193, %v575
    %v577 = vpop.f32.mrb[0].mxu0
    %v578 = vadd.f32 %v189, %v577
    %v579 = vpop.f32.mrb[0].mxu0
    %v580 = vadd.f32 %v193, %v579
    %581 = vmatprep.mubr.bf16.mxu0 0
    %582 = vmatmul.mubr.bf16.gmra.mrb[0].mxu0 %v233
    %v583 = vpop.f32.mrb[0].mxu0
    %v584 = vadd.f32 %v189, %v583
    %v585 = vpop.f32.mrb[0].mxu0
    %v586 = vadd.f32 %v193, %v585
    %v587 = vpop.f32.mrb[0].mxu0
    %v588 = vadd.f32 %v189, %v587
    %v589 = vpop.f32.mrb[0].mxu0
    %v590 = vadd.f32 %v193, %v589
    %591 = vmatprep.mubr.bf16.mxu0 0
    %592 = vmatmul.mubr.bf16.gmra.mrb[0].mxu0 %v234
    %v593 = vpop.f32.mrb[0].mxu0
    %v594 = vadd.f32 %v189, %v593
    %v595 = vpop.f32.mrb[0].mxu0
    %v596 = vadd.f32 %v193, %v595
    %v597 = vpop.f32.mrb[0].mxu0
    %v598 = vadd.f32 %v189, %v597
    %v599 = vpop.f32.mrb[0].mxu0
    %v600 = vadd.f32 %v193, %v599
    %601 = vmatprep.mubr.bf16.mxu0 0
    %602 = vmatmul.mubr.bf16.gmra.mrb[0].mxu0 %v235
    %v603 = vpop.f32.mrb[0].mxu0
    %v604 = vadd.f32 %v189, %v603
    %v605 = vpop.f32.mrb[0].mxu0
    %v606 = vadd.f32 %v193, %v605
    %v607 = vpop.f32.mrb[0].mxu0
    %v608 = vadd.f32 %v189, %v607
    %v609 = vpop.f32.mrb[0].mxu0
    %v610 = vadd.f32 %v193, %v609
    %611 = vmatprep.mubr.bf16.mxu0 0
    %612 = vmatmul.mubr.bf16.gmra.mrb[0].mxu0 %v236
    %v613 = vpop.f32.mrb[0].mxu0
    %v614 = vadd.f32 %v189, %v613
    %v615 = vpop.f32.mrb[0].mxu0
    %v616 = vadd.f32 %v193, %v615
    %v617 = vpop.f32.mrb[0].mxu0
    %v618 = vadd.f32 %v189, %v617
    %v619 = vpop.f32.mrb[0].mxu0
    %v620 = vadd.f32 %v193, %v619
    %621 = vmatprep.mubr.bf16.mxu0 0
    %622 = vmatmul.mubr.bf16.gmra.mrb[0].mxu0 %v237
    %v623 = vpop.f32.mrb[0].mxu0
    %v624 = vadd.f32 %v189, %v623
    %v625 = vpop.f32.mrb[0].mxu0
    %v626 = vadd.f32 %v193, %v625
    %v627 = vpop.f32.mrb[0].mxu0
    %v628 = vadd.f32 %v189, %v627
    %v629 = vpop.f32.mrb[0].mxu0
    %v630 = vadd.f32 %v193, %v629
    %631 = vdwg.mxu0
    %632 = vst [vmem:[#allocation3] sm:$0xff] %v441
    %633 = vst [vmem:[#allocation3 + $0x8] sm:$0xff] %v443
    %634 = vst [vmem:[#allocation3 + $0x10] sm:$0xff] %v554
    %635 = vst [vmem:[#allocation3 + $0x18] sm:$0xff] %v556
    %636 = vst [vmem:[#allocation3 + $0x20] sm:$0xff] %v445
    %637 = vst [vmem:[#allocation3 + $0x28] sm:$0xff] %v447
    %638 = vst [vmem:[#allocation3 + $0x30] sm:$0xff] %v558
    %639 = vst [vmem:[#allocation3 + $0x38] sm:$0xff] %v560
    %640 = vst [vmem:[#allocation3 + $0x40] sm:$0xff] %v451
    %641 = vst [vmem:[#allocation3 + $0x48] sm:$0xff] %v453
    %642 = vst [vmem:[#allocation3 + $0x50] sm:$0xff] %v564
    %643 = vst [vmem:[#allocation3 + $0x58] sm:$0xff] %v566
    %644 = vst [vmem:[#allocation3 + $0x60] sm:$0xff] %v455
    %645 = vst [vmem:[#allocation3 + $0x68] sm:$0xff] %v457
    %646 = vst [vmem:[#allocation3 + $0x70] sm:$0xff] %v568
    %647 = vst [vmem:[#allocation3 + $0x78] sm:$0xff] %v570
    %648 = vst [vmem:[#allocation3 + $0x80] sm:$0xff] %v461
    %649 = vst [vmem:[#allocation3 + $0x88] sm:$0xff] %v463
    %650 = vst [vmem:[#allocation3 + $0x90] sm:$0xff] %v574
    %651 = vst [vmem:[#allocation3 + $0x98] sm:$0xff] %v576
    %652 = vst [vmem:[#allocation3 + $0xa0] sm:$0xff] %v465
    %653 = vst [vmem:[#allocation3 + $0xa8] sm:$0xff] %v467
    %654 = vst [vmem:[#allocation3 + $0xb0] sm:$0xff] %v578
    %655 = vst [vmem:[#allocation3 + $0xb8] sm:$0xff] %v580
    %656 = vst [vmem:[#allocation3 + $0xc0] sm:$0xff] %v471
    %657 = vst [vmem:[#allocation3 + $0xc8] sm:$0xff] %v473
    %658 = vst [vmem:[#allocation3 + $0xd0] sm:$0xff] %v584
    %659 = vst [vmem:[#allocation3 + $0xd8] sm:$0xff] %v586
    %660 = vst [vmem:[#allocation3 + $0xe0] sm:$0xff] %v475
    %661 = vst [vmem:[#allocation3 + $0xe8] sm:$0xff] %v477
    %662 = vst [vmem:[#allocation3 + $0xf0] sm:$0xff] %v588
    %663 = vst [vmem:[#allocation3 + $0xf8] sm:$0xff] %v590
    %664 = vst [vmem:[#allocation3 + $0x100] sm:$0xff] %v481
    %665 = vst [vmem:[#allocation3 + $0x108] sm:$0xff] %v483
    %666 = vst [vmem:[#allocation3 + $0x110] sm:$0xff] %v594
    %667 = vst [vmem:[#allocation3 + $0x118] sm:$0xff] %v596
    %668 = vst [vmem:[#allocation3 + $0x120] sm:$0xff] %v485
    %669 = vst [vmem:[#allocation3 + $0x128] sm:$0xff] %v487
    %670 = vst [vmem:[#allocation3 + $0x130] sm:$0xff] %v598
    %671 = vst [vmem:[#allocation3 + $0x138] sm:$0xff] %v600
    %672 = vst [vmem:[#allocation3 + $0x140] sm:$0xff] %v491
    %673 = vst [vmem:[#allocation3 + $0x148] sm:$0xff] %v493
    %674 = vst [vmem:[#allocation3 + $0x150] sm:$0xff] %v604
    %675 = vst [vmem:[#allocation3 + $0x158] sm:$0xff] %v606
    %676 = vst [vmem:[#allocation3 + $0x160] sm:$0xff] %v495
    %677 = vst [vmem:[#allocation3 + $0x168] sm:$0xff] %v497
    %678 = vst [vmem:[#allocation3 + $0x170] sm:$0xff] %v608
    %679 = vst [vmem:[#allocation3 + $0x178] sm:$0xff] %v610
    %680 = vst [vmem:[#allocation3 + $0x180] sm:$0xff] %v501
    %681 = vst [vmem:[#allocation3 + $0x188] sm:$0xff] %v503
    %682 = vst [vmem:[#allocation3 + $0x190] sm:$0xff] %v614
    %683 = vst [vmem:[#allocation3 + $0x198] sm:$0xff] %v616
    %684 = vst [vmem:[#allocation3 + $0x1a0] sm:$0xff] %v505
    %685 = vst [vmem:[#allocation3 + $0x1a8] sm:$0xff] %v507
    %686 = vst [vmem:[#allocation3 + $0x1b0] sm:$0xff] %v618
    %687 = vst [vmem:[#allocation3 + $0x1b8] sm:$0xff] %v620
    %688 = vst [vmem:[#allocation3 + $0x1c0] sm:$0xff] %v511
    %689 = vst [vmem:[#allocation3 + $0x1c8] sm:$0xff] %v513
    %690 = vst [vmem:[#allocation3 + $0x1d0] sm:$0xff] %v624
    %691 = vst [vmem:[#allocation3 + $0x1d8] sm:$0xff] %v626
    %692 = vst [vmem:[#allocation3 + $0x1e0] sm:$0xff] %v515
    %693 = vst [vmem:[#allocation3 + $0x1e8] sm:$0xff] %v517
    %694 = vst [vmem:[#allocation3 + $0x1f0] sm:$0xff] %v628
    %695 = vst [vmem:[#allocation3 + $0x1f8] sm:$0xff] %v630
    %s696 = smul.u32 0, 4
    %s697 = smul.addr %s696, 8
    %s698 = scalar_lea.vmem [#allocation3], %s697
    %v699 = vld [vmem:[%s698] sm:$0xff]
    %v700 = vld [vmem:[%s698 + $0x8] sm:$0xff]
    %v701 = vld [vmem:[%s698 + $0x10] sm:$0xff]
    %v702 = vld [vmem:[%s698 + $0x18] sm:$0xff]
    %v703 = vld [vmem:[%s698 + $0x20] sm:$0xff]
    %v704 = vld [vmem:[%s698 + $0x28] sm:$0xff]
    %v705 = vld [vmem:[%s698 + $0x30] sm:$0xff]
    %v706 = vld [vmem:[%s698 + $0x38] sm:$0xff]
    %v739 = vunpack.c.l.b16 %v96
    %v740 = vunpack.c.h.b16 %v96
    %v741 = vunpack.c.l.b16 %v97
    %v742 = vunpack.c.h.b16 %v97
    %v743 = vunpack.c.l.b16 %v98
    %v744 = vunpack.c.h.b16 %v98
    %v745 = vunpack.c.l.b16 %v99
    %v746 = vunpack.c.h.b16 %v99
    %v747 = vunpack.c.l.b16 %v100
    %v748 = vunpack.c.h.b16 %v100
    %v749 = vunpack.c.l.b16 %v101
    %v750 = vunpack.c.h.b16 %v101
    %v751 = vunpack.c.l.b16 %v102
    %v752 = vunpack.c.h.b16 %v102
    %v753 = vunpack.c.l.b16 %v103
    %v754 = vunpack.c.h.b16 %v103
    %v755 = vunpack.c.l.b16 %v104
    %v756 = vunpack.c.h.b16 %v104
    %v757 = vunpack.c.l.b16 %v105
    %v758 = vunpack.c.h.b16 %v105
    %v759 = vunpack.c.l.b16 %v106
    %v760 = vunpack.c.h.b16 %v106
    %v761 = vunpack.c.l.b16 %v107
    %v762 = vunpack.c.h.b16 %v107
    %v763 = vunpack.c.l.b16 %v108
    %v764 = vunpack.c.h.b16 %v108
    %v765 = vunpack.c.l.b16 %v109
    %v766 = vunpack.c.h.b16 %v109
    %v767 = vunpack.c.l.b16 %v110
    %v768 = vunpack.c.h.b16 %v110
    %v769 = vunpack.c.l.b16 %v111
    %v770 = vunpack.c.h.b16 %v111
    %v771 = vunpack.c.l.b16 %v112
    %v772 = vunpack.c.h.b16 %v112
    %v773 = vunpack.c.l.b16 %v113
    %v774 = vunpack.c.h.b16 %v113
    %v775 = vunpack.c.l.b16 %v114
    %v776 = vunpack.c.h.b16 %v114
    %v777 = vunpack.c.l.b16 %v115
    %v778 = vunpack.c.h.b16 %v115
    %v779 = vunpack.c.l.b16 %v116
    %v780 = vunpack.c.h.b16 %v116
    %v781 = vunpack.c.l.b16 %v117
    %v782 = vunpack.c.h.b16 %v117
    %v783 = vunpack.c.l.b16 %v118
    %v784 = vunpack.c.h.b16 %v118
    %v785 = vunpack.c.l.b16 %v119
    %v786 = vunpack.c.h.b16 %v119
    %v787 = vunpack.c.l.b16 %v120
    %v788 = vunpack.c.h.b16 %v120
    %v789 = vunpack.c.l.b16 %v121
    %v790 = vunpack.c.h.b16 %v121
    %v791 = vunpack.c.l.b16 %v122
    %v792 = vunpack.c.h.b16 %v122
    %v793 = vunpack.c.l.b16 %v123
    %v794 = vunpack.c.h.b16 %v123
    %v795 = vunpack.c.l.b16 %v124
    %v796 = vunpack.c.h.b16 %v124
    %v797 = vunpack.c.l.b16 %v125
    %v798 = vunpack.c.h.b16 %v125
    %v799 = vunpack.c.l.b16 %v126
    %v800 = vunpack.c.h.b16 %v126
    %v801 = vunpack.c.l.b16 %v127
    %v802 = vunpack.c.h.b16 %v127
    %v803 = vpack.c.b16 %v743, %v739
    %v804 = vpack.c.b16 %v744, %v740
    %v805 = vpack.c.b16 %v745, %v741
    %v806 = vpack.c.b16 %v746, %v742
    %v807 = vpack.c.b16 %v751, %v747
    %v808 = vpack.c.b16 %v752, %v748
    %v809 = vpack.c.b16 %v753, %v749
    %v810 = vpack.c.b16 %v754, %v750
    %v811 = vpack.c.b16 %v759, %v755
    %v812 = vpack.c.b16 %v760, %v756
    %v813 = vpack.c.b16 %v761, %v757
    %v814 = vpack.c.b16 %v762, %v758
    %v815 = vpack.c.b16 %v767, %v763
    %v816 = vpack.c.b16 %v768, %v764
    %v817 = vpack.c.b16 %v769, %v765
    %v818 = vpack.c.b16 %v770, %v766
    %v819 = vpack.c.b16 %v775, %v771
    %v820 = vpack.c.b16 %v776, %v772
    %v821 = vpack.c.b16 %v777, %v773
    %v822 = vpack.c.b16 %v778, %v774
    %v823 = vpack.c.b16 %v783, %v779
    %v824 = vpack.c.b16 %v784, %v780
    %v825 = vpack.c.b16 %v785, %v781
    %v826 = vpack.c.b16 %v786, %v782
    %v827 = vpack.c.b16 %v791, %v787
    %v828 = vpack.c.b16 %v792, %v788
    %v829 = vpack.c.b16 %v793, %v789
    %v830 = vpack.c.b16 %v794, %v790
    %v831 = vpack.c.b16 %v799, %v795
    %v832 = vpack.c.b16 %v800, %v796
    %v833 = vpack.c.b16 %v801, %v797
    %v834 = vpack.c.b16 %v802, %v798
    %867 = vmatprep.subr.bf16.mxu0 %v804
    %868 = vmatpush1.bf16.msra.mxu0 %v803
    %869 = vmatprep.subr.bf16.mxu0 %v808
    %870 = vmatpush1.bf16.msra.mxu0 %v807
    %871 = vmatprep.subr.bf16.mxu0 %v812
    %872 = vmatpush1.bf16.msra.mxu0 %v811
    %873 = vmatprep.subr.bf16.mxu0 %v816
    %874 = vmatpush1.bf16.msra.mxu0 %v815
    %875 = vmatprep.subr.bf16.mxu0 %v820
    %876 = vmatpush1.bf16.msra.mxu0 %v819
    %877 = vmatprep.subr.bf16.mxu0 %v824
    %878 = vmatpush1.bf16.msra.mxu0 %v823
    %879 = vmatprep.subr.bf16.mxu0 %v828
    %880 = vmatpush1.bf16.msra.mxu0 %v827
    %881 = vmatprep.subr.bf16.mxu0 %v832
    %882 = vmatpush1.bf16.msra.mxu0 %v831
    %883 = vmatprep.subr.bf16.mxu0 0
    %884 = vmatpush1.bf16.msra.mxu0 0
    %885 = vmatprep.subr.bf16.mxu0 0
    %886 = vmatpush1.bf16.msra.mxu0 0
    %887 = vmatprep.subr.bf16.mxu0 0
    %888 = vmatpush1.bf16.msra.mxu0 0
    %889 = vmatprep.subr.bf16.mxu0 0
    %890 = vmatpush1.bf16.msra.mxu0 0
    %891 = vmatprep.subr.bf16.mxu0 0
    %892 = vmatpush1.bf16.msra.mxu0 0
    %893 = vmatprep.subr.bf16.mxu0 0
    %894 = vmatpush1.bf16.msra.mxu0 0
    %895 = vmatprep.subr.bf16.mxu0 0
    %896 = vmatpush1.bf16.msra.mxu0 0
    %897 = vmatprep.subr.bf16.mxu0 0
    %898 = vmatpush1.bf16.msra.mxu0 0
    %899 = vmatprep.mubr.bf16.mxu0 0
    %900 = vmatmul.mubr.bf16.gmra.mrb[0].mxu0 0
    %v901 = vpop.f32.mrb[0].mxu0
    %v902 = vadd.f32 0.0, %v901
    %v903 = vpop.f32.mrb[0].mxu0
    %v904 = vadd.f32 0.0, %v903
    %v905 = vpop.f32.mrb[0].mxu0
    %v906 = vadd.f32 0.0, %v905
    %v907 = vpop.f32.mrb[0].mxu0
    %v908 = vadd.f32 0.0, %v907
    %909 = vdwg.mxu0
    %910 = vmatprep.subr.bf16.mxu0 %v806
    %911 = vmatpush1.bf16.msra.mxu0 %v805
    %912 = vmatprep.subr.bf16.mxu0 %v810
    %913 = vmatpush1.bf16.msra.mxu0 %v809
    %914 = vmatprep.subr.bf16.mxu0 %v814
    %915 = vmatpush1.bf16.msra.mxu0 %v813
    %916 = vmatprep.subr.bf16.mxu0 %v818
    %917 = vmatpush1.bf16.msra.mxu0 %v817
    %918 = vmatprep.subr.bf16.mxu0 %v822
    %919 = vmatpush1.bf16.msra.mxu0 %v821
    %920 = vmatprep.subr.bf16.mxu0 %v826
    %921 = vmatpush1.bf16.msra.mxu0 %v825
    %922 = vmatprep.subr.bf16.mxu0 %v830
    %923 = vmatpush1.bf16.msra.mxu0 %v829
    %924 = vmatprep.subr.bf16.mxu0 %v834
    %925 = vmatpush1.bf16.msra.mxu0 %v833
    %926 = vmatprep.subr.bf16.mxu0 0
    %927 = vmatpush1.bf16.msra.mxu0 0
    %928 = vmatprep.subr.bf16.mxu0 0
    %929 = vmatpush1.bf16.msra.mxu0 0
    %930 = vmatprep.subr.bf16.mxu0 0
    %931 = vmatpush1.bf16.msra.mxu0 0
    %932 = vmatprep.subr.bf16.mxu0 0
    %933 = vmatpush1.bf16.msra.mxu0 0
    %934 = vmatprep.subr.bf16.mxu0 0
    %935 = vmatpush1.bf16.msra.mxu0 0
    %936 = vmatprep.subr.bf16.mxu0 0
    %937 = vmatpush1.bf16.msra.mxu0 0
    %938 = vmatprep.subr.bf16.mxu0 0
    %939 = vmatpush1.bf16.msra.mxu0 0
    %940 = vmatprep.subr.bf16.mxu0 0
    %941 = vmatpush1.bf16.msra.mxu0 0
    %942 = vmatprep.mubr.bf16.mxu0 0
    %943 = vmatmul.mubr.bf16.gmra.mrb[0].mxu0 0
    %v944 = vpop.f32.mrb[0].mxu0
    %v945 = vadd.f32 0.0, %v944
    %v946 = vpop.f32.mrb[0].mxu0
    %v947 = vadd.f32 0.0, %v946
    %v948 = vpop.f32.mrb[0].mxu0
    %v949 = vadd.f32 0.0, %v948
    %v950 = vpop.f32.mrb[0].mxu0
    %v951 = vadd.f32 0.0, %v950
    %952 = vdwg.mxu0
    %v953 = vadd.f32 %v699, %v902
    %v954 = vadd.f32 %v700, %v904
    %v955 = vadd.f32 %v701, %v945
    %v956 = vadd.f32 %v702, %v947
    %v957 = vadd.f32 %v703, %v906
    %v958 = vadd.f32 %v704, %v908
    %v959 = vadd.f32 %v705, %v949
    %v960 = vadd.f32 %v706, %v951
    %v961 = vxor.u32 %v953, 2147483648
    %v962 = vxor.u32 %v954, 2147483648
    %v963 = vxor.u32 %v955, 2147483648
    %v964 = vxor.u32 %v957, 2147483648
    %v965 = vxor.u32 %v958, 2147483648
    %v966 = vxor.u32 %v959, 2147483648
    %v967 = vmul.f32 %v961, 1.442695
    %v968 = vpow.pop %v967
    %v969 = vmul.f32 %v962, 1.442695
    %v970 = vpow.pop %v969
    %v971 = vmul.f32 %v963, 1.442695
    %v972 = vpow.pop %v971
    %v973 = vmul.f32 %v964, 1.442695
    %v974 = vpow.pop %v973
    %v975 = vmul.f32 %v965, 1.442695
    %v976 = vpow.pop %v975
    %v977 = vmul.f32 %v966, 1.442695
    %v978 = vpow.pop %v977
    %v979 = vadd.f32 %v968, 1.0
    %v980 = vadd.f32 %v970, 1.0
    %v981 = vadd.f32 %v972, 1.0
    %v982 = vadd.f32 %v974, 1.0
    %v983 = vadd.f32 %v976, 1.0
    %v984 = vadd.f32 %v978, 1.0
    %v985 = vrcp.pop %v979
    %v986 = vmul.f32 1.0, %v985
    %v987 = vrcp.pop %v980
    %v988 = vmul.f32 1.0, %v987
    %v989 = vrcp.pop %v981
    %v990 = vmul.f32 1.0, %v989
    %v991 = vrcp.pop %v982
    %v992 = vmul.f32 1.0, %v991
    %v993 = vrcp.pop %v983
    %v994 = vmul.f32 1.0, %v993
    %v995 = vrcp.pop %v984
    %v996 = vmul.f32 1.0, %v995
    %v997 = vtanh.pop %v956
    %v998 = vtanh.pop %v960
    %v999 = vmul.f32 %v988, 0.0
    %v1000 = vmul.f32 %v994, 0.0
    %v1001 = vmul.f32 %v986, %v997
    %v1002 = vmul.f32 %v992, %v998
    %v1003 = vadd.f32 %v999, %v1001
    %v1004 = vadd.f32 %v1000, %v1002
    %v1005 = vtanh.pop %v1003
    %v1006 = vtanh.pop %v1004
    %v1007 = vmul.f32 %v990, %v1005
    %v1008 = vmul.f32 %v996, %v1006
    %v1009 = vpack.c.bf16 %v1008, %v1007
    %1010 = vst [vmem:[#allocation2] sm:$0xff] %v1009
    %s1011 = smul.u32 2, 4
    %s1012 = smul.addr %s1011, 8
    %s1013 = scalar_lea.vmem [#allocation3], %s1012
    %v1014 = vld [vmem:[%s1013] sm:$0xff]
    %v1015 = vld [vmem:[%s1013 + $0x8] sm:$0xff]
    %v1016 = vld [vmem:[%s1013 + $0x10] sm:$0xff]
    %v1017 = vld [vmem:[%s1013 + $0x18] sm:$0xff]
    %v1018 = vld [vmem:[%s1013 + $0x20] sm:$0xff]
    %v1019 = vld [vmem:[%s1013 + $0x28] sm:$0xff]
    %v1020 = vld [vmem:[%s1013 + $0x30] sm:$0xff]
    %v1021 = vld [vmem:[%s1013 + $0x38] sm:$0xff]
    %1022 = vmatprep.subr.bf16.mxu0 %v804
    %1023 = vmatpush1.bf16.msra.mxu0 %v803
    %1024 = vmatprep.subr.bf16.mxu0 %v808
    %1025 = vmatpush1.bf16.msra.mxu0 %v807
    %1026 = vmatprep.subr.bf16.mxu0 %v812
    %1027 = vmatpush1.bf16.msra.mxu0 %v811
    %1028 = vmatprep.subr.bf16.mxu0 %v816
    %1029 = vmatpush1.bf16.msra.mxu0 %v815
    %1030 = vmatprep.subr.bf16.mxu0 %v820
    %1031 = vmatpush1.bf16.msra.mxu0 %v819
    %1032 = vmatprep.subr.bf16.mxu0 %v824
    %1033 = vmatpush1.bf16.msra.mxu0 %v823
    %1034 = vmatprep.subr.bf16.mxu0 %v828
    %1035 = vmatpush1.bf16.msra.mxu0 %v827
    %1036 = vmatprep.subr.bf16.mxu0 %v832
    %1037 = vmatpush1.bf16.msra.mxu0 %v831
    %1038 = vmatprep.subr.bf16.mxu0 0
    %1039 = vmatpush1.bf16.msra.mxu0 0
    %1040 = vmatprep.subr.bf16.mxu0 0
    %1041 = vmatpush1.bf16.msra.mxu0 0
    %1042 = vmatprep.subr.bf16.mxu0 0
    %1043 = vmatpush1.bf16.msra.mxu0 0
    %1044 = vmatprep.subr.bf16.mxu0 0
    %1045 = vmatpush1.bf16.msra.mxu0 0
    %1046 = vmatprep.subr.bf16.mxu0 0
    %1047 = vmatpush1.bf16.msra.mxu0 0
    %1048 = vmatprep.subr.bf16.mxu0 0
    %1049 = vmatpush1.bf16.msra.mxu0 0
    %1050 = vmatprep.subr.bf16.mxu0 0
    %1051 = vmatpush1.bf16.msra.mxu0 0
    %1052 = vmatprep.subr.bf16.mxu0 0
    %1053 = vmatpush1.bf16.msra.mxu0 0
    %1054 = vmatprep.mubr.bf16.mxu0 0
    %1055 = vmatmul.mubr.bf16.gmra.mrb[0].mxu0 %v1009
    %v1056 = vpop.f32.mrb[0].mxu0
    %v1057 = vadd.f32 0.0, %v1056
    %v1058 = vpop.f32.mrb[0].mxu0
    %v1059 = vadd.f32 0.0, %v1058
    %v1060 = vpop.f32.mrb[0].mxu0
    %v1061 = vadd.f32 0.0, %v1060
    %v1062 = vpop.f32.mrb[0].mxu0
    %v1063 = vadd.f32 0.0, %v1062
    %1064 = vdwg.mxu0
    %1065 = vmatprep.subr.bf16.mxu0 %v806
    %1066 = vmatpush1.bf16.msra.mxu0 %v805
    %1067 = vmatprep.subr.bf16.mxu0 %v810
    %1068 = vmatpush1.bf16.msra.mxu0 %v809
    %1069 = vmatprep.subr.bf16.mxu0 %v814
    %1070 = vmatpush1.bf16.msra.mxu0 %v813
    %1071 = vmatprep.subr.bf16.mxu0 %v818
    %1072 = vmatpush1.bf16.msra.mxu0 %v817
    %1073 = vmatprep.subr.bf16.mxu0 %v822
    %1074 = vmatpush1.bf16.msra.mxu0 %v821
    %1075 = vmatprep.subr.bf16.mxu0 %v826
    %1076 = vmatpush1.bf16.msra.mxu0 %v825
    %1077 = vmatprep.subr.bf16.mxu0 %v830
    %1078 = vmatpush1.bf16.msra.mxu0 %v829
    %1079 = vmatprep.subr.bf16.mxu0 %v834
    %1080 = vmatpush1.bf16.msra.mxu0 %v833
    %1081 = vmatprep.subr.bf16.mxu0 0
    %1082 = vmatpush1.bf16.msra.mxu0 0
    %1083 = vmatprep.subr.bf16.mxu0 0
    %1084 = vmatpush1.bf16.msra.mxu0 0
    %1085 = vmatprep.subr.bf16.mxu0 0
    %1086 = vmatpush1.bf16.msra.mxu0 0
    %1087 = vmatprep.subr.bf16.mxu0 0
    %1088 = vmatpush1.bf16.msra.mxu0 0
    %1089 = vmatprep.subr.bf16.mxu0 0
    %1090 = vmatpush1.bf16.msra.mxu0 0
    %1091 = vmatprep.subr.bf16.mxu0 0
    %1092 = vmatpush1.bf16.msra.mxu0 0
    %1093 = vmatprep.subr.bf16.mxu0 0
    %1094 = vmatpush1.bf16.msra.mxu0 0
    %1095 = vmatprep.subr.bf16.mxu0 0
    %1096 = vmatpush1.bf16.msra.mxu0 0
    %1097 = vmatprep.mubr.bf16.mxu0 0
    %1098 = vmatmul.mubr.bf16.gmra.mrb[0].mxu0 %v1009
    %v1099 = vpop.f32.mrb[0].mxu0
    %v1100 = vadd.f32 0.0, %v1099
    %v1101 = vpop.f32.mrb[0].mxu0
    %v1102 = vadd.f32 0.0, %v1101
    %v1103 = vpop.f32.mrb[0].mxu0
    %v1104 = vadd.f32 0.0, %v1103
    %v1105 = vpop.f32.mrb[0].mxu0
    %v1106 = vadd.f32 0.0, %v1105
    %1107 = vdwg.mxu0
    %v1108 = vadd.f32 %v1014, %v1057
    %v1109 = vadd.f32 %v1015, %v1059
    %v1110 = vadd.f32 %v1016, %v1100
    %v1111 = vadd.f32 %v1017, %v1102
    %v1112 = vadd.f32 %v1018, %v1061
    %v1113 = vadd.f32 %v1019, %v1063
    %v1114 = vadd.f32 %v1020, %v1104
    %v1115 = vadd.f32 %v1021, %v1106
    %v1116 = vxor.u32 %v1108, 2147483648
    %v1117 = vxor.u32 %v1109, 2147483648
    %v1118 = vxor.u32 %v1110, 2147483648
    %v1119 = vxor.u32 %v1112, 2147483648
    %v1120 = vxor.u32 %v1113, 2147483648
    %v1121 = vxor.u32 %v1114, 2147483648
    %v1122 = vmul.f32 %v1116, 1.442695
    %v1123 = vpow.pop %v1122
    %v1124 = vmul.f32 %v1117, 1.442695
    %v1125 = vpow.pop %v1124
    %v1126 = vmul.f32 %v1118, 1.442695
    %v1127 = vpow.pop %v1126
    %v1128 = vmul.f32 %v1119, 1.442695
    %v1129 = vpow.pop %v1128
    %v1130 = vmul.f32 %v1120, 1.442695
    %v1131 = vpow.pop %v1130
    %v1132 = vmul.f32 %v1121, 1.442695
    %v1133 = vpow.pop %v1132
    %v1134 = vadd.f32 %v1123, 1.0
    %v1135 = vadd.f32 %v1125, 1.0
    %v1136 = vadd.f32 %v1127, 1.0
    %v1137 = vadd.f32 %v1129, 1.0
    %v1138 = vadd.f32 %v1131, 1.0
    %v1139 = vadd.f32 %v1133, 1.0
    %v1140 = vrcp.pop %v1134
    %v1141 = vmul.f32 1.0, %v1140
    %v1142 = vrcp.pop %v1135
    %v1143 = vmul.f32 1.0, %v1142
    %v1144 = vrcp.pop %v1136
    %v1145 = vmul.f32 1.0, %v1144
    %v1146 = vrcp.pop %v1137
    %v1147 = vmul.f32 1.0, %v1146
    %v1148 = vrcp.pop %v1138
    %v1149 = vmul.f32 1.0, %v1148
    %v1150 = vrcp.pop %v1139
    %v1151 = vmul.f32 1.0, %v1150
    %v1152 = vtanh.pop %v1111
    %v1153 = vtanh.pop %v1115
    %v1154 = vmul.f32 %v1143, %v1003
    %v1155 = vmul.f32 %v1149, %v1004
    %v1156 = vmul.f32 %v1141, %v1152
    %v1157 = vmul.f32 %v1147, %v1153
    %v1158 = vadd.f32 %v1154, %v1156
    %v1159 = vadd.f32 %v1155, %v1157
    %v1160 = vtanh.pop %v1158
    %v1161 = vtanh.pop %v1159
    %v1162 = vmul.f32 %v1145, %v1160
    %v1163 = vmul.f32 %v1151, %v1161
    %v1164 = vpack.c.bf16 %v1163, %v1162
    %s1165 = scalar_lea.vmem [#allocation2], 8
    %1166 = vst [vmem:[%s1165] sm:$0xff] %v1164
    %s1167 = smul.u32 4, 4
    %s1168 = smul.addr %s1167, 8
    %s1169 = scalar_lea.vmem [#allocation3], %s1168
    %v1170 = vld [vmem:[%s1169] sm:$0xff]
    %v1171 = vld [vmem:[%s1169 + $0x8] sm:$0xff]
    %v1172 = vld [vmem:[%s1169 + $0x10] sm:$0xff]
    %v1173 = vld [vmem:[%s1169 + $0x18] sm:$0xff]
    %v1174 = vld [vmem:[%s1169 + $0x20] sm:$0xff]
    %v1175 = vld [vmem:[%s1169 + $0x28] sm:$0xff]
    %v1176 = vld [vmem:[%s1169 + $0x30] sm:$0xff]
    %v1177 = vld [vmem:[%s1169 + $0x38] sm:$0xff]
    %1178 = vmatprep.subr.bf16.mxu0 %v804
    %1179 = vmatpush1.bf16.msra.mxu0 %v803
    %1180 = vmatprep.subr.bf16.mxu0 %v808
    %1181 = vmatpush1.bf16.msra.mxu0 %v807
    %1182 = vmatprep.subr.bf16.mxu0 %v812
    %1183 = vmatpush1.bf16.msra.mxu0 %v811
    %1184 = vmatprep.subr.bf16.mxu0 %v816
    %1185 = vmatpush1.bf16.msra.mxu0 %v815
    %1186 = vmatprep.subr.bf16.mxu0 %v820
    %1187 = vmatpush1.bf16.msra.mxu0 %v819
    %1188 = vmatprep.subr.bf16.mxu0 %v824
    %1189 = vmatpush1.bf16.msra.mxu0 %v823
    %1190 = vmatprep.subr.bf16.mxu0 %v828
    %1191 = vmatpush1.bf16.msra.mxu0 %v827
    %1192 = vmatprep.subr.bf16.mxu0 %v832
    %1193 = vmatpush1.bf16.msra.mxu0 %v831
    %1194 = vmatprep.subr.bf16.mxu0 0
    %1195 = vmatpush1.bf16.msra.mxu0 0
    %1196 = vmatprep.subr.bf16.mxu0 0
    %1197 = vmatpush1.bf16.msra.mxu0 0
    %1198 = vmatprep.subr.bf16.mxu0 0
    %1199 = vmatpush1.bf16.msra.mxu0 0
    %1200 = vmatprep.subr.bf16.mxu0 0
    %1201 = vmatpush1.bf16.msra.mxu0 0
    %1202 = vmatprep.subr.bf16.mxu0 0
    %1203 = vmatpush1.bf16.msra.mxu0 0
    %1204 = vmatprep.subr.bf16.mxu0 0
    %1205 = vmatpush1.bf16.msra.mxu0 0
    %1206 = vmatprep.subr.bf16.mxu0 0
    %1207 = vmatpush1.bf16.msra.mxu0 0
    %1208 = vmatprep.subr.bf16.mxu0 0
    %1209 = vmatpush1.bf16.msra.mxu0 0
    %1210 = vmatprep.mubr.bf16.mxu0 0
    %1211 = vmatmul.mubr.bf16.gmra.mrb[0].mxu0 %v1164
    %v1212 = vpop.f32.mrb[0].mxu0
    %v1213 = vadd.f32 0.0, %v1212
    %v1214 = vpop.f32.mrb[0].mxu0
    %v1215 = vadd.f32 0.0, %v1214
    %v1216 = vpop.f32.mrb[0].mxu0
    %v1217 = vadd.f32 0.0, %v1216
    %v1218 = vpop.f32.mrb[0].mxu0
    %v1219 = vadd.f32 0.0, %v1218
    %1220 = vdwg.mxu0
    %1221 = vmatprep.subr.bf16.mxu0 %v806
    %1222 = vmatpush1.bf16.msra.mxu0 %v805
    %1223 = vmatprep.subr.bf16.mxu0 %v810
    %1224 = vmatpush1.bf16.msra.mxu0 %v809
    %1225 = vmatprep.subr.bf16.mxu0 %v814
    %1226 = vmatpush1.bf16.msra.mxu0 %v813
    %1227 = vmatprep.subr.bf16.mxu0 %v818
    %1228 = vmatpush1.bf16.msra.mxu0 %v817
    %1229 = vmatprep.subr.bf16.mxu0 %v822
    %1230 = vmatpush1.bf16.msra.mxu0 %v821
    %1231 = vmatprep.subr.bf16.mxu0 %v826
    %1232 = vmatpush1.bf16.msra.mxu0 %v825
    %1233 = vmatprep.subr.bf16.mxu0 %v830
    %1234 = vmatpush1.bf16.msra.mxu0 %v829
    %1235 = vmatprep.subr.bf16.mxu0 %v834
    %1236 = vmatpush1.bf16.msra.mxu0 %v833
    %1237 = vmatprep.subr.bf16.mxu0 0
    %1238 = vmatpush1.bf16.msra.mxu0 0
    %1239 = vmatprep.subr.bf16.mxu0 0
    %1240 = vmatpush1.bf16.msra.mxu0 0
    %1241 = vmatprep.subr.bf16.mxu0 0
    %1242 = vmatpush1.bf16.msra.mxu0 0
    %1243 = vmatprep.subr.bf16.mxu0 0
    %1244 = vmatpush1.bf16.msra.mxu0 0
    %1245 = vmatprep.subr.bf16.mxu0 0
    %1246 = vmatpush1.bf16.msra.mxu0 0
    %1247 = vmatprep.subr.bf16.mxu0 0
    %1248 = vmatpush1.bf16.msra.mxu0 0
    %1249 = vmatprep.subr.bf16.mxu0 0
    %1250 = vmatpush1.bf16.msra.mxu0 0
    %1251 = vmatprep.subr.bf16.mxu0 0
    %1252 = vmatpush1.bf16.msra.mxu0 0
    %1253 = vmatprep.mubr.bf16.mxu0 0
    %1254 = vmatmul.mubr.bf16.gmra.mrb[0].mxu0 %v1164
    %v1255 = vpop.f32.mrb[0].mxu0
    %v1256 = vadd.f32 0.0, %v1255
    %v1257 = vpop.f32.mrb[0].mxu0
    %v1258 = vadd.f32 0.0, %v1257
    %v1259 = vpop.f32.mrb[0].mxu0
    %v1260 = vadd.f32 0.0, %v1259
    %v1261 = vpop.f32.mrb[0].mxu0
    %v1262 = vadd.f32 0.0, %v1261
    %1263 = vdwg.mxu0
    %v1264 = vadd.f32 %v1170, %v1213
    %v1265 = vadd.f32 %v1171, %v1215
    %v1266 = vadd.f32 %v1172, %v1256
    %v1267 = vadd.f32 %v1173, %v1258
    %v1268 = vadd.f32 %v1174, %v1217
    %v1269 = vadd.f32 %v1175, %v1219
    %v1270 = vadd.f32 %v1176, %v1260
    %v1271 = vadd.f32 %v1177, %v1262
    %v1272 = vxor.u32 %v1264, 2147483648
    %v1273 = vxor.u32 %v1265, 2147483648
    %v1274 = vxor.u32 %v1266, 2147483648
    %v1275 = vxor.u32 %v1268, 2147483648
    %v1276 = vxor.u32 %v1269, 2147483648
    %v1277 = vxor.u32 %v1270, 2147483648
    %v1278 = vmul.f32 %v1272, 1.442695
    %v1279 = vpow.pop %v1278
    %v1280 = vmul.f32 %v1273, 1.442695
    %v1281 = vpow.pop %v1280
    %v1282 = vmul.f32 %v1274, 1.442695
    %v1283 = vpow.pop %v1282
    %v1284 = vmul.f32 %v1275, 1.442695
    %v1285 = vpow.pop %v1284
    %v1286 = vmul.f32 %v1276, 1.442695
    %v1287 = vpow.pop %v1286
    %v1288 = vmul.f32 %v1277, 1.442695
    %v1289 = vpow.pop %v1288
    %v1290 = vadd.f32 %v1279, 1.0
    %v1291 = vadd.f32 %v1281, 1.0
    %v1292 = vadd.f32 %v1283, 1.0
    %v1293 = vadd.f32 %v1285, 1.0
    %v1294 = vadd.f32 %v1287, 1.0
    %v1295 = vadd.f32 %v1289, 1.0
    %v1296 = vrcp.pop %v1290
    %v1297 = vmul.f32 1.0, %v1296
    %v1298 = vrcp.pop %v1291
    %v1299 = vmul.f32 1.0, %v1298
    %v1300 = vrcp.pop %v1292
    %v1301 = vmul.f32 1.0, %v1300
    %v1302 = vrcp.pop %v1293
    %v1303 = vmul.f32 1.0, %v1302
    %v1304 = vrcp.pop %v1294
    %v1305 = vmul.f32 1.0, %v1304
    %v1306 = vrcp.pop %v1295
    %v1307 = vmul.f32 1.0, %v1306
    %v1308 = vtanh.pop %v1267
    %v1309 = vtanh.pop %v1271
    %v1310 = vmul.f32 %v1299, %v1158
    %v1311 = vmul.f32 %v1305, %v1159
    %v1312 = vmul.f32 %v1297, %v1308
    %v1313 = vmul.f32 %v1303, %v1309
    %v1314 = vadd.f32 %v1310, %v1312
    %v1315 = vadd.f32 %v1311, %v1313
    %v1316 = vtanh.pop %v1314
    %v1317 = vtanh.pop %v1315
    %v1318 = vmul.f32 %v1301, %v1316
    %v1319 = vmul.f32 %v1307, %v1317
    %v1320 = vpack.c.bf16 %v1319, %v1318
    %s1321 = scalar_lea.vmem [#allocation2], 16
    %1322 = vst [vmem:[%s1321] sm:$0xff] %v1320
    %s1323 = smul.u32 6, 4
    %s1324 = smul.addr %s1323, 8
    %s1325 = scalar_lea.vmem [#allocation3], %s1324
    %v1326 = vld [vmem:[%s1325] sm:$0xff]
    %v1327 = vld [vmem:[%s1325 + $0x8] sm:$0xff]
    %v1328 = vld [vmem:[%s1325 + $0x10] sm:$0xff]
    %v1329 = vld [vmem:[%s1325 + $0x18] sm:$0xff]
    %v1330 = vld [vmem:[%s1325 + $0x20] sm:$0xff]
    %v1331 = vld [vmem:[%s1325 + $0x28] sm:$0xff]
    %v1332 = vld [vmem:[%s1325 + $0x30] sm:$0xff]
    %v1333 = vld [vmem:[%s1325 + $0x38] sm:$0xff]
    %1334 = vmatprep.subr.bf16.mxu0 %v804
    %1335 = vmatpush1.bf16.msra.mxu0 %v803
    %1336 = vmatprep.subr.bf16.mxu0 %v808
    %1337 = vmatpush1.bf16.msra.mxu0 %v807
    %1338 = vmatprep.subr.bf16.mxu0 %v812
    %1339 = vmatpush1.bf16.msra.mxu0 %v811
    %1340 = vmatprep.subr.bf16.mxu0 %v816
    %1341 = vmatpush1.bf16.msra.mxu0 %v815
    %1342 = vmatprep.subr.bf16.mxu0 %v820
    %1343 = vmatpush1.bf16.msra.mxu0 %v819
    %1344 = vmatprep.subr.bf16.mxu0 %v824
    %1345 = vmatpush1.bf16.msra.mxu0 %v823
    %1346 = vmatprep.subr.bf16.mxu0 %v828
    %1347 = vmatpush1.bf16.msra.mxu0 %v827
    %1348 = vmatprep.subr.bf16.mxu0 %v832
    %1349 = vmatpush1.bf16.msra.mxu0 %v831
    %1350 = vmatprep.subr.bf16.mxu0 0
    %1351 = vmatpush1.bf16.msra.mxu0 0
    %1352 = vmatprep.subr.bf16.mxu0 0
    %1353 = vmatpush1.bf16.msra.mxu0 0
    %1354 = vmatprep.subr.bf16.mxu0 0
    %1355 = vmatpush1.bf16.msra.mxu0 0
    %1356 = vmatprep.subr.bf16.mxu0 0
    %1357 = vmatpush1.bf16.msra.mxu0 0
    %1358 = vmatprep.subr.bf16.mxu0 0
    %1359 = vmatpush1.bf16.msra.mxu0 0
    %1360 = vmatprep.subr.bf16.mxu0 0
    %1361 = vmatpush1.bf16.msra.mxu0 0
    %1362 = vmatprep.subr.bf16.mxu0 0
    %1363 = vmatpush1.bf16.msra.mxu0 0
    %1364 = vmatprep.subr.bf16.mxu0 0
    %1365 = vmatpush1.bf16.msra.mxu0 0
    %1366 = vmatprep.mubr.bf16.mxu0 0
    %1367 = vmatmul.mubr.bf16.gmra.mrb[0].mxu0 %v1320
    %v1368 = vpop.f32.mrb[0].mxu0
    %v1369 = vadd.f32 0.0, %v1368
    %v1370 = vpop.f32.mrb[0].mxu0
    %v1371 = vadd.f32 0.0, %v1370
    %v1372 = vpop.f32.mrb[0].mxu0
    %v1373 = vadd.f32 0.0, %v1372
    %v1374 = vpop.f32.mrb[0].mxu0
    %v1375 = vadd.f32 0.0, %v1374
    %1376 = vdwg.mxu0
    %1377 = vmatprep.subr.bf16.mxu0 %v806
    %1378 = vmatpush1.bf16.msra.mxu0 %v805
    %1379 = vmatprep.subr.bf16.mxu0 %v810
    %1380 = vmatpush1.bf16.msra.mxu0 %v809
    %1381 = vmatprep.subr.bf16.mxu0 %v814
    %1382 = vmatpush1.bf16.msra.mxu0 %v813
    %1383 = vmatprep.subr.bf16.mxu0 %v818
    %1384 = vmatpush1.bf16.msra.mxu0 %v817
    %1385 = vmatprep.subr.bf16.mxu0 %v822
    %1386 = vmatpush1.bf16.msra.mxu0 %v821
    %1387 = vmatprep.subr.bf16.mxu0 %v826
    %1388 = vmatpush1.bf16.msra.mxu0 %v825
    %1389 = vmatprep.subr.bf16.mxu0 %v830
    %1390 = vmatpush1.bf16.msra.mxu0 %v829
    %1391 = vmatprep.subr.bf16.mxu0 %v834
    %1392 = vmatpush1.bf16.msra.mxu0 %v833
    %1393 = vmatprep.subr.bf16.mxu0 0
    %1394 = vmatpush1.bf16.msra.mxu0 0
    %1395 = vmatprep.subr.bf16.mxu0 0
    %1396 = vmatpush1.bf16.msra.mxu0 0
    %1397 = vmatprep.subr.bf16.mxu0 0
    %1398 = vmatpush1.bf16.msra.mxu0 0
    %1399 = vmatprep.subr.bf16.mxu0 0
    %1400 = vmatpush1.bf16.msra.mxu0 0
    %1401 = vmatprep.subr.bf16.mxu0 0
    %1402 = vmatpush1.bf16.msra.mxu0 0
    %1403 = vmatprep.subr.bf16.mxu0 0
    %1404 = vmatpush1.bf16.msra.mxu0 0
    %1405 = vmatprep.subr.bf16.mxu0 0
    %1406 = vmatpush1.bf16.msra.mxu0 0
    %1407 = vmatprep.subr.bf16.mxu0 0
    %1408 = vmatpush1.bf16.msra.mxu0 0
    %1409 = vmatprep.mubr.bf16.mxu0 0
    %1410 = vmatmul.mubr.bf16.gmra.mrb[0].mxu0 %v1320
    %v1411 = vpop.f32.mrb[0].mxu0
    %v1412 = vadd.f32 0.0, %v1411
    %v1413 = vpop.f32.mrb[0].mxu0
    %v1414 = vadd.f32 0.0, %v1413
    %v1415 = vpop.f32.mrb[0].mxu0
    %v1416 = vadd.f32 0.0, %v1415
    %v1417 = vpop.f32.mrb[0].mxu0
    %v1418 = vadd.f32 0.0, %v1417
    %1419 = vdwg.mxu0
    %v1420 = vadd.f32 %v1326, %v1369
    %v1421 = vadd.f32 %v1327, %v1371
    %v1422 = vadd.f32 %v1328, %v1412
    %v1423 = vadd.f32 %v1329, %v1414
    %v1424 = vadd.f32 %v1330, %v1373
    %v1425 = vadd.f32 %v1331, %v1375
    %v1426 = vadd.f32 %v1332, %v1416
    %v1427 = vadd.f32 %v1333, %v1418
    %v1428 = vxor.u32 %v1420, 2147483648
    %v1429 = vxor.u32 %v1421, 2147483648
    %v1430 = vxor.u32 %v1422, 2147483648
    %v1431 = vxor.u32 %v1424, 2147483648
    %v1432 = vxor.u32 %v1425, 2147483648
    %v1433 = vxor.u32 %v1426, 2147483648
    %v1434 = vmul.f32 %v1428, 1.442695
    %v1435 = vpow.pop %v1434
    %v1436 = vmul.f32 %v1429, 1.442695
    %v1437 = vpow.pop %v1436
    %v1438 = vmul.f32 %v1430, 1.442695
    %v1439 = vpow.pop %v1438
    %v1440 = vmul.f32 %v1431, 1.442695
    %v1441 = vpow.pop %v1440
    %v1442 = vmul.f32 %v1432, 1.442695
    %v1443 = vpow.pop %v1442
    %v1444 = vmul.f32 %v1433, 1.442695
    %v1445 = vpow.pop %v1444
    %v1446 = vadd.f32 %v1435, 1.0
    %v1447 = vadd.f32 %v1437, 1.0
    %v1448 = vadd.f32 %v1439, 1.0
    %v1449 = vadd.f32 %v1441, 1.0
    %v1450 = vadd.f32 %v1443, 1.0
    %v1451 = vadd.f32 %v1445, 1.0
    %v1452 = vrcp.pop %v1446
    %v1453 = vmul.f32 1.0, %v1452
    %v1454 = vrcp.pop %v1447
    %v1455 = vmul.f32 1.0, %v1454
    %v1456 = vrcp.pop %v1448
    %v1457 = vmul.f32 1.0, %v1456
    %v1458 = vrcp.pop %v1449
    %v1459 = vmul.f32 1.0, %v1458
    %v1460 = vrcp.pop %v1450
    %v1461 = vmul.f32 1.0, %v1460
    %v1462 = vrcp.pop %v1451
    %v1463 = vmul.f32 1.0, %v1462
    %v1464 = vtanh.pop %v1423
    %v1465 = vtanh.pop %v1427
    %v1466 = vmul.f32 %v1455, %v1314
    %v1467 = vmul.f32 %v1461, %v1315
    %v1468 = vmul.f32 %v1453, %v1464
    %v1469 = vmul.f32 %v1459, %v1465
    %v1470 = vadd.f32 %v1466, %v1468
    %v1471 = vadd.f32 %v1467, %v1469
    %v1472 = vtanh.pop %v1470
    %v1473 = vtanh.pop %v1471
    %v1474 = vmul.f32 %v1457, %v1472
    %v1475 = vmul.f32 %v1463, %v1473
    %v1476 = vpack.c.bf16 %v1475, %v1474
    %s1477 = scalar_lea.vmem [#allocation2], 24
    %1478 = vst [vmem:[%s1477] sm:$0xff] %v1476
    %s1479 = smul.u32 8, 4
    %s1480 = smul.addr %s1479, 8
    %s1481 = scalar_lea.vmem [#allocation3], %s1480
    %v1482 = vld [vmem:[%s1481] sm:$0xff]
    %v1483 = vld [vmem:[%s1481 + $0x8] sm:$0xff]
    %v1484 = vld [vmem:[%s1481 + $0x10] sm:$0xff]
    %v1485 = vld [vmem:[%s1481 + $0x18] sm:$0xff]
    %v1486 = vld [vmem:[%s1481 + $0x20] sm:$0xff]
    %v1487 = vld [vmem:[%s1481 + $0x28] sm:$0xff]
    %v1488 = vld [vmem:[%s1481 + $0x30] sm:$0xff]
    %v1489 = vld [vmem:[%s1481 + $0x38] sm:$0xff]
    %1490 = vmatprep.subr.bf16.mxu0 %v804
    %1491 = vmatpush1.bf16.msra.mxu0 %v803
    %1492 = vmatprep.subr.bf16.mxu0 %v808
    %1493 = vmatpush1.bf16.msra.mxu0 %v807
    %1494 = vmatprep.subr.bf16.mxu0 %v812
    %1495 = vmatpush1.bf16.msra.mxu0 %v811
    %1496 = vmatprep.subr.bf16.mxu0 %v816
    %1497 = vmatpush1.bf16.msra.mxu0 %v815
    %1498 = vmatprep.subr.bf16.mxu0 %v820
    %1499 = vmatpush1.bf16.msra.mxu0 %v819
    %1500 = vmatprep.subr.bf16.mxu0 %v824
    %1501 = vmatpush1.bf16.msra.mxu0 %v823
    %1502 = vmatprep.subr.bf16.mxu0 %v828
    %1503 = vmatpush1.bf16.msra.mxu0 %v827
    %1504 = vmatprep.subr.bf16.mxu0 %v832
    %1505 = vmatpush1.bf16.msra.mxu0 %v831
    %1506 = vmatprep.subr.bf16.mxu0 0
    %1507 = vmatpush1.bf16.msra.mxu0 0
    %1508 = vmatprep.subr.bf16.mxu0 0
    %1509 = vmatpush1.bf16.msra.mxu0 0
    %1510 = vmatprep.subr.bf16.mxu0 0
    %1511 = vmatpush1.bf16.msra.mxu0 0
    %1512 = vmatprep.subr.bf16.mxu0 0
    %1513 = vmatpush1.bf16.msra.mxu0 0
    %1514 = vmatprep.subr.bf16.mxu0 0
    %1515 = vmatpush1.bf16.msra.mxu0 0
    %1516 = vmatprep.subr.bf16.mxu0 0
    %1517 = vmatpush1.bf16.msra.mxu0 0
    %1518 = vmatprep.subr.bf16.mxu0 0
    %1519 = vmatpush1.bf16.msra.mxu0 0
    %1520 = vmatprep.subr.bf16.mxu0 0
    %1521 = vmatpush1.bf16.msra.mxu0 0
    %1522 = vmatprep.mubr.bf16.mxu0 0
    %1523 = vmatmul.mubr.bf16.gmra.mrb[0].mxu0 %v1476
    %v1524 = vpop.f32.mrb[0].mxu0
    %v1525 = vadd.f32 0.0, %v1524
    %v1526 = vpop.f32.mrb[0].mxu0
    %v1527 = vadd.f32 0.0, %v1526
    %v1528 = vpop.f32.mrb[0].mxu0
    %v1529 = vadd.f32 0.0, %v1528
    %v1530 = vpop.f32.mrb[0].mxu0
    %v1531 = vadd.f32 0.0, %v1530
    %1532 = vdwg.mxu0
    %1533 = vmatprep.subr.bf16.mxu0 %v806
    %1534 = vmatpush1.bf16.msra.mxu0 %v805
    %1535 = vmatprep.subr.bf16.mxu0 %v810
    %1536 = vmatpush1.bf16.msra.mxu0 %v809
    %1537 = vmatprep.subr.bf16.mxu0 %v814
    %1538 = vmatpush1.bf16.msra.mxu0 %v813
    %1539 = vmatprep.subr.bf16.mxu0 %v818
    %1540 = vmatpush1.bf16.msra.mxu0 %v817
    %1541 = vmatprep.subr.bf16.mxu0 %v822
    %1542 = vmatpush1.bf16.msra.mxu0 %v821
    %1543 = vmatprep.subr.bf16.mxu0 %v826
    %1544 = vmatpush1.bf16.msra.mxu0 %v825
    %1545 = vmatprep.subr.bf16.mxu0 %v830
    %1546 = vmatpush1.bf16.msra.mxu0 %v829
    %1547 = vmatprep.subr.bf16.mxu0 %v834
    %1548 = vmatpush1.bf16.msra.mxu0 %v833
    %1549 = vmatprep.subr.bf16.mxu0 0
    %1550 = vmatpush1.bf16.msra.mxu0 0
    %1551 = vmatprep.subr.bf16.mxu0 0
    %1552 = vmatpush1.bf16.msra.mxu0 0
    %1553 = vmatprep.subr.bf16.mxu0 0
    %1554 = vmatpush1.bf16.msra.mxu0 0
    %1555 = vmatprep.subr.bf16.mxu0 0
    %1556 = vmatpush1.bf16.msra.mxu0 0
    %1557 = vmatprep.subr.bf16.mxu0 0
    %1558 = vmatpush1.bf16.msra.mxu0 0
    %1559 = vmatprep.subr.bf16.mxu0 0
    %1560 = vmatpush1.bf16.msra.mxu0 0
    %1561 = vmatprep.subr.bf16.mxu0 0
    %1562 = vmatpush1.bf16.msra.mxu0 0
    %1563 = vmatprep.subr.bf16.mxu0 0
    %1564 = vmatpush1.bf16.msra.mxu0 0
    %1565 = vmatprep.mubr.bf16.mxu0 0
    %1566 = vmatmul.mubr.bf16.gmra.mrb[0].mxu0 %v1476
    %v1567 = vpop.f32.mrb[0].mxu0
    %v1568 = vadd.f32 0.0, %v1567
    %v1569 = vpop.f32.mrb[0].mxu0
    %v1570 = vadd.f32 0.0, %v1569
    %v1571 = vpop.f32.mrb[0].mxu0
    %v1572 = vadd.f32 0.0, %v1571
    %v1573 = vpop.f32.mrb[0].mxu0
    %v1574 = vadd.f32 0.0, %v1573
    %1575 = vdwg.mxu0
    %v1576 = vadd.f32 %v1482, %v1525
    %v1577 = vadd.f32 %v1483, %v1527
    %v1578 = vadd.f32 %v1484, %v1568
    %v1579 = vadd.f32 %v1485, %v1570
    %v1580 = vadd.f32 %v1486, %v1529
    %v1581 = vadd.f32 %v1487, %v1531
    %v1582 = vadd.f32 %v1488, %v1572
    %v1583 = vadd.f32 %v1489, %v1574
    %v1584 = vxor.u32 %v1576, 2147483648
    %v1585 = vxor.u32 %v1577, 2147483648
    %v1586 = vxor.u32 %v1578, 2147483648
    %v1587 = vxor.u32 %v1580, 2147483648
    %v1588 = vxor.u32 %v1581, 2147483648
    %v1589 = vxor.u32 %v1582, 2147483648
    %v1590 = vmul.f32 %v1584, 1.442695
    %v1591 = vpow.pop %v1590
    %v1592 = vmul.f32 %v1585, 1.442695
    %v1593 = vpow.pop %v1592
    %v1594 = vmul.f32 %v1586, 1.442695
    %v1595 = vpow.pop %v1594
    %v1596 = vmul.f32 %v1587, 1.442695
    %v1597 = vpow.pop %v1596
    %v1598 = vmul.f32 %v1588, 1.442695
    %v1599 = vpow.pop %v1598
    %v1600 = vmul.f32 %v1589, 1.442695
    %v1601 = vpow.pop %v1600
    %v1602 = vadd.f32 %v1591, 1.0
    %v1603 = vadd.f32 %v1593, 1.0
    %v1604 = vadd.f32 %v1595, 1.0
    %v1605 = vadd.f32 %v1597, 1.0
    %v1606 = vadd.f32 %v1599, 1.0
    %v1607 = vadd.f32 %v1601, 1.0
    %v1608 = vrcp.pop %v1602
    %v1609 = vmul.f32 1.0, %v1608
    %v1610 = vrcp.pop %v1603
    %v1611 = vmul.f32 1.0, %v1610
    %v1612 = vrcp.pop %v1604
    %v1613 = vmul.f32 1.0, %v1612
    %v1614 = vrcp.pop %v1605
    %v1615 = vmul.f32 1.0, %v1614
    %v1616 = vrcp.pop %v1606
    %v1617 = vmul.f32 1.0, %v1616
    %v1618 = vrcp.pop %v1607
    %v1619 = vmul.f32 1.0, %v1618
    %v1620 = vtanh.pop %v1579
    %v1621 = vtanh.pop %v1583
    %v1622 = vmul.f32 %v1611, %v1470
    %v1623 = vmul.f32 %v1617, %v1471
    %v1624 = vmul.f32 %v1609, %v1620
    %v1625 = vmul.f32 %v1615, %v1621
    %v1626 = vadd.f32 %v1622, %v1624
    %v1627 = vadd.f32 %v1623, %v1625
    %v1628 = vtanh.pop %v1626
    %v1629 = vtanh.pop %v1627
    %v1630 = vmul.f32 %v1613, %v1628
    %v1631 = vmul.f32 %v1619, %v1629
    %v1632 = vpack.c.bf16 %v1631, %v1630
    %s1633 = scalar_lea.vmem [#allocation2], 32
    %1634 = vst [vmem:[%s1633] sm:$0xff] %v1632
    %s1635 = smul.u32 10, 4
    %s1636 = smul.addr %s1635, 8
    %s1637 = scalar_lea.vmem [#allocation3], %s1636
    %v1638 = vld [vmem:[%s1637] sm:$0xff]
    %v1639 = vld [vmem:[%s1637 + $0x8] sm:$0xff]
    %v1640 = vld [vmem:[%s1637 + $0x10] sm:$0xff]
    %v1641 = vld [vmem:[%s1637 + $0x18] sm:$0xff]
    %v1642 = vld [vmem:[%s1637 + $0x20] sm:$0xff]
    %v1643 = vld [vmem:[%s1637 + $0x28] sm:$0xff]
    %v1644 = vld [vmem:[%s1637 + $0x30] sm:$0xff]
    %v1645 = vld [vmem:[%s1637 + $0x38] sm:$0xff]
    %1646 = vmatprep.subr.bf16.mxu0 %v804
    %1647 = vmatpush1.bf16.msra.mxu0 %v803
    %1648 = vmatprep.subr.bf16.mxu0 %v808
    %1649 = vmatpush1.bf16.msra.mxu0 %v807
    %1650 = vmatprep.subr.bf16.mxu0 %v812
    %1651 = vmatpush1.bf16.msra.mxu0 %v811
    %1652 = vmatprep.subr.bf16.mxu0 %v816
    %1653 = vmatpush1.bf16.msra.mxu0 %v815
    %1654 = vmatprep.subr.bf16.mxu0 %v820
    %1655 = vmatpush1.bf16.msra.mxu0 %v819
    %1656 = vmatprep.subr.bf16.mxu0 %v824
    %1657 = vmatpush1.bf16.msra.mxu0 %v823
    %1658 = vmatprep.subr.bf16.mxu0 %v828
    %1659 = vmatpush1.bf16.msra.mxu0 %v827
    %1660 = vmatprep.subr.bf16.mxu0 %v832
    %1661 = vmatpush1.bf16.msra.mxu0 %v831
    %1662 = vmatprep.subr.bf16.mxu0 0
    %1663 = vmatpush1.bf16.msra.mxu0 0
    %1664 = vmatprep.subr.bf16.mxu0 0
    %1665 = vmatpush1.bf16.msra.mxu0 0
    %1666 = vmatprep.subr.bf16.mxu0 0
    %1667 = vmatpush1.bf16.msra.mxu0 0
    %1668 = vmatprep.subr.bf16.mxu0 0
    %1669 = vmatpush1.bf16.msra.mxu0 0
    %1670 = vmatprep.subr.bf16.mxu0 0
    %1671 = vmatpush1.bf16.msra.mxu0 0
    %1672 = vmatprep.subr.bf16.mxu0 0
    %1673 = vmatpush1.bf16.msra.mxu0 0
    %1674 = vmatprep.subr.bf16.mxu0 0
    %1675 = vmatpush1.bf16.msra.mxu0 0
    %1676 = vmatprep.subr.bf16.mxu0 0
    %1677 = vmatpush1.bf16.msra.mxu0 0
    %1678 = vmatprep.mubr.bf16.mxu0 0
    %1679 = vmatmul.mubr.bf16.gmra.mrb[0].mxu0 %v1632
    %v1680 = vpop.f32.mrb[0].mxu0
    %v1681 = vadd.f32 0.0, %v1680
    %v1682 = vpop.f32.mrb[0].mxu0
    %v1683 = vadd.f32 0.0, %v1682
    %v1684 = vpop.f32.mrb[0].mxu0
    %v1685 = vadd.f32 0.0, %v1684
    %v1686 = vpop.f32.mrb[0].mxu0
    %v1687 = vadd.f32 0.0, %v1686
    %1688 = vdwg.mxu0
    %1689 = vmatprep.subr.bf16.mxu0 %v806
    %1690 = vmatpush1.bf16.msra.mxu0 %v805
    %1691 = vmatprep.subr.bf16.mxu0 %v810
    %1692 = vmatpush1.bf16.msra.mxu0 %v809
    %1693 = vmatprep.subr.bf16.mxu0 %v814
    %1694 = vmatpush1.bf16.msra.mxu0 %v813
    %1695 = vmatprep.subr.bf16.mxu0 %v818
    %1696 = vmatpush1.bf16.msra.mxu0 %v817
    %1697 = vmatprep.subr.bf16.mxu0 %v822
    %1698 = vmatpush1.bf16.msra.mxu0 %v821
    %1699 = vmatprep.subr.bf16.mxu0 %v826
    %1700 = vmatpush1.bf16.msra.mxu0 %v825
    %1701 = vmatprep.subr.bf16.mxu0 %v830
    %1702 = vmatpush1.bf16.msra.mxu0 %v829
    %1703 = vmatprep.subr.bf16.mxu0 %v834
    %1704 = vmatpush1.bf16.msra.mxu0 %v833
    %1705 = vmatprep.subr.bf16.mxu0 0
    %1706 = vmatpush1.bf16.msra.mxu0 0
    %1707 = vmatprep.subr.bf16.mxu0 0
    %1708 = vmatpush1.bf16.msra.mxu0 0
    %1709 = vmatprep.subr.bf16.mxu0 0
    %1710 = vmatpush1.bf16.msra.mxu0 0
    %1711 = vmatprep.subr.bf16.mxu0 0
    %1712 = vmatpush1.bf16.msra.mxu0 0
    %1713 = vmatprep.subr.bf16.mxu0 0
    %1714 = vmatpush1.bf16.msra.mxu0 0
    %1715 = vmatprep.subr.bf16.mxu0 0
    %1716 = vmatpush1.bf16.msra.mxu0 0
    %1717 = vmatprep.subr.bf16.mxu0 0
    %1718 = vmatpush1.bf16.msra.mxu0 0
    %1719 = vmatprep.subr.bf16.mxu0 0
    %1720 = vmatpush1.bf16.msra.mxu0 0
    %1721 = vmatprep.mubr.bf16.mxu0 0
    %1722 = vmatmul.mubr.bf16.gmra.mrb[0].mxu0 %v1632
    %v1723 = vpop.f32.mrb[0].mxu0
    %v1724 = vadd.f32 0.0, %v1723
    %v1725 = vpop.f32.mrb[0].mxu0
    %v1726 = vadd.f32 0.0, %v1725
    %v1727 = vpop.f32.mrb[0].mxu0
    %v1728 = vadd.f32 0.0, %v1727
    %v1729 = vpop.f32.mrb[0].mxu0
    %v1730 = vadd.f32 0.0, %v1729
    %1731 = vdwg.mxu0
    %v1732 = vadd.f32 %v1638, %v1681
    %v1733 = vadd.f32 %v1639, %v1683
    %v1734 = vadd.f32 %v1640, %v1724
    %v1735 = vadd.f32 %v1641, %v1726
    %v1736 = vadd.f32 %v1642, %v1685
    %v1737 = vadd.f32 %v1643, %v1687
    %v1738 = vadd.f32 %v1644, %v1728
    %v1739 = vadd.f32 %v1645, %v1730
    %v1740 = vxor.u32 %v1732, 2147483648
    %v1741 = vxor.u32 %v1733, 2147483648
    %v1742 = vxor.u32 %v1734, 2147483648
    %v1743 = vxor.u32 %v1736, 2147483648
    %v1744 = vxor.u32 %v1737, 2147483648
    %v1745 = vxor.u32 %v1738, 2147483648
    %v1746 = vmul.f32 %v1740, 1.442695
    %v1747 = vpow.pop %v1746
    %v1748 = vmul.f32 %v1741, 1.442695
    %v1749 = vpow.pop %v1748
    %v1750 = vmul.f32 %v1742, 1.442695
    %v1751 = vpow.pop %v1750
    %v1752 = vmul.f32 %v1743, 1.442695
    %v1753 = vpow.pop %v1752
    %v1754 = vmul.f32 %v1744, 1.442695
    %v1755 = vpow.pop %v1754
    %v1756 = vmul.f32 %v1745, 1.442695
    %v1757 = vpow.pop %v1756
    %v1758 = vadd.f32 %v1747, 1.0
    %v1759 = vadd.f32 %v1749, 1.0
    %v1760 = vadd.f32 %v1751, 1.0
    %v1761 = vadd.f32 %v1753, 1.0
    %v1762 = vadd.f32 %v1755, 1.0
    %v1763 = vadd.f32 %v1757, 1.0
    %v1764 = vrcp.pop %v1758
    %v1765 = vmul.f32 1.0, %v1764
    %v1766 = vrcp.pop %v1759
    %v1767 = vmul.f32 1.0, %v1766
    %v1768 = vrcp.pop %v1760
    %v1769 = vmul.f32 1.0, %v1768
    %v1770 = vrcp.pop %v1761
    %v1771 = vmul.f32 1.0, %v1770
    %v1772 = vrcp.pop %v1762
    %v1773 = vmul.f32 1.0, %v1772
    %v1774 = vrcp.pop %v1763
    %v1775 = vmul.f32 1.0, %v1774
    %v1776 = vtanh.pop %v1735
    %v1777 = vtanh.pop %v1739
    %v1778 = vmul.f32 %v1767, %v1626
    %v1779 = vmul.f32 %v1773, %v1627
    %v1780 = vmul.f32 %v1765, %v1776
    %v1781 = vmul.f32 %v1771, %v1777
    %v1782 = vadd.f32 %v1778, %v1780
    %v1783 = vadd.f32 %v1779, %v1781
    %v1784 = vtanh.pop %v1782
    %v1785 = vtanh.pop %v1783
    %v1786 = vmul.f32 %v1769, %v1784
    %v1787 = vmul.f32 %v1775, %v1785
    %v1788 = vpack.c.bf16 %v1787, %v1786
    %s1789 = scalar_lea.vmem [#allocation2], 40
    %1790 = vst [vmem:[%s1789] sm:$0xff] %v1788
    %s1791 = smul.u32 12, 4
    %s1792 = smul.addr %s1791, 8
    %s1793 = scalar_lea.vmem [#allocation3], %s1792
    %v1794 = vld [vmem:[%s1793] sm:$0xff]
    %v1795 = vld [vmem:[%s1793 + $0x8] sm:$0xff]
    %v1796 = vld [vmem:[%s1793 + $0x10] sm:$0xff]
    %v1797 = vld [vmem:[%s1793 + $0x18] sm:$0xff]
    %v1798 = vld [vmem:[%s1793 + $0x20] sm:$0xff]
    %v1799 = vld [vmem:[%s1793 + $0x28] sm:$0xff]
    %v1800 = vld [vmem:[%s1793 + $0x30] sm:$0xff]
    %v1801 = vld [vmem:[%s1793 + $0x38] sm:$0xff]
    %1802 = vmatprep.subr.bf16.mxu0 %v804
    %1803 = vmatpush1.bf16.msra.mxu0 %v803
    %1804 = vmatprep.subr.bf16.mxu0 %v808
    %1805 = vmatpush1.bf16.msra.mxu0 %v807
    %1806 = vmatprep.subr.bf16.mxu0 %v812
    %1807 = vmatpush1.bf16.msra.mxu0 %v811
    %1808 = vmatprep.subr.bf16.mxu0 %v816
    %1809 = vmatpush1.bf16.msra.mxu0 %v815
    %1810 = vmatprep.subr.bf16.mxu0 %v820
    %1811 = vmatpush1.bf16.msra.mxu0 %v819
    %1812 = vmatprep.subr.bf16.mxu0 %v824
    %1813 = vmatpush1.bf16.msra.mxu0 %v823
    %1814 = vmatprep.subr.bf16.mxu0 %v828
    %1815 = vmatpush1.bf16.msra.mxu0 %v827
    %1816 = vmatprep.subr.bf16.mxu0 %v832
    %1817 = vmatpush1.bf16.msra.mxu0 %v831
    %1818 = vmatprep.subr.bf16.mxu0 0
    %1819 = vmatpush1.bf16.msra.mxu0 0
    %1820 = vmatprep.subr.bf16.mxu0 0
    %1821 = vmatpush1.bf16.msra.mxu0 0
    %1822 = vmatprep.subr.bf16.mxu0 0
    %1823 = vmatpush1.bf16.msra.mxu0 0
    %1824 = vmatprep.subr.bf16.mxu0 0
    %1825 = vmatpush1.bf16.msra.mxu0 0
    %1826 = vmatprep.subr.bf16.mxu0 0
    %1827 = vmatpush1.bf16.msra.mxu0 0
    %1828 = vmatprep.subr.bf16.mxu0 0
    %1829 = vmatpush1.bf16.msra.mxu0 0
    %1830 = vmatprep.subr.bf16.mxu0 0
    %1831 = vmatpush1.bf16.msra.mxu0 0
    %1832 = vmatprep.subr.bf16.mxu0 0
    %1833 = vmatpush1.bf16.msra.mxu0 0
    %1834 = vmatprep.mubr.bf16.mxu0 0
    %1835 = vmatmul.mubr.bf16.gmra.mrb[0].mxu0 %v1788
    %v1836 = vpop.f32.mrb[0].mxu0
    %v1837 = vadd.f32 0.0, %v1836
    %v1838 = vpop.f32.mrb[0].mxu0
    %v1839 = vadd.f32 0.0, %v1838
    %v1840 = vpop.f32.mrb[0].mxu0
    %v1841 = vadd.f32 0.0, %v1840
    %v1842 = vpop.f32.mrb[0].mxu0
    %v1843 = vadd.f32 0.0, %v1842
    %1844 = vdwg.mxu0
    %1845 = vmatprep.subr.bf16.mxu0 %v806
    %1846 = vmatpush1.bf16.msra.mxu0 %v805
    %1847 = vmatprep.subr.bf16.mxu0 %v810
    %1848 = vmatpush1.bf16.msra.mxu0 %v809
    %1849 = vmatprep.subr.bf16.mxu0 %v814
    %1850 = vmatpush1.bf16.msra.mxu0 %v813
    %1851 = vmatprep.subr.bf16.mxu0 %v818
    %1852 = vmatpush1.bf16.msra.mxu0 %v817
    %1853 = vmatprep.subr.bf16.mxu0 %v822
    %1854 = vmatpush1.bf16.msra.mxu0 %v821
    %1855 = vmatprep.subr.bf16.mxu0 %v826
    %1856 = vmatpush1.bf16.msra.mxu0 %v825
    %1857 = vmatprep.subr.bf16.mxu0 %v830
    %1858 = vmatpush1.bf16.msra.mxu0 %v829
    %1859 = vmatprep.subr.bf16.mxu0 %v834
    %1860 = vmatpush1.bf16.msra.mxu0 %v833
    %1861 = vmatprep.subr.bf16.mxu0 0
    %1862 = vmatpush1.bf16.msra.mxu0 0
    %1863 = vmatprep.subr.bf16.mxu0 0
    %1864 = vmatpush1.bf16.msra.mxu0 0
    %1865 = vmatprep.subr.bf16.mxu0 0
    %1866 = vmatpush1.bf16.msra.mxu0 0
    %1867 = vmatprep.subr.bf16.mxu0 0
    %1868 = vmatpush1.bf16.msra.mxu0 0
    %1869 = vmatprep.subr.bf16.mxu0 0
    %1870 = vmatpush1.bf16.msra.mxu0 0
    %1871 = vmatprep.subr.bf16.mxu0 0
    %1872 = vmatpush1.bf16.msra.mxu0 0
    %1873 = vmatprep.subr.bf16.mxu0 0
    %1874 = vmatpush1.bf16.msra.mxu0 0
    %1875 = vmatprep.subr.bf16.mxu0 0
    %1876 = vmatpush1.bf16.msra.mxu0 0
    %1877 = vmatprep.mubr.bf16.mxu0 0
    %1878 = vmatmul.mubr.bf16.gmra.mrb[0].mxu0 %v1788
    %v1879 = vpop.f32.mrb[0].mxu0
    %v1880 = vadd.f32 0.0, %v1879
    %v1881 = vpop.f32.mrb[0].mxu0
    %v1882 = vadd.f32 0.0, %v1881
    %v1883 = vpop.f32.mrb[0].mxu0
    %v1884 = vadd.f32 0.0, %v1883
    %v1885 = vpop.f32.mrb[0].mxu0
    %v1886 = vadd.f32 0.0, %v1885
    %1887 = vdwg.mxu0
    %v1888 = vadd.f32 %v1794, %v1837
    %v1889 = vadd.f32 %v1795, %v1839
    %v1890 = vadd.f32 %v1796, %v1880
    %v1891 = vadd.f32 %v1797, %v1882
    %v1892 = vadd.f32 %v1798, %v1841
    %v1893 = vadd.f32 %v1799, %v1843
    %v1894 = vadd.f32 %v1800, %v1884
    %v1895 = vadd.f32 %v1801, %v1886
    %v1896 = vxor.u32 %v1888, 2147483648
    %v1897 = vxor.u32 %v1889, 2147483648
    %v1898 = vxor.u32 %v1890, 2147483648
    %v1899 = vxor.u32 %v1892, 2147483648
    %v1900 = vxor.u32 %v1893, 2147483648
    %v1901 = vxor.u32 %v1894, 2147483648
    %v1902 = vmul.f32 %v1896, 1.442695
    %v1903 = vpow.pop %v1902
    %v1904 = vmul.f32 %v1897, 1.442695
    %v1905 = vpow.pop %v1904
    %v1906 = vmul.f32 %v1898, 1.442695
    %v1907 = vpow.pop %v1906
    %v1908 = vmul.f32 %v1899, 1.442695
    %v1909 = vpow.pop %v1908
    %v1910 = vmul.f32 %v1900, 1.442695
    %v1911 = vpow.pop %v1910
    %v1912 = vmul.f32 %v1901, 1.442695
    %v1913 = vpow.pop %v1912
    %v1914 = vadd.f32 %v1903, 1.0
    %v1915 = vadd.f32 %v1905, 1.0
    %v1916 = vadd.f32 %v1907, 1.0
    %v1917 = vadd.f32 %v1909, 1.0
    %v1918 = vadd.f32 %v1911, 1.0
    %v1919 = vadd.f32 %v1913, 1.0
    %v1920 = vrcp.pop %v1914
    %v1921 = vmul.f32 1.0, %v1920
    %v1922 = vrcp.pop %v1915
    %v1923 = vmul.f32 1.0, %v1922
    %v1924 = vrcp.pop %v1916
    %v1925 = vmul.f32 1.0, %v1924
    %v1926 = vrcp.pop %v1917
    %v1927 = vmul.f32 1.0, %v1926
    %v1928 = vrcp.pop %v1918
    %v1929 = vmul.f32 1.0, %v1928
    %v1930 = vrcp.pop %v1919
    %v1931 = vmul.f32 1.0, %v1930
    %v1932 = vtanh.pop %v1891
    %v1933 = vtanh.pop %v1895
    %v1934 = vmul.f32 %v1923, %v1782
    %v1935 = vmul.f32 %v1929, %v1783
    %v1936 = vmul.f32 %v1921, %v1932
    %v1937 = vmul.f32 %v1927, %v1933
    %v1938 = vadd.f32 %v1934, %v1936
    %v1939 = vadd.f32 %v1935, %v1937
    %v1940 = vtanh.pop %v1938
    %v1941 = vtanh.pop %v1939
    %v1942 = vmul.f32 %v1925, %v1940
    %v1943 = vmul.f32 %v1931, %v1941
    %v1944 = vpack.c.bf16 %v1943, %v1942
    %s1945 = scalar_lea.vmem [#allocation2], 48
    %1946 = vst [vmem:[%s1945] sm:$0xff] %v1944
    %s1947 = smul.u32 14, 4
    %s1948 = smul.addr %s1947, 8
    %s1949 = scalar_lea.vmem [#allocation3], %s1948
    %v1950 = vld [vmem:[%s1949] sm:$0xff]
    %v1951 = vld [vmem:[%s1949 + $0x8] sm:$0xff]
    %v1952 = vld [vmem:[%s1949 + $0x10] sm:$0xff]
    %v1953 = vld [vmem:[%s1949 + $0x18] sm:$0xff]
    %v1954 = vld [vmem:[%s1949 + $0x20] sm:$0xff]
    %v1955 = vld [vmem:[%s1949 + $0x28] sm:$0xff]
    %v1956 = vld [vmem:[%s1949 + $0x30] sm:$0xff]
    %v1957 = vld [vmem:[%s1949 + $0x38] sm:$0xff]
    %1958 = vmatprep.subr.bf16.mxu0 %v804
    %1959 = vmatpush1.bf16.msra.mxu0 %v803
    %1960 = vmatprep.subr.bf16.mxu0 %v808
    %1961 = vmatpush1.bf16.msra.mxu0 %v807
    %1962 = vmatprep.subr.bf16.mxu0 %v812
    %1963 = vmatpush1.bf16.msra.mxu0 %v811
    %1964 = vmatprep.subr.bf16.mxu0 %v816
    %1965 = vmatpush1.bf16.msra.mxu0 %v815
    %1966 = vmatprep.subr.bf16.mxu0 %v820
    %1967 = vmatpush1.bf16.msra.mxu0 %v819
    %1968 = vmatprep.subr.bf16.mxu0 %v824
    %1969 = vmatpush1.bf16.msra.mxu0 %v823
    %1970 = vmatprep.subr.bf16.mxu0 %v828
    %1971 = vmatpush1.bf16.msra.mxu0 %v827
    %1972 = vmatprep.subr.bf16.mxu0 %v832
    %1973 = vmatpush1.bf16.msra.mxu0 %v831
    %1974 = vmatprep.subr.bf16.mxu0 0
    %1975 = vmatpush1.bf16.msra.mxu0 0
    %1976 = vmatprep.subr.bf16.mxu0 0
    %1977 = vmatpush1.bf16.msra.mxu0 0
    %1978 = vmatprep.subr.bf16.mxu0 0
    %1979 = vmatpush1.bf16.msra.mxu0 0
    %1980 = vmatprep.subr.bf16.mxu0 0
    %1981 = vmatpush1.bf16.msra.mxu0 0
    %1982 = vmatprep.subr.bf16.mxu0 0
    %1983 = vmatpush1.bf16.msra.mxu0 0
    %1984 = vmatprep.subr.bf16.mxu0 0
    %1985 = vmatpush1.bf16.msra.mxu0 0
    %1986 = vmatprep.subr.bf16.mxu0 0
    %1987 = vmatpush1.bf16.msra.mxu0 0
    %1988 = vmatprep.subr.bf16.mxu0 0
    %1989 = vmatpush1.bf16.msra.mxu0 0
    %1990 = vmatprep.mubr.bf16.mxu0 0
    %1991 = vmatmul.mubr.bf16.gmra.mrb[0].mxu0 %v1944
    %v1992 = vpop.f32.mrb[0].mxu0
    %v1993 = vadd.f32 0.0, %v1992
    %v1994 = vpop.f32.mrb[0].mxu0
    %v1995 = vadd.f32 0.0, %v1994
    %v1996 = vpop.f32.mrb[0].mxu0
    %v1997 = vadd.f32 0.0, %v1996
    %v1998 = vpop.f32.mrb[0].mxu0
    %v1999 = vadd.f32 0.0, %v1998
    %2000 = vdwg.mxu0
    %2001 = vmatprep.subr.bf16.mxu0 %v806
    %2002 = vmatpush1.bf16.msra.mxu0 %v805
    %2003 = vmatprep.subr.bf16.mxu0 %v810
    %2004 = vmatpush1.bf16.msra.mxu0 %v809
    %2005 = vmatprep.subr.bf16.mxu0 %v814
    %2006 = vmatpush1.bf16.msra.mxu0 %v813
    %2007 = vmatprep.subr.bf16.mxu0 %v818
    %2008 = vmatpush1.bf16.msra.mxu0 %v817
    %2009 = vmatprep.subr.bf16.mxu0 %v822
    %2010 = vmatpush1.bf16.msra.mxu0 %v821
    %2011 = vmatprep.subr.bf16.mxu0 %v826
    %2012 = vmatpush1.bf16.msra.mxu0 %v825
    %2013 = vmatprep.subr.bf16.mxu0 %v830
    %2014 = vmatpush1.bf16.msra.mxu0 %v829
    %2015 = vmatprep.subr.bf16.mxu0 %v834
    %2016 = vmatpush1.bf16.msra.mxu0 %v833
    %2017 = vmatprep.subr.bf16.mxu0 0
    %2018 = vmatpush1.bf16.msra.mxu0 0
    %2019 = vmatprep.subr.bf16.mxu0 0
    %2020 = vmatpush1.bf16.msra.mxu0 0
    %2021 = vmatprep.subr.bf16.mxu0 0
    %2022 = vmatpush1.bf16.msra.mxu0 0
    %2023 = vmatprep.subr.bf16.mxu0 0
    %2024 = vmatpush1.bf16.msra.mxu0 0
    %2025 = vmatprep.subr.bf16.mxu0 0
    %2026 = vmatpush1.bf16.msra.mxu0 0
    %2027 = vmatprep.subr.bf16.mxu0 0
    %2028 = vmatpush1.bf16.msra.mxu0 0
    %2029 = vmatprep.subr.bf16.mxu0 0
    %2030 = vmatpush1.bf16.msra.mxu0 0
    %2031 = vmatprep.subr.bf16.mxu0 0
    %2032 = vmatpush1.bf16.msra.mxu0 0
    %2033 = vmatprep.mubr.bf16.mxu0 0
    %2034 = vmatmul.mubr.bf16.gmra.mrb[0].mxu0 %v1944
    %v2035 = vpop.f32.mrb[0].mxu0
    %v2036 = vadd.f32 0.0, %v2035
    %v2037 = vpop.f32.mrb[0].mxu0
    %v2038 = vadd.f32 0.0, %v2037
    %v2039 = vpop.f32.mrb[0].mxu0
    %v2040 = vadd.f32 0.0, %v2039
    %v2041 = vpop.f32.mrb[0].mxu0
    %v2042 = vadd.f32 0.0, %v2041
    %2043 = vdwg.mxu0
    %v2044 = vadd.f32 %v1950, %v1993
    %v2045 = vadd.f32 %v1951, %v1995
    %v2046 = vadd.f32 %v1952, %v2036
    %v2047 = vadd.f32 %v1953, %v2038
    %v2048 = vadd.f32 %v1954, %v1997
    %v2049 = vadd.f32 %v1955, %v1999
    %v2050 = vadd.f32 %v1956, %v2040
    %v2051 = vadd.f32 %v1957, %v2042
    %v2052 = vxor.u32 %v2044, 2147483648
    %v2053 = vxor.u32 %v2045, 2147483648
    %v2054 = vxor.u32 %v2046, 2147483648
    %v2055 = vxor.u32 %v2048, 2147483648
    %v2056 = vxor.u32 %v2049, 2147483648
    %v2057 = vxor.u32 %v2050, 2147483648
    %v2058 = vmul.f32 %v2052, 1.442695
    %v2059 = vpow.pop %v2058
    %v2060 = vmul.f32 %v2053, 1.442695
    %v2061 = vpow.pop %v2060
    %v2062 = vmul.f32 %v2054, 1.442695
    %v2063 = vpow.pop %v2062
    %v2064 = vmul.f32 %v2055, 1.442695
    %v2065 = vpow.pop %v2064
    %v2066 = vmul.f32 %v2056, 1.442695
    %v2067 = vpow.pop %v2066
    %v2068 = vmul.f32 %v2057, 1.442695
    %v2069 = vpow.pop %v2068
    %v2070 = vadd.f32 %v2059, 1.0
    %v2071 = vadd.f32 %v2061, 1.0
    %v2072 = vadd.f32 %v2063, 1.0
    %v2073 = vadd.f32 %v2065, 1.0
    %v2074 = vadd.f32 %v2067, 1.0
    %v2075 = vadd.f32 %v2069, 1.0
    %v2076 = vrcp.pop %v2070
    %v2077 = vmul.f32 1.0, %v2076
    %v2078 = vrcp.pop %v2071
    %v2079 = vmul.f32 1.0, %v2078
    %v2080 = vrcp.pop %v2072
    %v2081 = vmul.f32 1.0, %v2080
    %v2082 = vrcp.pop %v2073
    %v2083 = vmul.f32 1.0, %v2082
    %v2084 = vrcp.pop %v2074
    %v2085 = vmul.f32 1.0, %v2084
    %v2086 = vrcp.pop %v2075
    %v2087 = vmul.f32 1.0, %v2086
    %v2088 = vtanh.pop %v2047
    %v2089 = vtanh.pop %v2051
    %v2090 = vmul.f32 %v2079, %v1938
    %v2091 = vmul.f32 %v2085, %v1939
    %v2092 = vmul.f32 %v2077, %v2088
    %v2093 = vmul.f32 %v2083, %v2089
    %v2094 = vadd.f32 %v2090, %v2092
    %v2095 = vadd.f32 %v2091, %v2093
    %v2096 = vtanh.pop %v2094
    %v2097 = vtanh.pop %v2095
    %v2098 = vmul.f32 %v2081, %v2096
    %v2099 = vmul.f32 %v2087, %v2097
    %v2100 = vpack.c.bf16 %v2099, %v2098
    %s2101 = scalar_lea.vmem [#allocation2], 56
    %2102 = vst [vmem:[%s2101] sm:$0xff] %v2100
    %s2103 = scalar_lea.vmem [#allocation10], 256
    %v2104 = vld [vmem:[%s2103] sm:$0xff]
    %v2105 = vld [vmem:[%s2103 + $0x8] sm:$0xff]
    %v2106 = vld [vmem:[%s2103 + $0x10] sm:$0xff]
    %v2107 = vld [vmem:[%s2103 + $0x18] sm:$0xff]
    %v2108 = vld [vmem:[%s2103 + $0x20] sm:$0xff]
    %v2109 = vld [vmem:[%s2103 + $0x28] sm:$0xff]
    %v2110 = vld [vmem:[%s2103 + $0x30] sm:$0xff]
    %v2111 = vld [vmem:[%s2103 + $0x38] sm:$0xff]
    %v2112 = vld [vmem:[%s2103 + $0x40] sm:$0xff]
    %v2113 = vld [vmem:[%s2103 + $0x48] sm:$0xff]
    %v2114 = vld [vmem:[%s2103 + $0x50] sm:$0xff]
    %v2115 = vld [vmem:[%s2103 + $0x58] sm:$0xff]
    %v2116 = vld [vmem:[%s2103 + $0x60] sm:$0xff]
    %v2117 = vld [vmem:[%s2103 + $0x68] sm:$0xff]
    %v2118 = vld [vmem:[%s2103 + $0x70] sm:$0xff]
    %v2119 = vld [vmem:[%s2103 + $0x78] sm:$0xff]
    %v2120 = vld [vmem:[%s2103 + $0x80] sm:$0xff]
    %v2121 = vld [vmem:[%s2103 + $0x88] sm:$0xff]
    %v2122 = vld [vmem:[%s2103 + $0x90] sm:$0xff]
    %v2123 = vld [vmem:[%s2103 + $0x98] sm:$0xff]
    %v2124 = vld [vmem:[%s2103 + $0xa0] sm:$0xff]
    %v2125 = vld [vmem:[%s2103 + $0xa8] sm:$0xff]
    %v2126 = vld [vmem:[%s2103 + $0xb0] sm:$0xff]
    %v2127 = vld [vmem:[%s2103 + $0xb8] sm:$0xff]
    %v2128 = vld [vmem:[%s2103 + $0xc0] sm:$0xff]
    %v2129 = vld [vmem:[%s2103 + $0xc8] sm:$0xff]
    %v2130 = vld [vmem:[%s2103 + $0xd0] sm:$0xff]
    %v2131 = vld [vmem:[%s2103 + $0xd8] sm:$0xff]
    %v2132 = vld [vmem:[%s2103 + $0xe0] sm:$0xff]
    %v2133 = vld [vmem:[%s2103 + $0xe8] sm:$0xff]
    %v2134 = vld [vmem:[%s2103 + $0xf0] sm:$0xff]
    %v2135 = vld [vmem:[%s2103 + $0xf8] sm:$0xff]
    %s2136 = scalar_lea.vmem %s4, 4
    %v2137 = vld [vmem:[%s2136] sm:$0xf]
    %v2138 = vld [vmem:[#allocation2] sm:$0xff]
    %v2139 = vld [vmem:[#allocation2 + $0x8] sm:$0xff]
    %v2140 = vld [vmem:[#allocation2 + $0x10] sm:$0xff]
    %v2141 = vld [vmem:[#allocation2 + $0x18] sm:$0xff]
    %v2142 = vld [vmem:[#allocation2 + $0x20] sm:$0xff]
    %v2143 = vld [vmem:[#allocation2 + $0x28] sm:$0xff]
    %v2144 = vld [vmem:[#allocation2 + $0x30] sm:$0xff]
    %v2145 = vld [vmem:[#allocation2 + $0x38] sm:$0xff]
    %v2146 = vld [vmem:[#allocation9] sm:$0xff]
    %v2147 = vld [vmem:[#allocation9 + $0x8] sm:$0xff]
    %v2148 = vld [vmem:[#allocation9 + $0x10] sm:$0xff]
    %v2149 = vld [vmem:[#allocation9 + $0x18] sm:$0xff]
    %v2150 = vld [vmem:[#allocation9 + $0x20] sm:$0xff]
    %v2151 = vld [vmem:[#allocation9 + $0x28] sm:$0xff]
    %v2152 = vld [vmem:[#allocation9 + $0x30] sm:$0xff]
    %v2153 = vld [vmem:[#allocation9 + $0x38] sm:$0xff]
    %v2154 = vld [vmem:[#allocation9 + $0x40] sm:$0xff]
    %v2155 = vld [vmem:[#allocation9 + $0x48] sm:$0xff]
    %v2156 = vld [vmem:[#allocation9 + $0x50] sm:$0xff]
    %v2157 = vld [vmem:[#allocation9 + $0x58] sm:$0xff]
    %v2158 = vld [vmem:[#allocation9 + $0x60] sm:$0xff]
    %v2159 = vld [vmem:[#allocation9 + $0x68] sm:$0xff]
    %v2160 = vld [vmem:[#allocation9 + $0x70] sm:$0xff]
    %v2161 = vld [vmem:[#allocation9 + $0x78] sm:$0xff]
    %v2162 = vld [vmem:[#allocation9 + $0x80] sm:$0xff]
    %v2163 = vld [vmem:[#allocation9 + $0x88] sm:$0xff]
    %v2164 = vld [vmem:[#allocation9 + $0x90] sm:$0xff]
    %v2165 = vld [vmem:[#allocation9 + $0x98] sm:$0xff]
    %v2166 = vld [vmem:[#allocation9 + $0xa0] sm:$0xff]
    %v2167 = vld [vmem:[#allocation9 + $0xa8] sm:$0xff]
    %v2168 = vld [vmem:[#allocation9 + $0xb0] sm:$0xff]
    %v2169 = vld [vmem:[#allocation9 + $0xb8] sm:$0xff]
    %v2170 = vld [vmem:[#allocation9 + $0xc0] sm:$0xff]
    %v2171 = vld [vmem:[#allocation9 + $0xc8] sm:$0xff]
    %v2172 = vld [vmem:[#allocation9 + $0xd0] sm:$0xff]
    %v2173 = vld [vmem:[#allocation9 + $0xd8] sm:$0xff]
    %v2174 = vld [vmem:[#allocation9 + $0xe0] sm:$0xff]
    %v2175 = vld [vmem:[#allocation9 + $0xe8] sm:$0xff]
    %v2176 = vld [vmem:[#allocation9 + $0xf0] sm:$0xff]
    %v2177 = vld [vmem:[#allocation9 + $0xf8] sm:$0xff]
    %v2179 = vlaneseq
    %v2180 = vshrl.u32 %v2179, 7
    %v2181 = vsub.s32 0, %v2180
    %v2182 = vrot.slane %v2137, %v2181
    %v2183 = vlaneseq
    %v2184 = vshrl.u32 %v2183, 7
    %v2185 = vsub.s32 1, %v2184
    %v2186 = vrot.slane %v2137, %v2185
    %v2187 = vlaneseq
    %v2188 = vshrl.u32 %v2187, 7
    %v2189 = vsub.s32 2, %v2188
    %v2190 = vrot.slane %v2137, %v2189
    %v2191 = vlaneseq
    %v2192 = vshrl.u32 %v2191, 7
    %v2193 = vsub.s32 3, %v2192
    %v2194 = vrot.slane %v2137, %v2193
    %v2231 = vunpack.c.l.b16 %v2146
    %v2232 = vunpack.c.h.b16 %v2146
    %v2233 = vunpack.c.l.b16 %v2147
    %v2234 = vunpack.c.h.b16 %v2147
    %v2235 = vunpack.c.l.b16 %v2148
    %v2236 = vunpack.c.h.b16 %v2148
    %v2237 = vunpack.c.l.b16 %v2149
    %v2238 = vunpack.c.h.b16 %v2149
    %v2239 = vunpack.c.l.b16 %v2150
    %v2240 = vunpack.c.h.b16 %v2150
    %v2241 = vunpack.c.l.b16 %v2151
    %v2242 = vunpack.c.h.b16 %v2151
    %v2243 = vunpack.c.l.b16 %v2152
    %v2244 = vunpack.c.h.b16 %v2152
    %v2245 = vunpack.c.l.b16 %v2153
    %v2246 = vunpack.c.h.b16 %v2153
    %v2247 = vunpack.c.l.b16 %v2154
    %v2248 = vunpack.c.h.b16 %v2154
    %v2249 = vunpack.c.l.b16 %v2155
    %v2250 = vunpack.c.h.b16 %v2155
    %v2251 = vunpack.c.l.b16 %v2156
    %v2252 = vunpack.c.h.b16 %v2156
    %v2253 = vunpack.c.l.b16 %v2157
    %v2254 = vunpack.c.h.b16 %v2157
    %v2255 = vunpack.c.l.b16 %v2158
    %v2256 = vunpack.c.h.b16 %v2158
    %v2257 = vunpack.c.l.b16 %v2159
    %v2258 = vunpack.c.h.b16 %v2159
    %v2259 = vunpack.c.l.b16 %v2160
    %v2260 = vunpack.c.h.b16 %v2160
    %v2261 = vunpack.c.l.b16 %v2161
    %v2262 = vunpack.c.h.b16 %v2161
    %v2263 = vunpack.c.l.b16 %v2162
    %v2264 = vunpack.c.h.b16 %v2162
    %v2265 = vunpack.c.l.b16 %v2163
    %v2266 = vunpack.c.h.b16 %v2163
    %v2267 = vunpack.c.l.b16 %v2164
    %v2268 = vunpack.c.h.b16 %v2164
    %v2269 = vunpack.c.l.b16 %v2165
    %v2270 = vunpack.c.h.b16 %v2165
    %v2271 = vunpack.c.l.b16 %v2166
    %v2272 = vunpack.c.h.b16 %v2166
    %v2273 = vunpack.c.l.b16 %v2167
    %v2274 = vunpack.c.h.b16 %v2167
    %v2275 = vunpack.c.l.b16 %v2168
    %v2276 = vunpack.c.h.b16 %v2168
    %v2277 = vunpack.c.l.b16 %v2169
    %v2278 = vunpack.c.h.b16 %v2169
    %v2279 = vunpack.c.l.b16 %v2170
    %v2280 = vunpack.c.h.b16 %v2170
    %v2281 = vunpack.c.l.b16 %v2171
    %v2282 = vunpack.c.h.b16 %v2171
    %v2283 = vunpack.c.l.b16 %v2172
    %v2284 = vunpack.c.h.b16 %v2172
    %v2285 = vunpack.c.l.b16 %v2173
    %v2286 = vunpack.c.h.b16 %v2173
    %v2287 = vunpack.c.l.b16 %v2174
    %v2288 = vunpack.c.h.b16 %v2174
    %v2289 = vunpack.c.l.b16 %v2175
    %v2290 = vunpack.c.h.b16 %v2175
    %v2291 = vunpack.c.l.b16 %v2176
    %v2292 = vunpack.c.h.b16 %v2176
    %v2293 = vunpack.c.l.b16 %v2177
    %v2294 = vunpack.c.h.b16 %v2177
    %v2295 = vpack.c.b16 %v2235, %v2231
    %v2296 = vpack.c.b16 %v2236, %v2232
    %v2297 = vpack.c.b16 %v2237, %v2233
    %v2298 = vpack.c.b16 %v2238, %v2234
    %v2299 = vpack.c.b16 %v2243, %v2239
    %v2300 = vpack.c.b16 %v2244, %v2240
    %v2301 = vpack.c.b16 %v2245, %v2241
    %v2302 = vpack.c.b16 %v2246, %v2242
    %v2303 = vpack.c.b16 %v2251, %v2247
    %v2304 = vpack.c.b16 %v2252, %v2248
    %v2305 = vpack.c.b16 %v2253, %v2249
    %v2306 = vpack.c.b16 %v2254, %v2250
    %v2307 = vpack.c.b16 %v2259, %v2255
    %v2308 = vpack.c.b16 %v2260, %v2256
    %v2309 = vpack.c.b16 %v2261, %v2257
    %v2310 = vpack.c.b16 %v2262, %v2258
    %v2311 = vpack.c.b16 %v2267, %v2263
    %v2312 = vpack.c.b16 %v2268, %v2264
    %v2313 = vpack.c.b16 %v2269, %v2265
    %v2314 = vpack.c.b16 %v2270, %v2266
    %v2315 = vpack.c.b16 %v2275, %v2271
    %v2316 = vpack.c.b16 %v2276, %v2272
    %v2317 = vpack.c.b16 %v2277, %v2273
    %v2318 = vpack.c.b16 %v2278, %v2274
    %v2319 = vpack.c.b16 %v2283, %v2279
    %v2320 = vpack.c.b16 %v2284, %v2280
    %v2321 = vpack.c.b16 %v2285, %v2281
    %v2322 = vpack.c.b16 %v2286, %v2282
    %v2323 = vpack.c.b16 %v2291, %v2287
    %v2324 = vpack.c.b16 %v2292, %v2288
    %v2325 = vpack.c.b16 %v2293, %v2289
    %v2326 = vpack.c.b16 %v2294, %v2290
    %2359 = vmatprep.subr.bf16.mxu0 %v2296
    %2360 = vmatpush1.bf16.msra.mxu0 %v2295
    %2361 = vmatprep.subr.bf16.mxu0 %v2300
    %2362 = vmatpush1.bf16.msra.mxu0 %v2299
    %2363 = vmatprep.subr.bf16.mxu0 %v2304
    %2364 = vmatpush1.bf16.msra.mxu0 %v2303
    %2365 = vmatprep.subr.bf16.mxu0 %v2308
    %2366 = vmatpush1.bf16.msra.mxu0 %v2307
    %2367 = vmatprep.subr.bf16.mxu0 %v2312
    %2368 = vmatpush1.bf16.msra.mxu0 %v2311
    %2369 = vmatprep.subr.bf16.mxu0 %v2316
    %2370 = vmatpush1.bf16.msra.mxu0 %v2315
    %2371 = vmatprep.subr.bf16.mxu0 %v2320
    %2372 = vmatpush1.bf16.msra.mxu0 %v2319
    %2373 = vmatprep.subr.bf16.mxu0 %v2324
    %2374 = vmatpush1.bf16.msra.mxu0 %v2323
    %2375 = vmatprep.subr.bf16.mxu0 0
    %2376 = vmatpush1.bf16.msra.mxu0 0
    %2377 = vmatprep.subr.bf16.mxu0 0
    %2378 = vmatpush1.bf16.msra.mxu0 0
    %2379 = vmatprep.subr.bf16.mxu0 0
    %2380 = vmatpush1.bf16.msra.mxu0 0
    %2381 = vmatprep.subr.bf16.mxu0 0
    %2382 = vmatpush1.bf16.msra.mxu0 0
    %2383 = vmatprep.subr.bf16.mxu0 0
    %2384 = vmatpush1.bf16.msra.mxu0 0
    %2385 = vmatprep.subr.bf16.mxu0 0
    %2386 = vmatpush1.bf16.msra.mxu0 0
    %2387 = vmatprep.subr.bf16.mxu0 0
    %2388 = vmatpush1.bf16.msra.mxu0 0
    %2389 = vmatprep.subr.bf16.mxu0 0
    %2390 = vmatpush1.bf16.msra.mxu0 0
    %2391 = vmatprep.mubr.bf16.mxu0 0
    %2392 = vmatmul.mubr.bf16.gmra.mrb[0].mxu0 %v2138
    %v2393 = vpop.f32.mrb[0].mxu0
    %v2394 = vadd.f32 %v2182, %v2393
    %v2395 = vpop.f32.mrb[0].mxu0
    %v2396 = vadd.f32 %v2186, %v2395
    %v2397 = vpop.f32.mrb[0].mxu0
    %v2398 = vadd.f32 %v2182, %v2397
    %v2399 = vpop.f32.mrb[0].mxu0
    %v2400 = vadd.f32 %v2186, %v2399
    %2401 = vmatprep.mubr.bf16.mxu0 0
    %2402 = vmatmul.mubr.bf16.gmra.mrb[0].mxu0 %v2139
    %v2403 = vpop.f32.mrb[0].mxu0
    %v2404 = vadd.f32 %v2182, %v2403
    %v2405 = vpop.f32.mrb[0].mxu0
    %v2406 = vadd.f32 %v2186, %v2405
    %v2407 = vpop.f32.mrb[0].mxu0
    %v2408 = vadd.f32 %v2182, %v2407
    %v2409 = vpop.f32.mrb[0].mxu0
    %v2410 = vadd.f32 %v2186, %v2409
    %2411 = vmatprep.mubr.bf16.mxu0 0
    %2412 = vmatmul.mubr.bf16.gmra.mrb[0].mxu0 %v2140
    %v2413 = vpop.f32.mrb[0].mxu0
    %v2414 = vadd.f32 %v2182, %v2413
    %v2415 = vpop.f32.mrb[0].mxu0
    %v2416 = vadd.f32 %v2186, %v2415
    %v2417 = vpop.f32.mrb[0].mxu0
    %v2418 = vadd.f32 %v2182, %v2417
    %v2419 = vpop.f32.mrb[0].mxu0
    %v2420 = vadd.f32 %v2186, %v2419
    %2421 = vmatprep.mubr.bf16.mxu0 0
    %2422 = vmatmul.mubr.bf16.gmra.mrb[0].mxu0 %v2141
    %v2423 = vpop.f32.mrb[0].mxu0
    %v2424 = vadd.f32 %v2182, %v2423
    %v2425 = vpop.f32.mrb[0].mxu0
    %v2426 = vadd.f32 %v2186, %v2425
    %v2427 = vpop.f32.mrb[0].mxu0
    %v2428 = vadd.f32 %v2182, %v2427
    %v2429 = vpop.f32.mrb[0].mxu0
    %v2430 = vadd.f32 %v2186, %v2429
    %2431 = vmatprep.mubr.bf16.mxu0 0
    %2432 = vmatmul.mubr.bf16.gmra.mrb[0].mxu0 %v2142
    %v2433 = vpop.f32.mrb[0].mxu0
    %v2434 = vadd.f32 %v2182, %v2433
    %v2435 = vpop.f32.mrb[0].mxu0
    %v2436 = vadd.f32 %v2186, %v2435
    %v2437 = vpop.f32.mrb[0].mxu0
    %v2438 = vadd.f32 %v2182, %v2437
    %v2439 = vpop.f32.mrb[0].mxu0
    %v2440 = vadd.f32 %v2186, %v2439
    %2441 = vmatprep.mubr.bf16.mxu0 0
    %2442 = vmatmul.mubr.bf16.gmra.mrb[0].mxu0 %v2143
    %v2443 = vpop.f32.mrb[0].mxu0
    %v2444 = vadd.f32 %v2182, %v2443
    %v2445 = vpop.f32.mrb[0].mxu0
    %v2446 = vadd.f32 %v2186, %v2445
    %v2447 = vpop.f32.mrb[0].mxu0
    %v2448 = vadd.f32 %v2182, %v2447
    %v2449 = vpop.f32.mrb[0].mxu0
    %v2450 = vadd.f32 %v2186, %v2449
    %2451 = vmatprep.mubr.bf16.mxu0 0
    %2452 = vmatmul.mubr.bf16.gmra.mrb[0].mxu0 %v2144
    %v2453 = vpop.f32.mrb[0].mxu0
    %v2454 = vadd.f32 %v2182, %v2453
    %v2455 = vpop.f32.mrb[0].mxu0
    %v2456 = vadd.f32 %v2186, %v2455
    %v2457 = vpop.f32.mrb[0].mxu0
    %v2458 = vadd.f32 %v2182, %v2457
    %v2459 = vpop.f32.mrb[0].mxu0
    %v2460 = vadd.f32 %v2186, %v2459
    %2461 = vmatprep.mubr.bf16.mxu0 0
    %2462 = vmatmul.mubr.bf16.gmra.mrb[0].mxu0 %v2145
    %v2463 = vpop.f32.mrb[0].mxu0
    %v2464 = vadd.f32 %v2182, %v2463
    %v2465 = vpop.f32.mrb[0].mxu0
    %v2466 = vadd.f32 %v2186, %v2465
    %v2467 = vpop.f32.mrb[0].mxu0
    %v2468 = vadd.f32 %v2182, %v2467
    %v2469 = vpop.f32.mrb[0].mxu0
    %v2470 = vadd.f32 %v2186, %v2469
    %2471 = vdwg.mxu0
    %2472 = vmatprep.subr.bf16.mxu0 %v2298
    %2473 = vmatpush1.bf16.msra.mxu0 %v2297
    %2474 = vmatprep.subr.bf16.mxu0 %v2302
    %2475 = vmatpush1.bf16.msra.mxu0 %v2301
    %2476 = vmatprep.subr.bf16.mxu0 %v2306
    %2477 = vmatpush1.bf16.msra.mxu0 %v2305
    %2478 = vmatprep.subr.bf16.mxu0 %v2310
    %2479 = vmatpush1.bf16.msra.mxu0 %v2309
    %2480 = vmatprep.subr.bf16.mxu0 %v2314
    %2481 = vmatpush1.bf16.msra.mxu0 %v2313
    %2482 = vmatprep.subr.bf16.mxu0 %v2318
    %2483 = vmatpush1.bf16.msra.mxu0 %v2317
    %2484 = vmatprep.subr.bf16.mxu0 %v2322
    %2485 = vmatpush1.bf16.msra.mxu0 %v2321
    %2486 = vmatprep.subr.bf16.mxu0 %v2326
    %2487 = vmatpush1.bf16.msra.mxu0 %v2325
    %2488 = vmatprep.subr.bf16.mxu0 0
    %2489 = vmatpush1.bf16.msra.mxu0 0
    %2490 = vmatprep.subr.bf16.mxu0 0
    %2491 = vmatpush1.bf16.msra.mxu0 0
    %2492 = vmatprep.subr.bf16.mxu0 0
    %2493 = vmatpush1.bf16.msra.mxu0 0
    %2494 = vmatprep.subr.bf16.mxu0 0
    %2495 = vmatpush1.bf16.msra.mxu0 0
    %2496 = vmatprep.subr.bf16.mxu0 0
    %2497 = vmatpush1.bf16.msra.mxu0 0
    %2498 = vmatprep.subr.bf16.mxu0 0
    %2499 = vmatpush1.bf16.msra.mxu0 0
    %2500 = vmatprep.subr.bf16.mxu0 0
    %2501 = vmatpush1.bf16.msra.mxu0 0
    %2502 = vmatprep.subr.bf16.mxu0 0
    %2503 = vmatpush1.bf16.msra.mxu0 0
    %2504 = vmatprep.mubr.bf16.mxu0 0
    %2505 = vmatmul.mubr.bf16.gmra.mrb[0].mxu0 %v2138
    %v2506 = vpop.f32.mrb[0].mxu0
    %v2507 = vadd.f32 %v2190, %v2506
    %v2508 = vpop.f32.mrb[0].mxu0
    %v2509 = vadd.f32 %v2194, %v2508
    %v2510 = vpop.f32.mrb[0].mxu0
    %v2511 = vadd.f32 %v2190, %v2510
    %v2512 = vpop.f32.mrb[0].mxu0
    %v2513 = vadd.f32 %v2194, %v2512
    %2514 = vmatprep.mubr.bf16.mxu0 0
    %2515 = vmatmul.mubr.bf16.gmra.mrb[0].mxu0 %v2139
    %v2516 = vpop.f32.mrb[0].mxu0
    %v2517 = vadd.f32 %v2190, %v2516
    %v2518 = vpop.f32.mrb[0].mxu0
    %v2519 = vadd.f32 %v2194, %v2518
    %v2520 = vpop.f32.mrb[0].mxu0
    %v2521 = vadd.f32 %v2190, %v2520
    %v2522 = vpop.f32.mrb[0].mxu0
    %v2523 = vadd.f32 %v2194, %v2522
    %2524 = vmatprep.mubr.bf16.mxu0 0
    %2525 = vmatmul.mubr.bf16.gmra.mrb[0].mxu0 %v2140
    %v2526 = vpop.f32.mrb[0].mxu0
    %v2527 = vadd.f32 %v2190, %v2526
    %v2528 = vpop.f32.mrb[0].mxu0
    %v2529 = vadd.f32 %v2194, %v2528
    %v2530 = vpop.f32.mrb[0].mxu0
    %v2531 = vadd.f32 %v2190, %v2530
    %v2532 = vpop.f32.mrb[0].mxu0
    %v2533 = vadd.f32 %v2194, %v2532
    %2534 = vmatprep.mubr.bf16.mxu0 0
    %2535 = vmatmul.mubr.bf16.gmra.mrb[0].mxu0 %v2141
    %v2536 = vpop.f32.mrb[0].mxu0
    %v2537 = vadd.f32 %v2190, %v2536
    %v2538 = vpop.f32.mrb[0].mxu0
    %v2539 = vadd.f32 %v2194, %v2538
    %v2540 = vpop.f32.mrb[0].mxu0
    %v2541 = vadd.f32 %v2190, %v2540
    %v2542 = vpop.f32.mrb[0].mxu0
    %v2543 = vadd.f32 %v2194, %v2542
    %2544 = vmatprep.mubr.bf16.mxu0 0
    %2545 = vmatmul.mubr.bf16.gmra.mrb[0].mxu0 %v2142
    %v2546 = vpop.f32.mrb[0].mxu0
    %v2547 = vadd.f32 %v2190, %v2546
    %v2548 = vpop.f32.mrb[0].mxu0
    %v2549 = vadd.f32 %v2194, %v2548
    %v2550 = vpop.f32.mrb[0].mxu0
    %v2551 = vadd.f32 %v2190, %v2550
    %v2552 = vpop.f32.mrb[0].mxu0
    %v2553 = vadd.f32 %v2194, %v2552
    %2554 = vmatprep.mubr.bf16.mxu0 0
    %2555 = vmatmul.mubr.bf16.gmra.mrb[0].mxu0 %v2143
    %v2556 = vpop.f32.mrb[0].mxu0
    %v2557 = vadd.f32 %v2190, %v2556
    %v2558 = vpop.f32.mrb[0].mxu0
    %v2559 = vadd.f32 %v2194, %v2558
    %v2560 = vpop.f32.mrb[0].mxu0
    %v2561 = vadd.f32 %v2190, %v2560
    %v2562 = vpop.f32.mrb[0].mxu0
    %v2563 = vadd.f32 %v2194, %v2562
    %2564 = vmatprep.mubr.bf16.mxu0 0
    %2565 = vmatmul.mubr.bf16.gmra.mrb[0].mxu0 %v2144
    %v2566 = vpop.f32.mrb[0].mxu0
    %v2567 = vadd.f32 %v2190, %v2566
    %v2568 = vpop.f32.mrb[0].mxu0
    %v2569 = vadd.f32 %v2194, %v2568
    %v2570 = vpop.f32.mrb[0].mxu0
    %v2571 = vadd.f32 %v2190, %v2570
    %v2572 = vpop.f32.mrb[0].mxu0
    %v2573 = vadd.f32 %v2194, %v2572
    %2574 = vmatprep.mubr.bf16.mxu0 0
    %2575 = vmatmul.mubr.bf16.gmra.mrb[0].mxu0 %v2145
    %v2576 = vpop.f32.mrb[0].mxu0
    %v2577 = vadd.f32 %v2190, %v2576
    %v2578 = vpop.f32.mrb[0].mxu0
    %v2579 = vadd.f32 %v2194, %v2578
    %v2580 = vpop.f32.mrb[0].mxu0
    %v2581 = vadd.f32 %v2190, %v2580
    %v2582 = vpop.f32.mrb[0].mxu0
    %v2583 = vadd.f32 %v2194, %v2582
    %2584 = vdwg.mxu0
    %2585 = vst [vmem:[#allocation3] sm:$0xff] %v2394
    %2586 = vst [vmem:[#allocation3 + $0x8] sm:$0xff] %v2396
    %2587 = vst [vmem:[#allocation3 + $0x10] sm:$0xff] %v2507
    %2588 = vst [vmem:[#allocation3 + $0x18] sm:$0xff] %v2509
    %2589 = vst [vmem:[#allocation3 + $0x20] sm:$0xff] %v2398
    %2590 = vst [vmem:[#allocation3 + $0x28] sm:$0xff] %v2400
    %2591 = vst [vmem:[#allocation3 + $0x30] sm:$0xff] %v2511
    %2592 = vst [vmem:[#allocation3 + $0x38] sm:$0xff] %v2513
    %2593 = vst [vmem:[#allocation3 + $0x40] sm:$0xff] %v2404
    %2594 = vst [vmem:[#allocation3 + $0x48] sm:$0xff] %v2406
    %2595 = vst [vmem:[#allocation3 + $0x50] sm:$0xff] %v2517
    %2596 = vst [vmem:[#allocation3 + $0x58] sm:$0xff] %v2519
    %2597 = vst [vmem:[#allocation3 + $0x60] sm:$0xff] %v2408
    %2598 = vst [vmem:[#allocation3 + $0x68] sm:$0xff] %v2410
    %2599 = vst [vmem:[#allocation3 + $0x70] sm:$0xff] %v2521
    %2600 = vst [vmem:[#allocation3 + $0x78] sm:$0xff] %v2523
    %2601 = vst [vmem:[#allocation3 + $0x80] sm:$0xff] %v2414
    %2602 = vst [vmem:[#allocation3 + $0x88] sm:$0xff] %v2416
    %2603 = vst [vmem:[#allocation3 + $0x90] sm:$0xff] %v2527
    %2604 = vst [vmem:[#allocation3 + $0x98] sm:$0xff] %v2529
    %2605 = vst [vmem:[#allocation3 + $0xa0] sm:$0xff] %v2418
    %2606 = vst [vmem:[#allocation3 + $0xa8] sm:$0xff] %v2420
    %2607 = vst [vmem:[#allocation3 + $0xb0] sm:$0xff] %v2531
    %2608 = vst [vmem:[#allocation3 + $0xb8] sm:$0xff] %v2533
    %2609 = vst [vmem:[#allocation3 + $0xc0] sm:$0xff] %v2424
    %2610 = vst [vmem:[#allocation3 + $0xc8] sm:$0xff] %v2426
    %2611 = vst [vmem:[#allocation3 + $0xd0] sm:$0xff] %v2537
    %2612 = vst [vmem:[#allocation3 + $0xd8] sm:$0xff] %v2539
    %2613 = vst [vmem:[#allocation3 + $0xe0] sm:$0xff] %v2428
    %2614 = vst [vmem:[#allocation3 + $0xe8] sm:$0xff] %v2430
    %2615 = vst [vmem:[#allocation3 + $0xf0] sm:$0xff] %v2541
    %2616 = vst [vmem:[#allocation3 + $0xf8] sm:$0xff] %v2543
    %2617 = vst [vmem:[#allocation3 + $0x100] sm:$0xff] %v2434
    %2618 = vst [vmem:[#allocation3 + $0x108] sm:$0xff] %v2436
    %2619 = vst [vmem:[#allocation3 + $0x110] sm:$0xff] %v2547
    %2620 = vst [vmem:[#allocation3 + $0x118] sm:$0xff] %v2549
    %2621 = vst [vmem:[#allocation3 + $0x120] sm:$0xff] %v2438
    %2622 = vst [vmem:[#allocation3 + $0x128] sm:$0xff] %v2440
    %2623 = vst [vmem:[#allocation3 + $0x130] sm:$0xff] %v2551
    %2624 = vst [vmem:[#allocation3 + $0x138] sm:$0xff] %v2553
    %2625 = vst [vmem:[#allocation3 + $0x140] sm:$0xff] %v2444
    %2626 = vst [vmem:[#allocation3 + $0x148] sm:$0xff] %v2446
    %2627 = vst [vmem:[#allocation3 + $0x150] sm:$0xff] %v2557
    %2628 = vst [vmem:[#allocation3 + $0x158] sm:$0xff] %v2559
    %2629 = vst [vmem:[#allocation3 + $0x160] sm:$0xff] %v2448
    %2630 = vst [vmem:[#allocation3 + $0x168] sm:$0xff] %v2450
    %2631 = vst [vmem:[#allocation3 + $0x170] sm:$0xff] %v2561
    %2632 = vst [vmem:[#allocation3 + $0x178] sm:$0xff] %v2563
    %2633 = vst [vmem:[#allocation3 + $0x180] sm:$0xff] %v2454
    %2634 = vst [vmem:[#allocation3 + $0x188] sm:$0xff] %v2456
    %2635 = vst [vmem:[#allocation3 + $0x190] sm:$0xff] %v2567
    %2636 = vst [vmem:[#allocation3 + $0x198] sm:$0xff] %v2569
    %2637 = vst [vmem:[#allocation3 + $0x1a0] sm:$0xff] %v2458
    %2638 = vst [vmem:[#allocation3 + $0x1a8] sm:$0xff] %v2460
    %2639 = vst [vmem:[#allocation3 + $0x1b0] sm:$0xff] %v2571
    %2640 = vst [vmem:[#allocation3 + $0x1b8] sm:$0xff] %v2573
    %2641 = vst [vmem:[#allocation3 + $0x1c0] sm:$0xff] %v2464
    %2642 = vst [vmem:[#allocation3 + $0x1c8] sm:$0xff] %v2466
    %2643 = vst [vmem:[#allocation3 + $0x1d0] sm:$0xff] %v2577
    %2644 = vst [vmem:[#allocation3 + $0x1d8] sm:$0xff] %v2579
    %2645 = vst [vmem:[#allocation3 + $0x1e0] sm:$0xff] %v2468
    %2646 = vst [vmem:[#allocation3 + $0x1e8] sm:$0xff] %v2470
    %2647 = vst [vmem:[#allocation3 + $0x1f0] sm:$0xff] %v2581
    %2648 = vst [vmem:[#allocation3 + $0x1f8] sm:$0xff] %v2583
    %v2649 = vld [vmem:[%s698] sm:$0xff]
    %v2650 = vld [vmem:[%s698 + $0x8] sm:$0xff]
    %v2651 = vld [vmem:[%s698 + $0x10] sm:$0xff]
    %v2652 = vld [vmem:[%s698 + $0x18] sm:$0xff]
    %v2653 = vld [vmem:[%s698 + $0x20] sm:$0xff]
    %v2654 = vld [vmem:[%s698 + $0x28] sm:$0xff]
    %v2655 = vld [vmem:[%s698 + $0x30] sm:$0xff]
    %v2656 = vld [vmem:[%s698 + $0x38] sm:$0xff]
    %v2689 = vunpack.c.l.b16 %v2104
    %v2690 = vunpack.c.h.b16 %v2104
    %v2691 = vunpack.c.l.b16 %v2105
    %v2692 = vunpack.c.h.b16 %v2105
    %v2693 = vunpack.c.l.b16 %v2106
    %v2694 = vunpack.c.h.b16 %v2106
    %v2695 = vunpack.c.l.b16 %v2107
    %v2696 = vunpack.c.h.b16 %v2107
    %v2697 = vunpack.c.l.b16 %v2108
    %v2698 = vunpack.c.h.b16 %v2108
    %v2699 = vunpack.c.l.b16 %v2109
    %v2700 = vunpack.c.h.b16 %v2109
    %v2701 = vunpack.c.l.b16 %v2110
    %v2702 = vunpack.c.h.b16 %v2110
    %v2703 = vunpack.c.l.b16 %v2111
    %v2704 = vunpack.c.h.b16 %v2111
    %v2705 = vunpack.c.l.b16 %v2112
    %v2706 = vunpack.c.h.b16 %v2112
    %v2707 = vunpack.c.l.b16 %v2113
    %v2708 = vunpack.c.h.b16 %v2113
    %v2709 = vunpack.c.l.b16 %v2114
    %v2710 = vunpack.c.h.b16 %v2114
    %v2711 = vunpack.c.l.b16 %v2115
    %v2712 = vunpack.c.h.b16 %v2115
    %v2713 = vunpack.c.l.b16 %v2116
    %v2714 = vunpack.c.h.b16 %v2116
    %v2715 = vunpack.c.l.b16 %v2117
    %v2716 = vunpack.c.h.b16 %v2117
    %v2717 = vunpack.c.l.b16 %v2118
    %v2718 = vunpack.c.h.b16 %v2118
    %v2719 = vunpack.c.l.b16 %v2119
    %v2720 = vunpack.c.h.b16 %v2119
    %v2721 = vunpack.c.l.b16 %v2120
    %v2722 = vunpack.c.h.b16 %v2120
    %v2723 = vunpack.c.l.b16 %v2121
    %v2724 = vunpack.c.h.b16 %v2121
    %v2725 = vunpack.c.l.b16 %v2122
    %v2726 = vunpack.c.h.b16 %v2122
    %v2727 = vunpack.c.l.b16 %v2123
    %v2728 = vunpack.c.h.b16 %v2123
    %v2729 = vunpack.c.l.b16 %v2124
    %v2730 = vunpack.c.h.b16 %v2124
    %v2731 = vunpack.c.l.b16 %v2125
    %v2732 = vunpack.c.h.b16 %v2125
    %v2733 = vunpack.c.l.b16 %v2126
    %v2734 = vunpack.c.h.b16 %v2126
    %v2735 = vunpack.c.l.b16 %v2127
    %v2736 = vunpack.c.h.b16 %v2127
    %v2737 = vunpack.c.l.b16 %v2128
    %v2738 = vunpack.c.h.b16 %v2128
    %v2739 = vunpack.c.l.b16 %v2129
    %v2740 = vunpack.c.h.b16 %v2129
    %v2741 = vunpack.c.l.b16 %v2130
    %v2742 = vunpack.c.h.b16 %v2130
    %v2743 = vunpack.c.l.b16 %v2131
    %v2744 = vunpack.c.h.b16 %v2131
    %v2745 = vunpack.c.l.b16 %v2132
    %v2746 = vunpack.c.h.b16 %v2132
    %v2747 = vunpack.c.l.b16 %v2133
    %v2748 = vunpack.c.h.b16 %v2133
    %v2749 = vunpack.c.l.b16 %v2134
    %v2750 = vunpack.c.h.b16 %v2134
    %v2751 = vunpack.c.l.b16 %v2135
    %v2752 = vunpack.c.h.b16 %v2135
    %v2753 = vpack.c.b16 %v2693, %v2689
    %v2754 = vpack.c.b16 %v2694, %v2690
    %v2755 = vpack.c.b16 %v2695, %v2691
    %v2756 = vpack.c.b16 %v2696, %v2692
    %v2757 = vpack.c.b16 %v2701, %v2697
    %v2758 = vpack.c.b16 %v2702, %v2698
    %v2759 = vpack.c.b16 %v2703, %v2699
    %v2760 = vpack.c.b16 %v2704, %v2700
    %v2761 = vpack.c.b16 %v2709, %v2705
    %v2762 = vpack.c.b16 %v2710, %v2706
    %v2763 = vpack.c.b16 %v2711, %v2707
    %v2764 = vpack.c.b16 %v2712, %v2708
    %v2765 = vpack.c.b16 %v2717, %v2713
    %v2766 = vpack.c.b16 %v2718, %v2714
    %v2767 = vpack.c.b16 %v2719, %v2715
    %v2768 = vpack.c.b16 %v2720, %v2716
    %v2769 = vpack.c.b16 %v2725, %v2721
    %v2770 = vpack.c.b16 %v2726, %v2722
    %v2771 = vpack.c.b16 %v2727, %v2723
    %v2772 = vpack.c.b16 %v2728, %v2724
    %v2773 = vpack.c.b16 %v2733, %v2729
    %v2774 = vpack.c.b16 %v2734, %v2730
    %v2775 = vpack.c.b16 %v2735, %v2731
    %v2776 = vpack.c.b16 %v2736, %v2732
    %v2777 = vpack.c.b16 %v2741, %v2737
    %v2778 = vpack.c.b16 %v2742, %v2738
    %v2779 = vpack.c.b16 %v2743, %v2739
    %v2780 = vpack.c.b16 %v2744, %v2740
    %v2781 = vpack.c.b16 %v2749, %v2745
    %v2782 = vpack.c.b16 %v2750, %v2746
    %v2783 = vpack.c.b16 %v2751, %v2747
    %v2784 = vpack.c.b16 %v2752, %v2748
    %2817 = vmatprep.subr.bf16.mxu0 %v2754
    %2818 = vmatpush1.bf16.msra.mxu0 %v2753
    %2819 = vmatprep.subr.bf16.mxu0 %v2758
    %2820 = vmatpush1.bf16.msra.mxu0 %v2757
    %2821 = vmatprep.subr.bf16.mxu0 %v2762
    %2822 = vmatpush1.bf16.msra.mxu0 %v2761
    %2823 = vmatprep.subr.bf16.mxu0 %v2766
    %2824 = vmatpush1.bf16.msra.mxu0 %v2765
    %2825 = vmatprep.subr.bf16.mxu0 %v2770
    %2826 = vmatpush1.bf16.msra.mxu0 %v2769
    %2827 = vmatprep.subr.bf16.mxu0 %v2774
    %2828 = vmatpush1.bf16.msra.mxu0 %v2773
    %2829 = vmatprep.subr.bf16.mxu0 %v2778
    %2830 = vmatpush1.bf16.msra.mxu0 %v2777
    %2831 = vmatprep.subr.bf16.mxu0 %v2782
    %2832 = vmatpush1.bf16.msra.mxu0 %v2781
    %2833 = vmatprep.subr.bf16.mxu0 0
    %2834 = vmatpush1.bf16.msra.mxu0 0
    %2835 = vmatprep.subr.bf16.mxu0 0
    %2836 = vmatpush1.bf16.msra.mxu0 0
    %2837 = vmatprep.subr.bf16.mxu0 0
    %2838 = vmatpush1.bf16.msra.mxu0 0
    %2839 = vmatprep.subr.bf16.mxu0 0
    %2840 = vmatpush1.bf16.msra.mxu0 0
    %2841 = vmatprep.subr.bf16.mxu0 0
    %2842 = vmatpush1.bf16.msra.mxu0 0
    %2843 = vmatprep.subr.bf16.mxu0 0
    %2844 = vmatpush1.bf16.msra.mxu0 0
    %2845 = vmatprep.subr.bf16.mxu0 0
    %2846 = vmatpush1.bf16.msra.mxu0 0
    %2847 = vmatprep.subr.bf16.mxu0 0
    %2848 = vmatpush1.bf16.msra.mxu0 0
    %2849 = vmatprep.mubr.bf16.mxu0 0
    %2850 = vmatmul.mubr.bf16.gmra.mrb[0].mxu0 0
    %v2851 = vpop.f32.mrb[0].mxu0
    %v2852 = vadd.f32 0.0, %v2851
    %v2853 = vpop.f32.mrb[0].mxu0
    %v2854 = vadd.f32 0.0, %v2853
    %v2855 = vpop.f32.mrb[0].mxu0
    %v2856 = vadd.f32 0.0, %v2855
    %v2857 = vpop.f32.mrb[0].mxu0
    %v2858 = vadd.f32 0.0, %v2857
    %2859 = vdwg.mxu0
    %2860 = vmatprep.subr.bf16.mxu0 %v2756
    %2861 = vmatpush1.bf16.msra.mxu0 %v2755
    %2862 = vmatprep.subr.bf16.mxu0 %v2760
    %2863 = vmatpush1.bf16.msra.mxu0 %v2759
    %2864 = vmatprep.subr.bf16.mxu0 %v2764
    %2865 = vmatpush1.bf16.msra.mxu0 %v2763
    %2866 = vmatprep.subr.bf16.mxu0 %v2768
    %2867 = vmatpush1.bf16.msra.mxu0 %v2767
    %2868 = vmatprep.subr.bf16.mxu0 %v2772
    %2869 = vmatpush1.bf16.msra.mxu0 %v2771
    %2870 = vmatprep.subr.bf16.mxu0 %v2776
    %2871 = vmatpush1.bf16.msra.mxu0 %v2775
    %2872 = vmatprep.subr.bf16.mxu0 %v2780
    %2873 = vmatpush1.bf16.msra.mxu0 %v2779
    %2874 = vmatprep.subr.bf16.mxu0 %v2784
    %2875 = vmatpush1.bf16.msra.mxu0 %v2783
    %2876 = vmatprep.subr.bf16.mxu0 0
    %2877 = vmatpush1.bf16.msra.mxu0 0
    %2878 = vmatprep.subr.bf16.mxu0 0
    %2879 = vmatpush1.bf16.msra.mxu0 0
    %2880 = vmatprep.subr.bf16.mxu0 0
    %2881 = vmatpush1.bf16.msra.mxu0 0
    %2882 = vmatprep.subr.bf16.mxu0 0
    %2883 = vmatpush1.bf16.msra.mxu0 0
    %2884 = vmatprep.subr.bf16.mxu0 0
    %2885 = vmatpush1.bf16.msra.mxu0 0
    %2886 = vmatprep.subr.bf16.mxu0 0
    %2887 = vmatpush1.bf16.msra.mxu0 0
    %2888 = vmatprep.subr.bf16.mxu0 0
    %2889 = vmatpush1.bf16.msra.mxu0 0
    %2890 = vmatprep.subr.bf16.mxu0 0
    %2891 = vmatpush1.bf16.msra.mxu0 0
    %2892 = vmatprep.mubr.bf16.mxu0 0
    %2893 = vmatmul.mubr.bf16.gmra.mrb[0].mxu0 0
    %v2894 = vpop.f32.mrb[0].mxu0
    %v2895 = vadd.f32 0.0, %v2894
    %v2896 = vpop.f32.mrb[0].mxu0
    %v2897 = vadd.f32 0.0, %v2896
    %v2898 = vpop.f32.mrb[0].mxu0
    %v2899 = vadd.f32 0.0, %v2898
    %v2900 = vpop.f32.mrb[0].mxu0
    %v2901 = vadd.f32 0.0, %v2900
    %2902 = vdwg.mxu0
    %v2903 = vadd.f32 %v2649, %v2852
    %v2904 = vadd.f32 %v2650, %v2854
    %v2905 = vadd.f32 %v2651, %v2895
    %v2906 = vadd.f32 %v2652, %v2897
    %v2907 = vadd.f32 %v2653, %v2856
    %v2908 = vadd.f32 %v2654, %v2858
    %v2909 = vadd.f32 %v2655, %v2899
    %v2910 = vadd.f32 %v2656, %v2901
    %v2911 = vxor.u32 %v2903, 2147483648
    %v2912 = vxor.u32 %v2904, 2147483648
    %v2913 = vxor.u32 %v2905, 2147483648
    %v2914 = vxor.u32 %v2907, 2147483648
    %v2915 = vxor.u32 %v2908, 2147483648
    %v2916 = vxor.u32 %v2909, 2147483648
    %v2917 = vmul.f32 %v2911, 1.442695
    %v2918 = vpow.pop %v2917
    %v2919 = vmul.f32 %v2912, 1.442695
    %v2920 = vpow.pop %v2919
    %v2921 = vmul.f32 %v2913, 1.442695
    %v2922 = vpow.pop %v2921
    %v2923 = vmul.f32 %v2914, 1.442695
    %v2924 = vpow.pop %v2923
    %v2925 = vmul.f32 %v2915, 1.442695
    %v2926 = vpow.pop %v2925
    %v2927 = vmul.f32 %v2916, 1.442695
    %v2928 = vpow.pop %v2927
    %v2929 = vadd.f32 %v2918, 1.0
    %v2930 = vadd.f32 %v2920, 1.0
    %v2931 = vadd.f32 %v2922, 1.0
    %v2932 = vadd.f32 %v2924, 1.0
    %v2933 = vadd.f32 %v2926, 1.0
    %v2934 = vadd.f32 %v2928, 1.0
    %v2935 = vrcp.pop %v2929
    %v2936 = vmul.f32 1.0, %v2935
    %v2937 = vrcp.pop %v2930
    %v2938 = vmul.f32 1.0, %v2937
    %v2939 = vrcp.pop %v2931
    %v2940 = vmul.f32 1.0, %v2939
    %v2941 = vrcp.pop %v2932
    %v2942 = vmul.f32 1.0, %v2941
    %v2943 = vrcp.pop %v2933
    %v2944 = vmul.f32 1.0, %v2943
    %v2945 = vrcp.pop %v2934
    %v2946 = vmul.f32 1.0, %v2945
    %v2947 = vtanh.pop %v2906
    %v2948 = vtanh.pop %v2910
    %v2949 = vmul.f32 %v2938, 0.0
    %v2950 = vmul.f32 %v2944, 0.0
    %v2951 = vmul.f32 %v2936, %v2947
    %v2952 = vmul.f32 %v2942, %v2948
    %v2953 = vadd.f32 %v2949, %v2951
    %v2954 = vadd.f32 %v2950, %v2952
    %v2955 = vtanh.pop %v2953
    %v2956 = vtanh.pop %v2954
    %v2957 = vmul.f32 %v2940, %v2955
    %v2958 = vmul.f32 %v2946, %v2956
    %v2959 = vpack.c.bf16 %v2958, %v2957
    %2960 = vst [vmem:[#allocation2] sm:$0xff] %v2959
    %v2961 = vld [vmem:[%s1013] sm:$0xff]
    %v2962 = vld [vmem:[%s1013 + $0x8] sm:$0xff]
    %v2963 = vld [vmem:[%s1013 + $0x10] sm:$0xff]
    %v2964 = vld [vmem:[%s1013 + $0x18] sm:$0xff]
    %v2965 = vld [vmem:[%s1013 + $0x20] sm:$0xff]
    %v2966 = vld [vmem:[%s1013 + $0x28] sm:$0xff]
    %v2967 = vld [vmem:[%s1013 + $0x30] sm:$0xff]
    %v2968 = vld [vmem:[%s1013 + $0x38] sm:$0xff]
    %2969 = vmatprep.subr.bf16.mxu0 %v2754
    %2970 = vmatpush1.bf16.msra.mxu0 %v2753
    %2971 = vmatprep.subr.bf16.mxu0 %v2758
    %2972 = vmatpush1.bf16.msra.mxu0 %v2757
    %2973 = vmatprep.subr.bf16.mxu0 %v2762
    %2974 = vmatpush1.bf16.msra.mxu0 %v2761
    %2975 = vmatprep.subr.bf16.mxu0 %v2766
    %2976 = vmatpush1.bf16.msra.mxu0 %v2765
    %2977 = vmatprep.subr.bf16.mxu0 %v2770
    %2978 = vmatpush1.bf16.msra.mxu0 %v2769
    %2979 = vmatprep.subr.bf16.mxu0 %v2774
    %2980 = vmatpush1.bf16.msra.mxu0 %v2773
    %2981 = vmatprep.subr.bf16.mxu0 %v2778
    %2982 = vmatpush1.bf16.msra.mxu0 %v2777
    %2983 = vmatprep.subr.bf16.mxu0 %v2782
    %2984 = vmatpush1.bf16.msra.mxu0 %v2781
    %2985 = vmatprep.subr.bf16.mxu0 0
    %2986 = vmatpush1.bf16.msra.mxu0 0
    %2987 = vmatprep.subr.bf16.mxu0 0
    %2988 = vmatpush1.bf16.msra.mxu0 0
    %2989 = vmatprep.subr.bf16.mxu0 0
    %2990 = vmatpush1.bf16.msra.mxu0 0
    %2991 = vmatprep.subr.bf16.mxu0 0
    %2992 = vmatpush1.bf16.msra.mxu0 0
    %2993 = vmatprep.subr.bf16.mxu0 0
    %2994 = vmatpush1.bf16.msra.mxu0 0
    %2995 = vmatprep.subr.bf16.mxu0 0
    %2996 = vmatpush1.bf16.msra.mxu0 0
    %2997 = vmatprep.subr.bf16.mxu0 0
    %2998 = vmatpush1.bf16.msra.mxu0 0
    %2999 = vmatprep.subr.bf16.mxu0 0
    %3000 = vmatpush1.bf16.msra.mxu0 0
    %3001 = vmatprep.mubr.bf16.mxu0 0
    %3002 = vmatmul.mubr.bf16.gmra.mrb[0].mxu0 %v2959
    %v3003 = vpop.f32.mrb[0].mxu0
    %v3004 = vadd.f32 0.0, %v3003
    %v3005 = vpop.f32.mrb[0].mxu0
    %v3006 = vadd.f32 0.0, %v3005
    %v3007 = vpop.f32.mrb[0].mxu0
    %v3008 = vadd.f32 0.0, %v3007
    %v3009 = vpop.f32.mrb[0].mxu0
    %v3010 = vadd.f32 0.0, %v3009
    %3011 = vdwg.mxu0
    %3012 = vmatprep.subr.bf16.mxu0 %v2756
    %3013 = vmatpush1.bf16.msra.mxu0 %v2755
    %3014 = vmatprep.subr.bf16.mxu0 %v2760
    %3015 = vmatpush1.bf16.msra.mxu0 %v2759
    %3016 = vmatprep.subr.bf16.mxu0 %v2764
    %3017 = vmatpush1.bf16.msra.mxu0 %v2763
    %3018 = vmatprep.subr.bf16.mxu0 %v2768
    %3019 = vmatpush1.bf16.msra.mxu0 %v2767
    %3020 = vmatprep.subr.bf16.mxu0 %v2772
    %3021 = vmatpush1.bf16.msra.mxu0 %v2771
    %3022 = vmatprep.subr.bf16.mxu0 %v2776
    %3023 = vmatpush1.bf16.msra.mxu0 %v2775
    %3024 = vmatprep.subr.bf16.mxu0 %v2780
    %3025 = vmatpush1.bf16.msra.mxu0 %v2779
    %3026 = vmatprep.subr.bf16.mxu0 %v2784
    %3027 = vmatpush1.bf16.msra.mxu0 %v2783
    %3028 = vmatprep.subr.bf16.mxu0 0
    %3029 = vmatpush1.bf16.msra.mxu0 0
    %3030 = vmatprep.subr.bf16.mxu0 0
    %3031 = vmatpush1.bf16.msra.mxu0 0
    %3032 = vmatprep.subr.bf16.mxu0 0
    %3033 = vmatpush1.bf16.msra.mxu0 0
    %3034 = vmatprep.subr.bf16.mxu0 0
    %3035 = vmatpush1.bf16.msra.mxu0 0
    %3036 = vmatprep.subr.bf16.mxu0 0
    %3037 = vmatpush1.bf16.msra.mxu0 0
    %3038 = vmatprep.subr.bf16.mxu0 0
    %3039 = vmatpush1.bf16.msra.mxu0 0
    %3040 = vmatprep.subr.bf16.mxu0 0
    %3041 = vmatpush1.bf16.msra.mxu0 0
    %3042 = vmatprep.subr.bf16.mxu0 0
    %3043 = vmatpush1.bf16.msra.mxu0 0
    %3044 = vmatprep.mubr.bf16.mxu0 0
    %3045 = vmatmul.mubr.bf16.gmra.mrb[0].mxu0 %v2959
    %v3046 = vpop.f32.mrb[0].mxu0
    %v3047 = vadd.f32 0.0, %v3046
    %v3048 = vpop.f32.mrb[0].mxu0
    %v3049 = vadd.f32 0.0, %v3048
    %v3050 = vpop.f32.mrb[0].mxu0
    %v3051 = vadd.f32 0.0, %v3050
    %v3052 = vpop.f32.mrb[0].mxu0
    %v3053 = vadd.f32 0.0, %v3052
    %3054 = vdwg.mxu0
    %v3055 = vadd.f32 %v2961, %v3004
    %v3056 = vadd.f32 %v2962, %v3006
    %v3057 = vadd.f32 %v2963, %v3047
    %v3058 = vadd.f32 %v2964, %v3049
    %v3059 = vadd.f32 %v2965, %v3008
    %v3060 = vadd.f32 %v2966, %v3010
    %v3061 = vadd.f32 %v2967, %v3051
    %v3062 = vadd.f32 %v2968, %v3053
    %v3063 = vxor.u32 %v3055, 2147483648
    %v3064 = vxor.u32 %v3056, 2147483648
    %v3065 = vxor.u32 %v3057, 2147483648
    %v3066 = vxor.u32 %v3059, 2147483648
    %v3067 = vxor.u32 %v3060, 2147483648
    %v3068 = vxor.u32 %v3061, 2147483648
    %v3069 = vmul.f32 %v3063, 1.442695
    %v3070 = vpow.pop %v3069
    %v3071 = vmul.f32 %v3064, 1.442695
    %v3072 = vpow.pop %v3071
    %v3073 = vmul.f32 %v3065, 1.442695
    %v3074 = vpow.pop %v3073
    %v3075 = vmul.f32 %v3066, 1.442695
    %v3076 = vpow.pop %v3075
    %v3077 = vmul.f32 %v3067, 1.442695
    %v3078 = vpow.pop %v3077
    %v3079 = vmul.f32 %v3068, 1.442695
    %v3080 = vpow.pop %v3079
    %v3081 = vadd.f32 %v3070, 1.0
    %v3082 = vadd.f32 %v3072, 1.0
    %v3083 = vadd.f32 %v3074, 1.0
    %v3084 = vadd.f32 %v3076, 1.0
    %v3085 = vadd.f32 %v3078, 1.0
    %v3086 = vadd.f32 %v3080, 1.0
    %v3087 = vrcp.pop %v3081
    %v3088 = vmul.f32 1.0, %v3087
    %v3089 = vrcp.pop %v3082
    %v3090 = vmul.f32 1.0, %v3089
    %v3091 = vrcp.pop %v3083
    %v3092 = vmul.f32 1.0, %v3091
    %v3093 = vrcp.pop %v3084
    %v3094 = vmul.f32 1.0, %v3093
    %v3095 = vrcp.pop %v3085
    %v3096 = vmul.f32 1.0, %v3095
    %v3097 = vrcp.pop %v3086
    %v3098 = vmul.f32 1.0, %v3097
    %v3099 = vtanh.pop %v3058
    %v3100 = vtanh.pop %v3062
    %v3101 = vmul.f32 %v3090, %v2953
    %v3102 = vmul.f32 %v3096, %v2954
    %v3103 = vmul.f32 %v3088, %v3099
    %v3104 = vmul.f32 %v3094, %v3100
    %v3105 = vadd.f32 %v3101, %v3103
    %v3106 = vadd.f32 %v3102, %v3104
    %v3107 = vtanh.pop %v3105
    %v3108 = vtanh.pop %v3106
    %v3109 = vmul.f32 %v3092, %v3107
    %v3110 = vmul.f32 %v3098, %v3108
    %v3111 = vpack.c.bf16 %v3110, %v3109
    %3112 = vst [vmem:[%s1165] sm:$0xff] %v3111
    %v3113 = vld [vmem:[%s1169] sm:$0xff]
    %v3114 = vld [vmem:[%s1169 + $0x8] sm:$0xff]
    %v3115 = vld [vmem:[%s1169 + $0x10] sm:$0xff]
    %v3116 = vld [vmem:[%s1169 + $0x18] sm:$0xff]
    %v3117 = vld [vmem:[%s1169 + $0x20] sm:$0xff]
    %v3118 = vld [vmem:[%s1169 + $0x28] sm:$0xff]
    %v3119 = vld [vmem:[%s1169 + $0x30] sm:$0xff]
    %v3120 = vld [vmem:[%s1169 + $0x38] sm:$0xff]
    %3121 = vmatprep.subr.bf16.mxu0 %v2754
    %3122 = vmatpush1.bf16.msra.mxu0 %v2753
    %3123 = vmatprep.subr.bf16.mxu0 %v2758
    %3124 = vmatpush1.bf16.msra.mxu0 %v2757
    %3125 = vmatprep.subr.bf16.mxu0 %v2762
    %3126 = vmatpush1.bf16.msra.mxu0 %v2761
    %3127 = vmatprep.subr.bf16.mxu0 %v2766
    %3128 = vmatpush1.bf16.msra.mxu0 %v2765
    %3129 = vmatprep.subr.bf16.mxu0 %v2770
    %3130 = vmatpush1.bf16.msra.mxu0 %v2769
    %3131 = vmatprep.subr.bf16.mxu0 %v2774
    %3132 = vmatpush1.bf16.msra.mxu0 %v2773
    %3133 = vmatprep.subr.bf16.mxu0 %v2778
    %3134 = vmatpush1.bf16.msra.mxu0 %v2777
    %3135 = vmatprep.subr.bf16.mxu0 %v2782
    %3136 = vmatpush1.bf16.msra.mxu0 %v2781
    %3137 = vmatprep.subr.bf16.mxu0 0
    %3138 = vmatpush1.bf16.msra.mxu0 0
    %3139 = vmatprep.subr.bf16.mxu0 0
    %3140 = vmatpush1.bf16.msra.mxu0 0
    %3141 = vmatprep.subr.bf16.mxu0 0
    %3142 = vmatpush1.bf16.msra.mxu0 0
    %3143 = vmatprep.subr.bf16.mxu0 0
    %3144 = vmatpush1.bf16.msra.mxu0 0
    %3145 = vmatprep.subr.bf16.mxu0 0
    %3146 = vmatpush1.bf16.msra.mxu0 0
    %3147 = vmatprep.subr.bf16.mxu0 0
    %3148 = vmatpush1.bf16.msra.mxu0 0
    %3149 = vmatprep.subr.bf16.mxu0 0
    %3150 = vmatpush1.bf16.msra.mxu0 0
    %3151 = vmatprep.subr.bf16.mxu0 0
    %3152 = vmatpush1.bf16.msra.mxu0 0
    %3153 = vmatprep.mubr.bf16.mxu0 0
    %3154 = vmatmul.mubr.bf16.gmra.mrb[0].mxu0 %v3111
    %v3155 = vpop.f32.mrb[0].mxu0
    %v3156 = vadd.f32 0.0, %v3155
    %v3157 = vpop.f32.mrb[0].mxu0
    %v3158 = vadd.f32 0.0, %v3157
    %v3159 = vpop.f32.mrb[0].mxu0
    %v3160 = vadd.f32 0.0, %v3159
    %v3161 = vpop.f32.mrb[0].mxu0
    %v3162 = vadd.f32 0.0, %v3161
    %3163 = vdwg.mxu0
    %3164 = vmatprep.subr.bf16.mxu0 %v2756
    %3165 = vmatpush1.bf16.msra.mxu0 %v2755
    %3166 = vmatprep.subr.bf16.mxu0 %v2760
    %3167 = vmatpush1.bf16.msra.mxu0 %v2759
    %3168 = vmatprep.subr.bf16.mxu0 %v2764
    %3169 = vmatpush1.bf16.msra.mxu0 %v2763
    %3170 = vmatprep.subr.bf16.mxu0 %v2768
    %3171 = vmatpush1.bf16.msra.mxu0 %v2767
    %3172 = vmatprep.subr.bf16.mxu0 %v2772
    %3173 = vmatpush1.bf16.msra.mxu0 %v2771
    %3174 = vmatprep.subr.bf16.mxu0 %v2776
    %3175 = vmatpush1.bf16.msra.mxu0 %v2775
    %3176 = vmatprep.subr.bf16.mxu0 %v2780
    %3177 = vmatpush1.bf16.msra.mxu0 %v2779
    %3178 = vmatprep.subr.bf16.mxu0 %v2784
    %3179 = vmatpush1.bf16.msra.mxu0 %v2783
    %3180 = vmatprep.subr.bf16.mxu0 0
    %3181 = vmatpush1.bf16.msra.mxu0 0
    %3182 = vmatprep.subr.bf16.mxu0 0
    %3183 = vmatpush1.bf16.msra.mxu0 0
    %3184 = vmatprep.subr.bf16.mxu0 0
    %3185 = vmatpush1.bf16.msra.mxu0 0
    %3186 = vmatprep.subr.bf16.mxu0 0
    %3187 = vmatpush1.bf16.msra.mxu0 0
    %3188 = vmatprep.subr.bf16.mxu0 0
    %3189 = vmatpush1.bf16.msra.mxu0 0
    %3190 = vmatprep.subr.bf16.mxu0 0
    %3191 = vmatpush1.bf16.msra.mxu0 0
    %3192 = vmatprep.subr.bf16.mxu0 0
    %3193 = vmatpush1.bf16.msra.mxu0 0
    %3194 = vmatprep.subr.bf16.mxu0 0
    %3195 = vmatpush1.bf16.msra.mxu0 0
    %3196 = vmatprep.mubr.bf16.mxu0 0
    %3197 = vmatmul.mubr.bf16.gmra.mrb[0].mxu0 %v3111
    %v3198 = vpop.f32.mrb[0].mxu0
    %v3199 = vadd.f32 0.0, %v3198
    %v3200 = vpop.f32.mrb[0].mxu0
    %v3201 = vadd.f32 0.0, %v3200
    %v3202 = vpop.f32.mrb[0].mxu0
    %v3203 = vadd.f32 0.0, %v3202
    %v3204 = vpop.f32.mrb[0].mxu0
    %v3205 = vadd.f32 0.0, %v3204
    %3206 = vdwg.mxu0
    %v3207 = vadd.f32 %v3113, %v3156
    %v3208 = vadd.f32 %v3114, %v3158
    %v3209 = vadd.f32 %v3115, %v3199
    %v3210 = vadd.f32 %v3116, %v3201
    %v3211 = vadd.f32 %v3117, %v3160
    %v3212 = vadd.f32 %v3118, %v3162
    %v3213 = vadd.f32 %v3119, %v3203
    %v3214 = vadd.f32 %v3120, %v3205
    %v3215 = vxor.u32 %v3207, 2147483648
    %v3216 = vxor.u32 %v3208, 2147483648
    %v3217 = vxor.u32 %v3209, 2147483648
    %v3218 = vxor.u32 %v3211, 2147483648
    %v3219 = vxor.u32 %v3212, 2147483648
    %v3220 = vxor.u32 %v3213, 2147483648
    %v3221 = vmul.f32 %v3215, 1.442695
    %v3222 = vpow.pop %v3221
    %v3223 = vmul.f32 %v3216, 1.442695
    %v3224 = vpow.pop %v3223
    %v3225 = vmul.f32 %v3217, 1.442695
    %v3226 = vpow.pop %v3225
    %v3227 = vmul.f32 %v3218, 1.442695
    %v3228 = vpow.pop %v3227
    %v3229 = vmul.f32 %v3219, 1.442695
    %v3230 = vpow.pop %v3229
    %v3231 = vmul.f32 %v3220, 1.442695
    %v3232 = vpow.pop %v3231
    %v3233 = vadd.f32 %v3222, 1.0
    %v3234 = vadd.f32 %v3224, 1.0
    %v3235 = vadd.f32 %v3226, 1.0
    %v3236 = vadd.f32 %v3228, 1.0
    %v3237 = vadd.f32 %v3230, 1.0
    %v3238 = vadd.f32 %v3232, 1.0
    %v3239 = vrcp.pop %v3233
    %v3240 = vmul.f32 1.0, %v3239
    %v3241 = vrcp.pop %v3234
    %v3242 = vmul.f32 1.0, %v3241
    %v3243 = vrcp.pop %v3235
    %v3244 = vmul.f32 1.0, %v3243
    %v3245 = vrcp.pop %v3236
    %v3246 = vmul.f32 1.0, %v3245
    %v3247 = vrcp.pop %v3237
    %v3248 = vmul.f32 1.0, %v3247
    %v3249 = vrcp.pop %v3238
    %v3250 = vmul.f32 1.0, %v3249
    %v3251 = vtanh.pop %v3210
    %v3252 = vtanh.pop %v3214
    %v3253 = vmul.f32 %v3242, %v3105
    %v3254 = vmul.f32 %v3248, %v3106
    %v3255 = vmul.f32 %v3240, %v3251
    %v3256 = vmul.f32 %v3246, %v3252
    %v3257 = vadd.f32 %v3253, %v3255
    %v3258 = vadd.f32 %v3254, %v3256
    %v3259 = vtanh.pop %v3257
    %v3260 = vtanh.pop %v3258
    %v3261 = vmul.f32 %v3244, %v3259
    %v3262 = vmul.f32 %v3250, %v3260
    %v3263 = vpack.c.bf16 %v3262, %v3261
    %3264 = vst [vmem:[%s1321] sm:$0xff] %v3263
    %v3265 = vld [vmem:[%s1325] sm:$0xff]
    %v3266 = vld [vmem:[%s1325 + $0x8] sm:$0xff]
    %v3267 = vld [vmem:[%s1325 + $0x10] sm:$0xff]
    %v3268 = vld [vmem:[%s1325 + $0x18] sm:$0xff]
    %v3269 = vld [vmem:[%s1325 + $0x20] sm:$0xff]
    %v3270 = vld [vmem:[%s1325 + $0x28] sm:$0xff]
    %v3271 = vld [vmem:[%s1325 + $0x30] sm:$0xff]
    %v3272 = vld [vmem:[%s1325 + $0x38] sm:$0xff]
    %3273 = vmatprep.subr.bf16.mxu0 %v2754
    %3274 = vmatpush1.bf16.msra.mxu0 %v2753
    %3275 = vmatprep.subr.bf16.mxu0 %v2758
    %3276 = vmatpush1.bf16.msra.mxu0 %v2757
    %3277 = vmatprep.subr.bf16.mxu0 %v2762
    %3278 = vmatpush1.bf16.msra.mxu0 %v2761
    %3279 = vmatprep.subr.bf16.mxu0 %v2766
    %3280 = vmatpush1.bf16.msra.mxu0 %v2765
    %3281 = vmatprep.subr.bf16.mxu0 %v2770
    %3282 = vmatpush1.bf16.msra.mxu0 %v2769
    %3283 = vmatprep.subr.bf16.mxu0 %v2774
    %3284 = vmatpush1.bf16.msra.mxu0 %v2773
    %3285 = vmatprep.subr.bf16.mxu0 %v2778
    %3286 = vmatpush1.bf16.msra.mxu0 %v2777
    %3287 = vmatprep.subr.bf16.mxu0 %v2782
    %3288 = vmatpush1.bf16.msra.mxu0 %v2781
    %3289 = vmatprep.subr.bf16.mxu0 0
    %3290 = vmatpush1.bf16.msra.mxu0 0
    %3291 = vmatprep.subr.bf16.mxu0 0
    %3292 = vmatpush1.bf16.msra.mxu0 0
    %3293 = vmatprep.subr.bf16.mxu0 0
    %3294 = vmatpush1.bf16.msra.mxu0 0
    %3295 = vmatprep.subr.bf16.mxu0 0
    %3296 = vmatpush1.bf16.msra.mxu0 0
    %3297 = vmatprep.subr.bf16.mxu0 0
    %3298 = vmatpush1.bf16.msra.mxu0 0
    %3299 = vmatprep.subr.bf16.mxu0 0
    %3300 = vmatpush1.bf16.msra.mxu0 0
    %3301 = vmatprep.subr.bf16.mxu0 0
    %3302 = vmatpush1.bf16.msra.mxu0 0
    %3303 = vmatprep.subr.bf16.mxu0 0
    %3304 = vmatpush1.bf16.msra.mxu0 0
    %3305 = vmatprep.mubr.bf16.mxu0 0
    %3306 = vmatmul.mubr.bf16.gmra.mrb[0].mxu0 %v3263
    %v3307 = vpop.f32.mrb[0].mxu0
    %v3308 = vadd.f32 0.0, %v3307
    %v3309 = vpop.f32.mrb[0].mxu0
    %v3310 = vadd.f32 0.0, %v3309
    %v3311 = vpop.f32.mrb[0].mxu0
    %v3312 = vadd.f32 0.0, %v3311
    %v3313 = vpop.f32.mrb[0].mxu0
    %v3314 = vadd.f32 0.0, %v3313
    %3315 = vdwg.mxu0
    %3316 = vmatprep.subr.bf16.mxu0 %v2756
    %3317 = vmatpush1.bf16.msra.mxu0 %v2755
    %3318 = vmatprep.subr.bf16.mxu0 %v2760
    %3319 = vmatpush1.bf16.msra.mxu0 %v2759
    %3320 = vmatprep.subr.bf16.mxu0 %v2764
    %3321 = vmatpush1.bf16.msra.mxu0 %v2763
    %3322 = vmatprep.subr.bf16.mxu0 %v2768
    %3323 = vmatpush1.bf16.msra.mxu0 %v2767
    %3324 = vmatprep.subr.bf16.mxu0 %v2772
    %3325 = vmatpush1.bf16.msra.mxu0 %v2771
    %3326 = vmatprep.subr.bf16.mxu0 %v2776
    %3327 = vmatpush1.bf16.msra.mxu0 %v2775
    %3328 = vmatprep.subr.bf16.mxu0 %v2780
    %3329 = vmatpush1.bf16.msra.mxu0 %v2779
    %3330 = vmatprep.subr.bf16.mxu0 %v2784
    %3331 = vmatpush1.bf16.msra.mxu0 %v2783
    %3332 = vmatprep.subr.bf16.mxu0 0
    %3333 = vmatpush1.bf16.msra.mxu0 0
    %3334 = vmatprep.subr.bf16.mxu0 0
    %3335 = vmatpush1.bf16.msra.mxu0 0
    %3336 = vmatprep.subr.bf16.mxu0 0
    %3337 = vmatpush1.bf16.msra.mxu0 0
    %3338 = vmatprep.subr.bf16.mxu0 0
    %3339 = vmatpush1.bf16.msra.mxu0 0
    %3340 = vmatprep.subr.bf16.mxu0 0
    %3341 = vmatpush1.bf16.msra.mxu0 0
    %3342 = vmatprep.subr.bf16.mxu0 0
    %3343 = vmatpush1.bf16.msra.mxu0 0
    %3344 = vmatprep.subr.bf16.mxu0 0
    %3345 = vmatpush1.bf16.msra.mxu0 0
    %3346 = vmatprep.subr.bf16.mxu0 0
    %3347 = vmatpush1.bf16.msra.mxu0 0
    %3348 = vmatprep.mubr.bf16.mxu0 0
    %3349 = vmatmul.mubr.bf16.gmra.mrb[0].mxu0 %v3263
    %v3350 = vpop.f32.mrb[0].mxu0
    %v3351 = vadd.f32 0.0, %v3350
    %v3352 = vpop.f32.mrb[0].mxu0
    %v3353 = vadd.f32 0.0, %v3352
    %v3354 = vpop.f32.mrb[0].mxu0
    %v3355 = vadd.f32 0.0, %v3354
    %v3356 = vpop.f32.mrb[0].mxu0
    %v3357 = vadd.f32 0.0, %v3356
    %3358 = vdwg.mxu0
    %v3359 = vadd.f32 %v3265, %v3308
    %v3360 = vadd.f32 %v3266, %v3310
    %v3361 = vadd.f32 %v3267, %v3351
    %v3362 = vadd.f32 %v3268, %v3353
    %v3363 = vadd.f32 %v3269, %v3312
    %v3364 = vadd.f32 %v3270, %v3314
    %v3365 = vadd.f32 %v3271, %v3355
    %v3366 = vadd.f32 %v3272, %v3357
    %v3367 = vxor.u32 %v3359, 2147483648
    %v3368 = vxor.u32 %v3360, 2147483648
    %v3369 = vxor.u32 %v3361, 2147483648
    %v3370 = vxor.u32 %v3363, 2147483648
    %v3371 = vxor.u32 %v3364, 2147483648
    %v3372 = vxor.u32 %v3365, 2147483648
    %v3373 = vmul.f32 %v3367, 1.442695
    %v3374 = vpow.pop %v3373
    %v3375 = vmul.f32 %v3368, 1.442695
    %v3376 = vpow.pop %v3375
    %v3377 = vmul.f32 %v3369, 1.442695
    %v3378 = vpow.pop %v3377
    %v3379 = vmul.f32 %v3370, 1.442695
    %v3380 = vpow.pop %v3379
    %v3381 = vmul.f32 %v3371, 1.442695
    %v3382 = vpow.pop %v3381
    %v3383 = vmul.f32 %v3372, 1.442695
    %v3384 = vpow.pop %v3383
    %v3385 = vadd.f32 %v3374, 1.0
    %v3386 = vadd.f32 %v3376, 1.0
    %v3387 = vadd.f32 %v3378, 1.0
    %v3388 = vadd.f32 %v3380, 1.0
    %v3389 = vadd.f32 %v3382, 1.0
    %v3390 = vadd.f32 %v3384, 1.0
    %v3391 = vrcp.pop %v3385
    %v3392 = vmul.f32 1.0, %v3391
    %v3393 = vrcp.pop %v3386
    %v3394 = vmul.f32 1.0, %v3393
    %v3395 = vrcp.pop %v3387
    %v3396 = vmul.f32 1.0, %v3395
    %v3397 = vrcp.pop %v3388
    %v3398 = vmul.f32 1.0, %v3397
    %v3399 = vrcp.pop %v3389
    %v3400 = vmul.f32 1.0, %v3399
    %v3401 = vrcp.pop %v3390
    %v3402 = vmul.f32 1.0, %v3401
    %v3403 = vtanh.pop %v3362
    %v3404 = vtanh.pop %v3366
    %v3405 = vmul.f32 %v3394, %v3257
    %v3406 = vmul.f32 %v3400, %v3258
    %v3407 = vmul.f32 %v3392, %v3403
    %v3408 = vmul.f32 %v3398, %v3404
    %v3409 = vadd.f32 %v3405, %v3407
    %v3410 = vadd.f32 %v3406, %v3408
    %v3411 = vtanh.pop %v3409
    %v3412 = vtanh.pop %v3410
    %v3413 = vmul.f32 %v3396, %v3411
    %v3414 = vmul.f32 %v3402, %v3412
    %v3415 = vpack.c.bf16 %v3414, %v3413
    %3416 = vst [vmem:[%s1477] sm:$0xff] %v3415
    %v3417 = vld [vmem:[%s1481] sm:$0xff]
    %v3418 = vld [vmem:[%s1481 + $0x8] sm:$0xff]
    %v3419 = vld [vmem:[%s1481 + $0x10] sm:$0xff]
    %v3420 = vld [vmem:[%s1481 + $0x18] sm:$0xff]
    %v3421 = vld [vmem:[%s1481 + $0x20] sm:$0xff]
    %v3422 = vld [vmem:[%s1481 + $0x28] sm:$0xff]
    %v3423 = vld [vmem:[%s1481 + $0x30] sm:$0xff]
    %v3424 = vld [vmem:[%s1481 + $0x38] sm:$0xff]
    %3425 = vmatprep.subr.bf16.mxu0 %v2754
    %3426 = vmatpush1.bf16.msra.mxu0 %v2753
    %3427 = vmatprep.subr.bf16.mxu0 %v2758
    %3428 = vmatpush1.bf16.msra.mxu0 %v2757
    %3429 = vmatprep.subr.bf16.mxu0 %v2762
    %3430 = vmatpush1.bf16.msra.mxu0 %v2761
    %3431 = vmatprep.subr.bf16.mxu0 %v2766
    %3432 = vmatpush1.bf16.msra.mxu0 %v2765
    %3433 = vmatprep.subr.bf16.mxu0 %v2770
    %3434 = vmatpush1.bf16.msra.mxu0 %v2769
    %3435 = vmatprep.subr.bf16.mxu0 %v2774
    %3436 = vmatpush1.bf16.msra.mxu0 %v2773
    %3437 = vmatprep.subr.bf16.mxu0 %v2778
    %3438 = vmatpush1.bf16.msra.mxu0 %v2777
    %3439 = vmatprep.subr.bf16.mxu0 %v2782
    %3440 = vmatpush1.bf16.msra.mxu0 %v2781
    %3441 = vmatprep.subr.bf16.mxu0 0
    %3442 = vmatpush1.bf16.msra.mxu0 0
    %3443 = vmatprep.subr.bf16.mxu0 0
    %3444 = vmatpush1.bf16.msra.mxu0 0
    %3445 = vmatprep.subr.bf16.mxu0 0
    %3446 = vmatpush1.bf16.msra.mxu0 0
    %3447 = vmatprep.subr.bf16.mxu0 0
    %3448 = vmatpush1.bf16.msra.mxu0 0
    %3449 = vmatprep.subr.bf16.mxu0 0
    %3450 = vmatpush1.bf16.msra.mxu0 0
    %3451 = vmatprep.subr.bf16.mxu0 0
    %3452 = vmatpush1.bf16.msra.mxu0 0
    %3453 = vmatprep.subr.bf16.mxu0 0
    %3454 = vmatpush1.bf16.msra.mxu0 0
    %3455 = vmatprep.subr.bf16.mxu0 0
    %3456 = vmatpush1.bf16.msra.mxu0 0
    %3457 = vmatprep.mubr.bf16.mxu0 0
    %3458 = vmatmul.mubr.bf16.gmra.mrb[0].mxu0 %v3415
    %v3459 = vpop.f32.mrb[0].mxu0
    %v3460 = vadd.f32 0.0, %v3459
    %v3461 = vpop.f32.mrb[0].mxu0
    %v3462 = vadd.f32 0.0, %v3461
    %v3463 = vpop.f32.mrb[0].mxu0
    %v3464 = vadd.f32 0.0, %v3463
    %v3465 = vpop.f32.mrb[0].mxu0
    %v3466 = vadd.f32 0.0, %v3465
    %3467 = vdwg.mxu0
    %3468 = vmatprep.subr.bf16.mxu0 %v2756
    %3469 = vmatpush1.bf16.msra.mxu0 %v2755
    %3470 = vmatprep.subr.bf16.mxu0 %v2760
    %3471 = vmatpush1.bf16.msra.mxu0 %v2759
    %3472 = vmatprep.subr.bf16.mxu0 %v2764
    %3473 = vmatpush1.bf16.msra.mxu0 %v2763
    %3474 = vmatprep.subr.bf16.mxu0 %v2768
    %3475 = vmatpush1.bf16.msra.mxu0 %v2767
    %3476 = vmatprep.subr.bf16.mxu0 %v2772
    %3477 = vmatpush1.bf16.msra.mxu0 %v2771
    %3478 = vmatprep.subr.bf16.mxu0 %v2776
    %3479 = vmatpush1.bf16.msra.mxu0 %v2775
    %3480 = vmatprep.subr.bf16.mxu0 %v2780
    %3481 = vmatpush1.bf16.msra.mxu0 %v2779
    %3482 = vmatprep.subr.bf16.mxu0 %v2784
    %3483 = vmatpush1.bf16.msra.mxu0 %v2783
    %3484 = vmatprep.subr.bf16.mxu0 0
    %3485 = vmatpush1.bf16.msra.mxu0 0
    %3486 = vmatprep.subr.bf16.mxu0 0
    %3487 = vmatpush1.bf16.msra.mxu0 0
    %3488 = vmatprep.subr.bf16.mxu0 0
    %3489 = vmatpush1.bf16.msra.mxu0 0
    %3490 = vmatprep.subr.bf16.mxu0 0
    %3491 = vmatpush1.bf16.msra.mxu0 0
    %3492 = vmatprep.subr.bf16.mxu0 0
    %3493 = vmatpush1.bf16.msra.mxu0 0
    %3494 = vmatprep.subr.bf16.mxu0 0
    %3495 = vmatpush1.bf16.msra.mxu0 0
    %3496 = vmatprep.subr.bf16.mxu0 0
    %3497 = vmatpush1.bf16.msra.mxu0 0
    %3498 = vmatprep.subr.bf16.mxu0 0
    %3499 = vmatpush1.bf16.msra.mxu0 0
    %3500 = vmatprep.mubr.bf16.mxu0 0
    %3501 = vmatmul.mubr.bf16.gmra.mrb[0].mxu0 %v3415
    %v3502 = vpop.f32.mrb[0].mxu0
    %v3503 = vadd.f32 0.0, %v3502
    %v3504 = vpop.f32.mrb[0].mxu0
    %v3505 = vadd.f32 0.0, %v3504
    %v3506 = vpop.f32.mrb[0].mxu0
    %v3507 = vadd.f32 0.0, %v3506
    %v3508 = vpop.f32.mrb[0].mxu0
    %v3509 = vadd.f32 0.0, %v3508
    %3510 = vdwg.mxu0
    %v3511 = vadd.f32 %v3417, %v3460
    %v3512 = vadd.f32 %v3418, %v3462
    %v3513 = vadd.f32 %v3419, %v3503
    %v3514 = vadd.f32 %v3420, %v3505
    %v3515 = vadd.f32 %v3421, %v3464
    %v3516 = vadd.f32 %v3422, %v3466
    %v3517 = vadd.f32 %v3423, %v3507
    %v3518 = vadd.f32 %v3424, %v3509
    %v3519 = vxor.u32 %v3511, 2147483648
    %v3520 = vxor.u32 %v3512, 2147483648
    %v3521 = vxor.u32 %v3513, 2147483648
    %v3522 = vxor.u32 %v3515, 2147483648
    %v3523 = vxor.u32 %v3516, 2147483648
    %v3524 = vxor.u32 %v3517, 2147483648
    %v3525 = vmul.f32 %v3519, 1.442695
    %v3526 = vpow.pop %v3525
    %v3527 = vmul.f32 %v3520, 1.442695
    %v3528 = vpow.pop %v3527
    %v3529 = vmul.f32 %v3521, 1.442695
    %v3530 = vpow.pop %v3529
    %v3531 = vmul.f32 %v3522, 1.442695
    %v3532 = vpow.pop %v3531
    %v3533 = vmul.f32 %v3523, 1.442695
    %v3534 = vpow.pop %v3533
    %v3535 = vmul.f32 %v3524, 1.442695
    %v3536 = vpow.pop %v3535
    %v3537 = vadd.f32 %v3526, 1.0
    %v3538 = vadd.f32 %v3528, 1.0
    %v3539 = vadd.f32 %v3530, 1.0
    %v3540 = vadd.f32 %v3532, 1.0
    %v3541 = vadd.f32 %v3534, 1.0
    %v3542 = vadd.f32 %v3536, 1.0
    %v3543 = vrcp.pop %v3537
    %v3544 = vmul.f32 1.0, %v3543
    %v3545 = vrcp.pop %v3538
    %v3546 = vmul.f32 1.0, %v3545
    %v3547 = vrcp.pop %v3539
    %v3548 = vmul.f32 1.0, %v3547
    %v3549 = vrcp.pop %v3540
    %v3550 = vmul.f32 1.0, %v3549
    %v3551 = vrcp.pop %v3541
    %v3552 = vmul.f32 1.0, %v3551
    %v3553 = vrcp.pop %v3542
    %v3554 = vmul.f32 1.0, %v3553
    %v3555 = vtanh.pop %v3514
    %v3556 = vtanh.pop %v3518
    %v3557 = vmul.f32 %v3546, %v3409
    %v3558 = vmul.f32 %v3552, %v3410
    %v3559 = vmul.f32 %v3544, %v3555
    %v3560 = vmul.f32 %v3550, %v3556
    %v3561 = vadd.f32 %v3557, %v3559
    %v3562 = vadd.f32 %v3558, %v3560
    %v3563 = vtanh.pop %v3561
    %v3564 = vtanh.pop %v3562
    %v3565 = vmul.f32 %v3548, %v3563
    %v3566 = vmul.f32 %v3554, %v3564
    %v3567 = vpack.c.bf16 %v3566, %v3565
    %3568 = vst [vmem:[%s1633] sm:$0xff] %v3567
    %v3569 = vld [vmem:[%s1637] sm:$0xff]
    %v3570 = vld [vmem:[%s1637 + $0x8] sm:$0xff]
    %v3571 = vld [vmem:[%s1637 + $0x10] sm:$0xff]
    %v3572 = vld [vmem:[%s1637 + $0x18] sm:$0xff]
    %v3573 = vld [vmem:[%s1637 + $0x20] sm:$0xff]
    %v3574 = vld [vmem:[%s1637 + $0x28] sm:$0xff]
    %v3575 = vld [vmem:[%s1637 + $0x30] sm:$0xff]
    %v3576 = vld [vmem:[%s1637 + $0x38] sm:$0xff]
    %3577 = vmatprep.subr.bf16.mxu0 %v2754
    %3578 = vmatpush1.bf16.msra.mxu0 %v2753
    %3579 = vmatprep.subr.bf16.mxu0 %v2758
    %3580 = vmatpush1.bf16.msra.mxu0 %v2757
    %3581 = vmatprep.subr.bf16.mxu0 %v2762
    %3582 = vmatpush1.bf16.msra.mxu0 %v2761
    %3583 = vmatprep.subr.bf16.mxu0 %v2766
    %3584 = vmatpush1.bf16.msra.mxu0 %v2765
    %3585 = vmatprep.subr.bf16.mxu0 %v2770
    %3586 = vmatpush1.bf16.msra.mxu0 %v2769
    %3587 = vmatprep.subr.bf16.mxu0 %v2774
    %3588 = vmatpush1.bf16.msra.mxu0 %v2773
    %3589 = vmatprep.subr.bf16.mxu0 %v2778
    %3590 = vmatpush1.bf16.msra.mxu0 %v2777
    %3591 = vmatprep.subr.bf16.mxu0 %v2782
    %3592 = vmatpush1.bf16.msra.mxu0 %v2781
    %3593 = vmatprep.subr.bf16.mxu0 0
    %3594 = vmatpush1.bf16.msra.mxu0 0
    %3595 = vmatprep.subr.bf16.mxu0 0
    %3596 = vmatpush1.bf16.msra.mxu0 0
    %3597 = vmatprep.subr.bf16.mxu0 0
    %3598 = vmatpush1.bf16.msra.mxu0 0
    %3599 = vmatprep.subr.bf16.mxu0 0
    %3600 = vmatpush1.bf16.msra.mxu0 0
    %3601 = vmatprep.subr.bf16.mxu0 0
    %3602 = vmatpush1.bf16.msra.mxu0 0
    %3603 = vmatprep.subr.bf16.mxu0 0
    %3604 = vmatpush1.bf16.msra.mxu0 0
    %3605 = vmatprep.subr.bf16.mxu0 0
    %3606 = vmatpush1.bf16.msra.mxu0 0
    %3607 = vmatprep.subr.bf16.mxu0 0
    %3608 = vmatpush1.bf16.msra.mxu0 0
    %3609 = vmatprep.mubr.bf16.mxu0 0
    %3610 = vmatmul.mubr.bf16.gmra.mrb[0].mxu0 %v3567
    %v3611 = vpop.f32.mrb[0].mxu0
    %v3612 = vadd.f32 0.0, %v3611
    %v3613 = vpop.f32.mrb[0].mxu0
    %v3614 = vadd.f32 0.0, %v3613
    %v3615 = vpop.f32.mrb[0].mxu0
    %v3616 = vadd.f32 0.0, %v3615
    %v3617 = vpop.f32.mrb[0].mxu0
    %v3618 = vadd.f32 0.0, %v3617
    %3619 = vdwg.mxu0
    %3620 = vmatprep.subr.bf16.mxu0 %v2756
    %3621 = vmatpush1.bf16.msra.mxu0 %v2755
    %3622 = vmatprep.subr.bf16.mxu0 %v2760
    %3623 = vmatpush1.bf16.msra.mxu0 %v2759
    %3624 = vmatprep.subr.bf16.mxu0 %v2764
    %3625 = vmatpush1.bf16.msra.mxu0 %v2763
    %3626 = vmatprep.subr.bf16.mxu0 %v2768
    %3627 = vmatpush1.bf16.msra.mxu0 %v2767
    %3628 = vmatprep.subr.bf16.mxu0 %v2772
    %3629 = vmatpush1.bf16.msra.mxu0 %v2771
    %3630 = vmatprep.subr.bf16.mxu0 %v2776
    %3631 = vmatpush1.bf16.msra.mxu0 %v2775
    %3632 = vmatprep.subr.bf16.mxu0 %v2780
    %3633 = vmatpush1.bf16.msra.mxu0 %v2779
    %3634 = vmatprep.subr.bf16.mxu0 %v2784
    %3635 = vmatpush1.bf16.msra.mxu0 %v2783
    %3636 = vmatprep.subr.bf16.mxu0 0
    %3637 = vmatpush1.bf16.msra.mxu0 0
    %3638 = vmatprep.subr.bf16.mxu0 0
    %3639 = vmatpush1.bf16.msra.mxu0 0
    %3640 = vmatprep.subr.bf16.mxu0 0
    %3641 = vmatpush1.bf16.msra.mxu0 0
    %3642 = vmatprep.subr.bf16.mxu0 0
    %3643 = vmatpush1.bf16.msra.mxu0 0
    %3644 = vmatprep.subr.bf16.mxu0 0
    %3645 = vmatpush1.bf16.msra.mxu0 0
    %3646 = vmatprep.subr.bf16.mxu0 0
    %3647 = vmatpush1.bf16.msra.mxu0 0
    %3648 = vmatprep.subr.bf16.mxu0 0
    %3649 = vmatpush1.bf16.msra.mxu0 0
    %3650 = vmatprep.subr.bf16.mxu0 0
    %3651 = vmatpush1.bf16.msra.mxu0 0
    %3652 = vmatprep.mubr.bf16.mxu0 0
    %3653 = vmatmul.mubr.bf16.gmra.mrb[0].mxu0 %v3567
    %v3654 = vpop.f32.mrb[0].mxu0
    %v3655 = vadd.f32 0.0, %v3654
    %v3656 = vpop.f32.mrb[0].mxu0
    %v3657 = vadd.f32 0.0, %v3656
    %v3658 = vpop.f32.mrb[0].mxu0
    %v3659 = vadd.f32 0.0, %v3658
    %v3660 = vpop.f32.mrb[0].mxu0
    %v3661 = vadd.f32 0.0, %v3660
    %3662 = vdwg.mxu0
    %v3663 = vadd.f32 %v3569, %v3612
    %v3664 = vadd.f32 %v3570, %v3614
    %v3665 = vadd.f32 %v3571, %v3655
    %v3666 = vadd.f32 %v3572, %v3657
    %v3667 = vadd.f32 %v3573, %v3616
    %v3668 = vadd.f32 %v3574, %v3618
    %v3669 = vadd.f32 %v3575, %v3659
    %v3670 = vadd.f32 %v3576, %v3661
    %v3671 = vxor.u32 %v3663, 2147483648
    %v3672 = vxor.u32 %v3664, 2147483648
    %v3673 = vxor.u32 %v3665, 2147483648
    %v3674 = vxor.u32 %v3667, 2147483648
    %v3675 = vxor.u32 %v3668, 2147483648
    %v3676 = vxor.u32 %v3669, 2147483648
    %v3677 = vmul.f32 %v3671, 1.442695
    %v3678 = vpow.pop %v3677
    %v3679 = vmul.f32 %v3672, 1.442695
    %v3680 = vpow.pop %v3679
    %v3681 = vmul.f32 %v3673, 1.442695
    %v3682 = vpow.pop %v3681
    %v3683 = vmul.f32 %v3674, 1.442695
    %v3684 = vpow.pop %v3683
    %v3685 = vmul.f32 %v3675, 1.442695
    %v3686 = vpow.pop %v3685
    %v3687 = vmul.f32 %v3676, 1.442695
    %v3688 = vpow.pop %v3687
    %v3689 = vadd.f32 %v3678, 1.0
    %v3690 = vadd.f32 %v3680, 1.0
    %v3691 = vadd.f32 %v3682, 1.0
    %v3692 = vadd.f32 %v3684, 1.0
    %v3693 = vadd.f32 %v3686, 1.0
    %v3694 = vadd.f32 %v3688, 1.0
    %v3695 = vrcp.pop %v3689
    %v3696 = vmul.f32 1.0, %v3695
    %v3697 = vrcp.pop %v3690
    %v3698 = vmul.f32 1.0, %v3697
    %v3699 = vrcp.pop %v3691
    %v3700 = vmul.f32 1.0, %v3699
    %v3701 = vrcp.pop %v3692
    %v3702 = vmul.f32 1.0, %v3701
    %v3703 = vrcp.pop %v3693
    %v3704 = vmul.f32 1.0, %v3703
    %v3705 = vrcp.pop %v3694
    %v3706 = vmul.f32 1.0, %v3705
    %v3707 = vtanh.pop %v3666
    %v3708 = vtanh.pop %v3670
    %v3709 = vmul.f32 %v3698, %v3561
    %v3710 = vmul.f32 %v3704, %v3562
    %v3711 = vmul.f32 %v3696, %v3707
    %v3712 = vmul.f32 %v3702, %v3708
    %v3713 = vadd.f32 %v3709, %v3711
    %v3714 = vadd.f32 %v3710, %v3712
    %v3715 = vtanh.pop %v3713
    %v3716 = vtanh.pop %v3714
    %v3717 = vmul.f32 %v3700, %v3715
    %v3718 = vmul.f32 %v3706, %v3716
    %v3719 = vpack.c.bf16 %v3718, %v3717
    %3720 = vst [vmem:[%s1789] sm:$0xff] %v3719
    %v3721 = vld [vmem:[%s1793] sm:$0xff]
    %v3722 = vld [vmem:[%s1793 + $0x8] sm:$0xff]
    %v3723 = vld [vmem:[%s1793 + $0x10] sm:$0xff]
    %v3724 = vld [vmem:[%s1793 + $0x18] sm:$0xff]
    %v3725 = vld [vmem:[%s1793 + $0x20] sm:$0xff]
    %v3726 = vld [vmem:[%s1793 + $0x28] sm:$0xff]
    %v3727 = vld [vmem:[%s1793 + $0x30] sm:$0xff]
    %v3728 = vld [vmem:[%s1793 + $0x38] sm:$0xff]
    %3729 = vmatprep.subr.bf16.mxu0 %v2754
    %3730 = vmatpush1.bf16.msra.mxu0 %v2753
    %3731 = vmatprep.subr.bf16.mxu0 %v2758
    %3732 = vmatpush1.bf16.msra.mxu0 %v2757
    %3733 = vmatprep.subr.bf16.mxu0 %v2762
    %3734 = vmatpush1.bf16.msra.mxu0 %v2761
    %3735 = vmatprep.subr.bf16.mxu0 %v2766
    %3736 = vmatpush1.bf16.msra.mxu0 %v2765
    %3737 = vmatprep.subr.bf16.mxu0 %v2770
    %3738 = vmatpush1.bf16.msra.mxu0 %v2769
    %3739 = vmatprep.subr.bf16.mxu0 %v2774
    %3740 = vmatpush1.bf16.msra.mxu0 %v2773
    %3741 = vmatprep.subr.bf16.mxu0 %v2778
    %3742 = vmatpush1.bf16.msra.mxu0 %v2777
    %3743 = vmatprep.subr.bf16.mxu0 %v2782
    %3744 = vmatpush1.bf16.msra.mxu0 %v2781
    %3745 = vmatprep.subr.bf16.mxu0 0
    %3746 = vmatpush1.bf16.msra.mxu0 0
    %3747 = vmatprep.subr.bf16.mxu0 0
    %3748 = vmatpush1.bf16.msra.mxu0 0
    %3749 = vmatprep.subr.bf16.mxu0 0
    %3750 = vmatpush1.bf16.msra.mxu0 0
    %3751 = vmatprep.subr.bf16.mxu0 0
    %3752 = vmatpush1.bf16.msra.mxu0 0
    %3753 = vmatprep.subr.bf16.mxu0 0
    %3754 = vmatpush1.bf16.msra.mxu0 0
    %3755 = vmatprep.subr.bf16.mxu0 0
    %3756 = vmatpush1.bf16.msra.mxu0 0
    %3757 = vmatprep.subr.bf16.mxu0 0
    %3758 = vmatpush1.bf16.msra.mxu0 0
    %3759 = vmatprep.subr.bf16.mxu0 0
    %3760 = vmatpush1.bf16.msra.mxu0 0
    %3761 = vmatprep.mubr.bf16.mxu0 0
    %3762 = vmatmul.mubr.bf16.gmra.mrb[0].mxu0 %v3719
    %v3763 = vpop.f32.mrb[0].mxu0
    %v3764 = vadd.f32 0.0, %v3763
    %v3765 = vpop.f32.mrb[0].mxu0
    %v3766 = vadd.f32 0.0, %v3765
    %v3767 = vpop.f32.mrb[0].mxu0
    %v3768 = vadd.f32 0.0, %v3767
    %v3769 = vpop.f32.mrb[0].mxu0
    %v3770 = vadd.f32 0.0, %v3769
    %3771 = vdwg.mxu0
    %3772 = vmatprep.subr.bf16.mxu0 %v2756
    %3773 = vmatpush1.bf16.msra.mxu0 %v2755
    %3774 = vmatprep.subr.bf16.mxu0 %v2760
    %3775 = vmatpush1.bf16.msra.mxu0 %v2759
    %3776 = vmatprep.subr.bf16.mxu0 %v2764
    %3777 = vmatpush1.bf16.msra.mxu0 %v2763
    %3778 = vmatprep.subr.bf16.mxu0 %v2768
    %3779 = vmatpush1.bf16.msra.mxu0 %v2767
    %3780 = vmatprep.subr.bf16.mxu0 %v2772
    %3781 = vmatpush1.bf16.msra.mxu0 %v2771
    %3782 = vmatprep.subr.bf16.mxu0 %v2776
    %3783 = vmatpush1.bf16.msra.mxu0 %v2775
    %3784 = vmatprep.subr.bf16.mxu0 %v2780
    %3785 = vmatpush1.bf16.msra.mxu0 %v2779
    %3786 = vmatprep.subr.bf16.mxu0 %v2784
    %3787 = vmatpush1.bf16.msra.mxu0 %v2783
    %3788 = vmatprep.subr.bf16.mxu0 0
    %3789 = vmatpush1.bf16.msra.mxu0 0
    %3790 = vmatprep.subr.bf16.mxu0 0
    %3791 = vmatpush1.bf16.msra.mxu0 0
    %3792 = vmatprep.subr.bf16.mxu0 0
    %3793 = vmatpush1.bf16.msra.mxu0 0
    %3794 = vmatprep.subr.bf16.mxu0 0
    %3795 = vmatpush1.bf16.msra.mxu0 0
    %3796 = vmatprep.subr.bf16.mxu0 0
    %3797 = vmatpush1.bf16.msra.mxu0 0
    %3798 = vmatprep.subr.bf16.mxu0 0
    %3799 = vmatpush1.bf16.msra.mxu0 0
    %3800 = vmatprep.subr.bf16.mxu0 0
    %3801 = vmatpush1.bf16.msra.mxu0 0
    %3802 = vmatprep.subr.bf16.mxu0 0
    %3803 = vmatpush1.bf16.msra.mxu0 0
    %3804 = vmatprep.mubr.bf16.mxu0 0
    %3805 = vmatmul.mubr.bf16.gmra.mrb[0].mxu0 %v3719
    %v3806 = vpop.f32.mrb[0].mxu0
    %v3807 = vadd.f32 0.0, %v3806
    %v3808 = vpop.f32.mrb[0].mxu0
    %v3809 = vadd.f32 0.0, %v3808
    %v3810 = vpop.f32.mrb[0].mxu0
    %v3811 = vadd.f32 0.0, %v3810
    %v3812 = vpop.f32.mrb[0].mxu0
    %v3813 = vadd.f32 0.0, %v3812
    %3814 = vdwg.mxu0
    %v3815 = vadd.f32 %v3721, %v3764
    %v3816 = vadd.f32 %v3722, %v3766
    %v3817 = vadd.f32 %v3723, %v3807
    %v3818 = vadd.f32 %v3724, %v3809
    %v3819 = vadd.f32 %v3725, %v3768
    %v3820 = vadd.f32 %v3726, %v3770
    %v3821 = vadd.f32 %v3727, %v3811
    %v3822 = vadd.f32 %v3728, %v3813
    %v3823 = vxor.u32 %v3815, 2147483648
    %v3824 = vxor.u32 %v3816, 2147483648
    %v3825 = vxor.u32 %v3817, 2147483648
    %v3826 = vxor.u32 %v3819, 2147483648
    %v3827 = vxor.u32 %v3820, 2147483648
    %v3828 = vxor.u32 %v3821, 2147483648
    %v3829 = vmul.f32 %v3823, 1.442695
    %v3830 = vpow.pop %v3829
    %v3831 = vmul.f32 %v3824, 1.442695
    %v3832 = vpow.pop %v3831
    %v3833 = vmul.f32 %v3825, 1.442695
    %v3834 = vpow.pop %v3833
    %v3835 = vmul.f32 %v3826, 1.442695
    %v3836 = vpow.pop %v3835
    %v3837 = vmul.f32 %v3827, 1.442695
    %v3838 = vpow.pop %v3837
    %v3839 = vmul.f32 %v3828, 1.442695
    %v3840 = vpow.pop %v3839
    %v3841 = vadd.f32 %v3830, 1.0
    %v3842 = vadd.f32 %v3832, 1.0
    %v3843 = vadd.f32 %v3834, 1.0
    %v3844 = vadd.f32 %v3836, 1.0
    %v3845 = vadd.f32 %v3838, 1.0
    %v3846 = vadd.f32 %v3840, 1.0
    %v3847 = vrcp.pop %v3841
    %v3848 = vmul.f32 1.0, %v3847
    %v3849 = vrcp.pop %v3842
    %v3850 = vmul.f32 1.0, %v3849
    %v3851 = vrcp.pop %v3843
    %v3852 = vmul.f32 1.0, %v3851
    %v3853 = vrcp.pop %v3844
    %v3854 = vmul.f32 1.0, %v3853
    %v3855 = vrcp.pop %v3845
    %v3856 = vmul.f32 1.0, %v3855
    %v3857 = vrcp.pop %v3846
    %v3858 = vmul.f32 1.0, %v3857
    %v3859 = vtanh.pop %v3818
    %v3860 = vtanh.pop %v3822
    %v3861 = vmul.f32 %v3850, %v3713
    %v3862 = vmul.f32 %v3856, %v3714
    %v3863 = vmul.f32 %v3848, %v3859
    %v3864 = vmul.f32 %v3854, %v3860
    %v3865 = vadd.f32 %v3861, %v3863
    %v3866 = vadd.f32 %v3862, %v3864
    %v3867 = vtanh.pop %v3865
    %v3868 = vtanh.pop %v3866
    %v3869 = vmul.f32 %v3852, %v3867
    %v3870 = vmul.f32 %v3858, %v3868
    %v3871 = vpack.c.bf16 %v3870, %v3869
    %3872 = vst [vmem:[%s1945] sm:$0xff] %v3871
    %v3873 = vld [vmem:[%s1949] sm:$0xff]
    %v3874 = vld [vmem:[%s1949 + $0x8] sm:$0xff]
    %v3875 = vld [vmem:[%s1949 + $0x10] sm:$0xff]
    %v3876 = vld [vmem:[%s1949 + $0x18] sm:$0xff]
    %v3877 = vld [vmem:[%s1949 + $0x20] sm:$0xff]
    %v3878 = vld [vmem:[%s1949 + $0x28] sm:$0xff]
    %v3879 = vld [vmem:[%s1949 + $0x30] sm:$0xff]
    %v3880 = vld [vmem:[%s1949 + $0x38] sm:$0xff]
    %3881 = vmatprep.subr.bf16.mxu0 %v2754
    %3882 = vmatpush1.bf16.msra.mxu0 %v2753
    %3883 = vmatprep.subr.bf16.mxu0 %v2758
    %3884 = vmatpush1.bf16.msra.mxu0 %v2757
    %3885 = vmatprep.subr.bf16.mxu0 %v2762
    %3886 = vmatpush1.bf16.msra.mxu0 %v2761
    %3887 = vmatprep.subr.bf16.mxu0 %v2766
    %3888 = vmatpush1.bf16.msra.mxu0 %v2765
    %3889 = vmatprep.subr.bf16.mxu0 %v2770
    %3890 = vmatpush1.bf16.msra.mxu0 %v2769
    %3891 = vmatprep.subr.bf16.mxu0 %v2774
    %3892 = vmatpush1.bf16.msra.mxu0 %v2773
    %3893 = vmatprep.subr.bf16.mxu0 %v2778
    %3894 = vmatpush1.bf16.msra.mxu0 %v2777
    %3895 = vmatprep.subr.bf16.mxu0 %v2782
    %3896 = vmatpush1.bf16.msra.mxu0 %v2781
    %3897 = vmatprep.subr.bf16.mxu0 0
    %3898 = vmatpush1.bf16.msra.mxu0 0
    %3899 = vmatprep.subr.bf16.mxu0 0
    %3900 = vmatpush1.bf16.msra.mxu0 0
    %3901 = vmatprep.subr.bf16.mxu0 0
    %3902 = vmatpush1.bf16.msra.mxu0 0
    %3903 = vmatprep.subr.bf16.mxu0 0
    %3904 = vmatpush1.bf16.msra.mxu0 0
    %3905 = vmatprep.subr.bf16.mxu0 0
    %3906 = vmatpush1.bf16.msra.mxu0 0
    %3907 = vmatprep.subr.bf16.mxu0 0
    %3908 = vmatpush1.bf16.msra.mxu0 0
    %3909 = vmatprep.subr.bf16.mxu0 0
    %3910 = vmatpush1.bf16.msra.mxu0 0
    %3911 = vmatprep.subr.bf16.mxu0 0
    %3912 = vmatpush1.bf16.msra.mxu0 0
    %3913 = vmatprep.mubr.bf16.mxu0 0
    %3914 = vmatmul.mubr.bf16.gmra.mrb[0].mxu0 %v3871
    %v3915 = vpop.f32.mrb[0].mxu0
    %v3916 = vadd.f32 0.0, %v3915
    %v3917 = vpop.f32.mrb[0].mxu0
    %v3918 = vadd.f32 0.0, %v3917
    %v3919 = vpop.f32.mrb[0].mxu0
    %v3920 = vadd.f32 0.0, %v3919
    %v3921 = vpop.f32.mrb[0].mxu0
    %v3922 = vadd.f32 0.0, %v3921
    %3923 = vdwg.mxu0
    %3924 = vmatprep.subr.bf16.mxu0 %v2756
    %3925 = vmatpush1.bf16.msra.mxu0 %v2755
    %3926 = vmatprep.subr.bf16.mxu0 %v2760
    %3927 = vmatpush1.bf16.msra.mxu0 %v2759
    %3928 = vmatprep.subr.bf16.mxu0 %v2764
    %3929 = vmatpush1.bf16.msra.mxu0 %v2763
    %3930 = vmatprep.subr.bf16.mxu0 %v2768
    %3931 = vmatpush1.bf16.msra.mxu0 %v2767
    %3932 = vmatprep.subr.bf16.mxu0 %v2772
    %3933 = vmatpush1.bf16.msra.mxu0 %v2771
    %3934 = vmatprep.subr.bf16.mxu0 %v2776
    %3935 = vmatpush1.bf16.msra.mxu0 %v2775
    %3936 = vmatprep.subr.bf16.mxu0 %v2780
    %3937 = vmatpush1.bf16.msra.mxu0 %v2779
    %3938 = vmatprep.subr.bf16.mxu0 %v2784
    %3939 = vmatpush1.bf16.msra.mxu0 %v2783
    %3940 = vmatprep.subr.bf16.mxu0 0
    %3941 = vmatpush1.bf16.msra.mxu0 0
    %3942 = vmatprep.subr.bf16.mxu0 0
    %3943 = vmatpush1.bf16.msra.mxu0 0
    %3944 = vmatprep.subr.bf16.mxu0 0
    %3945 = vmatpush1.bf16.msra.mxu0 0
    %3946 = vmatprep.subr.bf16.mxu0 0
    %3947 = vmatpush1.bf16.msra.mxu0 0
    %3948 = vmatprep.subr.bf16.mxu0 0
    %3949 = vmatpush1.bf16.msra.mxu0 0
    %3950 = vmatprep.subr.bf16.mxu0 0
    %3951 = vmatpush1.bf16.msra.mxu0 0
    %3952 = vmatprep.subr.bf16.mxu0 0
    %3953 = vmatpush1.bf16.msra.mxu0 0
    %3954 = vmatprep.subr.bf16.mxu0 0
    %3955 = vmatpush1.bf16.msra.mxu0 0
    %3956 = vmatprep.mubr.bf16.mxu0 0
    %3957 = vmatmul.mubr.bf16.gmra.mrb[0].mxu0 %v3871
    %v3958 = vpop.f32.mrb[0].mxu0
    %v3959 = vadd.f32 0.0, %v3958
    %v3960 = vpop.f32.mrb[0].mxu0
    %v3961 = vadd.f32 0.0, %v3960
    %v3962 = vpop.f32.mrb[0].mxu0
    %v3963 = vadd.f32 0.0, %v3962
    %v3964 = vpop.f32.mrb[0].mxu0
    %v3965 = vadd.f32 0.0, %v3964
    %3966 = vdwg.mxu0
    %v3967 = vadd.f32 %v3873, %v3916
    %v3968 = vadd.f32 %v3874, %v3918
    %v3969 = vadd.f32 %v3875, %v3959
    %v3970 = vadd.f32 %v3876, %v3961
    %v3971 = vadd.f32 %v3877, %v3920
    %v3972 = vadd.f32 %v3878, %v3922
    %v3973 = vadd.f32 %v3879, %v3963
    %v3974 = vadd.f32 %v3880, %v3965
    %v3975 = vxor.u32 %v3967, 2147483648
    %v3976 = vxor.u32 %v3968, 2147483648
    %v3977 = vxor.u32 %v3969, 2147483648
    %v3978 = vxor.u32 %v3971, 2147483648
    %v3979 = vxor.u32 %v3972, 2147483648
    %v3980 = vxor.u32 %v3973, 2147483648
    %v3981 = vmul.f32 %v3975, 1.442695
    %v3982 = vpow.pop %v3981
    %v3983 = vmul.f32 %v3976, 1.442695
    %v3984 = vpow.pop %v3983
    %v3985 = vmul.f32 %v3977, 1.442695
    %v3986 = vpow.pop %v3985
    %v3987 = vmul.f32 %v3978, 1.442695
    %v3988 = vpow.pop %v3987
    %v3989 = vmul.f32 %v3979, 1.442695
    %v3990 = vpow.pop %v3989
    %v3991 = vmul.f32 %v3980, 1.442695
    %v3992 = vpow.pop %v3991
    %v3993 = vadd.f32 %v3982, 1.0
    %v3994 = vadd.f32 %v3984, 1.0
    %v3995 = vadd.f32 %v3986, 1.0
    %v3996 = vadd.f32 %v3988, 1.0
    %v3997 = vadd.f32 %v3990, 1.0
    %v3998 = vadd.f32 %v3992, 1.0
    %v3999 = vrcp.pop %v3993
    %v4000 = vmul.f32 1.0, %v3999
    %v4001 = vrcp.pop %v3994
    %v4002 = vmul.f32 1.0, %v4001
    %v4003 = vrcp.pop %v3995
    %v4004 = vmul.f32 1.0, %v4003
    %v4005 = vrcp.pop %v3996
    %v4006 = vmul.f32 1.0, %v4005
    %v4007 = vrcp.pop %v3997
    %v4008 = vmul.f32 1.0, %v4007
    %v4009 = vrcp.pop %v3998
    %v4010 = vmul.f32 1.0, %v4009
    %v4011 = vtanh.pop %v3970
    %v4012 = vtanh.pop %v3974
    %v4013 = vmul.f32 %v4002, %v3865
    %v4014 = vmul.f32 %v4008, %v3866
    %v4015 = vmul.f32 %v4000, %v4011
    %v4016 = vmul.f32 %v4006, %v4012
    %v4017 = vadd.f32 %v4013, %v4015
    %v4018 = vadd.f32 %v4014, %v4016
    %v4019 = vtanh.pop %v4017
    %v4020 = vtanh.pop %v4018
    %v4021 = vmul.f32 %v4004, %v4019
    %v4022 = vmul.f32 %v4010, %v4020
    %v4023 = vpack.c.bf16 %v4022, %v4021
    %4024 = vst [vmem:[%s2101] sm:$0xff] %v4023
    %v4025 = vld [vmem:[#allocation12] sm:$0xf]
    %v4026 = vld [vmem:[#allocation12 + $0x4] sm:$0xf]
    %v4027 = vld [vmem:[#allocation12 + $0x8] sm:$0xf]
    %v4028 = vld [vmem:[#allocation12 + $0xc] sm:$0xf]
    %v4029 = vld [vmem:[#allocation12 + $0x10] sm:$0xf]
    %v4030 = vld [vmem:[#allocation12 + $0x14] sm:$0xf]
    %v4031 = vld [vmem:[#allocation12 + $0x18] sm:$0xf]
    %v4032 = vld [vmem:[#allocation12 + $0x1c] sm:$0xf]
    %v4033 = vld [vmem:[#allocation12 + $0x20] sm:$0xf]
    %v4034 = vld [vmem:[#allocation12 + $0x24] sm:$0xf]
    %v4035 = vld [vmem:[#allocation12 + $0x28] sm:$0xf]
    %v4036 = vld [vmem:[#allocation12 + $0x2c] sm:$0xf]
    %v4037 = vld [vmem:[#allocation12 + $0x30] sm:$0xf]
    %v4038 = vld [vmem:[#allocation12 + $0x34] sm:$0xf]
    %v4039 = vld [vmem:[#allocation12 + $0x38] sm:$0xf]
    %v4040 = vld [vmem:[#allocation12 + $0x3c] sm:$0xf]
    %v4041 = vld [vmem:[%s6] sm:$0x1]
    %v4042 = vld [vmem:[#allocation2] sm:$0xff]
    %v4043 = vld [vmem:[#allocation2 + $0x8] sm:$0xff]
    %v4044 = vld [vmem:[#allocation2 + $0x10] sm:$0xff]
    %v4045 = vld [vmem:[#allocation2 + $0x18] sm:$0xff]
    %v4046 = vld [vmem:[#allocation2 + $0x20] sm:$0xff]
    %v4047 = vld [vmem:[#allocation2 + $0x28] sm:$0xff]
    %v4048 = vld [vmem:[#allocation2 + $0x30] sm:$0xff]
    %v4049 = vld [vmem:[#allocation2 + $0x38] sm:$0xff]
    %v4051 = vlaneseq
    %v4052 = vshrl.u32 %v4051, 7
    %v4053 = vsub.s32 0, %v4052
    %v4054 = vrot.slane %v4041, %v4053
    %v4072 = vunpack.c.l.b16 %v4025
    %v4073 = vunpack.c.l.b16 %v4026
    %v4074 = vunpack.c.l.b16 %v4027
    %v4075 = vunpack.c.l.b16 %v4028
    %v4076 = vunpack.c.l.b16 %v4029
    %v4077 = vunpack.c.l.b16 %v4030
    %v4078 = vunpack.c.l.b16 %v4031
    %v4079 = vunpack.c.l.b16 %v4032
    %v4080 = vunpack.c.l.b16 %v4033
    %v4081 = vunpack.c.l.b16 %v4034
    %v4082 = vunpack.c.l.b16 %v4035
    %v4083 = vunpack.c.l.b16 %v4036
    %v4084 = vunpack.c.l.b16 %v4037
    %v4085 = vunpack.c.l.b16 %v4038
    %v4086 = vunpack.c.l.b16 %v4039
    %v4087 = vunpack.c.l.b16 %v4040
    %v4088 = vpack.c.b16 %v4073, %v4072
    %v4089 = vpack.c.b16 %v4075, %v4074
    %v4090 = vpack.c.b16 %v4077, %v4076
    %v4091 = vpack.c.b16 %v4079, %v4078
    %v4092 = vpack.c.b16 %v4081, %v4080
    %v4093 = vpack.c.b16 %v4083, %v4082
    %v4094 = vpack.c.b16 %v4085, %v4084
    %v4095 = vpack.c.b16 %v4087, %v4086
    %4104 = vmatprep.subr.bf16.mxu0 0
    %4105 = vmatpush1.bf16.msra.mxu0 %v4088
    %4106 = vmatprep.subr.bf16.mxu0 0
    %4107 = vmatpush1.bf16.msra.mxu0 %v4089
    %4108 = vmatprep.subr.bf16.mxu0 0
    %4109 = vmatpush1.bf16.msra.mxu0 %v4090
    %4110 = vmatprep.subr.bf16.mxu0 0
    %4111 = vmatpush1.bf16.msra.mxu0 %v4091
    %4112 = vmatprep.subr.bf16.mxu0 0
    %4113 = vmatpush1.bf16.msra.mxu0 %v4092
    %4114 = vmatprep.subr.bf16.mxu0 0
    %4115 = vmatpush1.bf16.msra.mxu0 %v4093
    %4116 = vmatprep.subr.bf16.mxu0 0
    %4117 = vmatpush1.bf16.msra.mxu0 %v4094
    %4118 = vmatprep.subr.bf16.mxu0 0
    %4119 = vmatpush1.bf16.msra.mxu0 %v4095
    %4120 = vmatprep.subr.bf16.mxu0 0
    %4121 = vmatpush1.bf16.msra.mxu0 0
    %4122 = vmatprep.subr.bf16.mxu0 0
    %4123 = vmatpush1.bf16.msra.mxu0 0
    %4124 = vmatprep.subr.bf16.mxu0 0
    %4125 = vmatpush1.bf16.msra.mxu0 0
    %4126 = vmatprep.subr.bf16.mxu0 0
    %4127 = vmatpush1.bf16.msra.mxu0 0
    %4128 = vmatprep.subr.bf16.mxu0 0
    %4129 = vmatpush1.bf16.msra.mxu0 0
    %4130 = vmatprep.subr.bf16.mxu0 0
    %4131 = vmatpush1.bf16.msra.mxu0 0
    %4132 = vmatprep.subr.bf16.mxu0 0
    %4133 = vmatpush1.bf16.msra.mxu0 0
    %4134 = vmatprep.subr.bf16.mxu0 0
    %4135 = vmatpush1.bf16.msra.mxu0 0
    %4136 = vmatprep.mubr.bf16.mxu0 0
    %4137 = vmatmul.mubr.bf16.gmra.mrb[0].mxu0 %v4042
    %v4138 = vpop.f32.mrb[0].mxu0
    %v4139 = vadd.f32 %v4054, %v4138
    %v4140 = vpop.f32.mrb[0].mxu0
    %v4141 = vpop.f32.mrb[0].mxu0
    %v4142 = vadd.f32 %v4054, %v4141
    %v4143 = vpop.f32.mrb[0].mxu0
    %4144 = vmatprep.mubr.bf16.mxu0 0
    %4145 = vmatmul.mubr.bf16.gmra.mrb[0].mxu0 %v4043
    %v4146 = vpop.f32.mrb[0].mxu0
    %v4147 = vadd.f32 %v4054, %v4146
    %v4148 = vpop.f32.mrb[0].mxu0
    %v4149 = vpop.f32.mrb[0].mxu0
    %v4150 = vadd.f32 %v4054, %v4149
    %v4151 = vpop.f32.mrb[0].mxu0
    %4152 = vmatprep.mubr.bf16.mxu0 0
    %4153 = vmatmul.mubr.bf16.gmra.mrb[0].mxu0 %v4044
    %v4154 = vpop.f32.mrb[0].mxu0
    %v4155 = vadd.f32 %v4054, %v4154
    %v4156 = vpop.f32.mrb[0].mxu0
    %v4157 = vpop.f32.mrb[0].mxu0
    %v4158 = vadd.f32 %v4054, %v4157
    %v4159 = vpop.f32.mrb[0].mxu0
    %4160 = vmatprep.mubr.bf16.mxu0 0
    %4161 = vmatmul.mubr.bf16.gmra.mrb[0].mxu0 %v4045
    %v4162 = vpop.f32.mrb[0].mxu0
    %v4163 = vadd.f32 %v4054, %v4162
    %v4164 = vpop.f32.mrb[0].mxu0
    %v4165 = vpop.f32.mrb[0].mxu0
    %v4166 = vadd.f32 %v4054, %v4165
    %v4167 = vpop.f32.mrb[0].mxu0
    %4168 = vmatprep.mubr.bf16.mxu0 0
    %4169 = vmatmul.mubr.bf16.gmra.mrb[0].mxu0 %v4046
    %v4170 = vpop.f32.mrb[0].mxu0
    %v4171 = vadd.f32 %v4054, %v4170
    %v4172 = vpop.f32.mrb[0].mxu0
    %v4173 = vpop.f32.mrb[0].mxu0
    %v4174 = vadd.f32 %v4054, %v4173
    %v4175 = vpop.f32.mrb[0].mxu0
    %4176 = vmatprep.mubr.bf16.mxu0 0
    %4177 = vmatmul.mubr.bf16.gmra.mrb[0].mxu0 %v4047
    %v4178 = vpop.f32.mrb[0].mxu0
    %v4179 = vadd.f32 %v4054, %v4178
    %v4180 = vpop.f32.mrb[0].mxu0
    %v4181 = vpop.f32.mrb[0].mxu0
    %v4182 = vadd.f32 %v4054, %v4181
    %v4183 = vpop.f32.mrb[0].mxu0
    %4184 = vmatprep.mubr.bf16.mxu0 0
    %4185 = vmatmul.mubr.bf16.gmra.mrb[0].mxu0 %v4048
    %v4186 = vpop.f32.mrb[0].mxu0
    %v4187 = vadd.f32 %v4054, %v4186
    %v4188 = vpop.f32.mrb[0].mxu0
    %v4189 = vpop.f32.mrb[0].mxu0
    %v4190 = vadd.f32 %v4054, %v4189
    %v4191 = vpop.f32.mrb[0].mxu0
    %4192 = vmatprep.mubr.bf16.mxu0 0
    %4193 = vmatmul.mubr.bf16.gmra.mrb[0].mxu0 %v4049
    %v4194 = vpop.f32.mrb[0].mxu0
    %v4195 = vadd.f32 %v4054, %v4194
    %v4196 = vpop.f32.mrb[0].mxu0
    %v4197 = vpop.f32.mrb[0].mxu0
    %v4198 = vadd.f32 %v4054, %v4197
    %v4199 = vpop.f32.mrb[0].mxu0
    %4200 = vdwg.mxu0
    %4201 = vst [vmem:[#allocation13] sm:$0xff] %v4139
    %4202 = vst [vmem:[#allocation13 + $0x8] sm:$0xff] %v4142
    %4203 = vst [vmem:[#allocation13 + $0x10] sm:$0xff] %v4147
    %4204 = vst [vmem:[#allocation13 + $0x18] sm:$0xff] %v4150
    %4205 = vst [vmem:[#allocation13 + $0x20] sm:$0xff] %v4155
    %4206 = vst [vmem:[#allocation13 + $0x28] sm:$0xff] %v4158
    %4207 = vst [vmem:[#allocation13 + $0x30] sm:$0xff] %v4163
    %4208 = vst [vmem:[#allocation13 + $0x38] sm:$0xff] %v4166
    %4209 = vst [vmem:[#allocation13 + $0x40] sm:$0xff] %v4171
    %4210 = vst [vmem:[#allocation13 + $0x48] sm:$0xff] %v4174
    %4211 = vst [vmem:[#allocation13 + $0x50] sm:$0xff] %v4179
    %4212 = vst [vmem:[#allocation13 + $0x58] sm:$0xff] %v4182
    %4213 = vst [vmem:[#allocation13 + $0x60] sm:$0xff] %v4187
    %4214 = vst [vmem:[#allocation13 + $0x68] sm:$0xff] %v4190
    %4215 = vst [vmem:[#allocation13 + $0x70] sm:$0xff] %v4195
    %4216 = vst [vmem:[#allocation13 + $0x78] sm:$0xff] %v4198
    // Predicated region
    $region50: #{tpu_custom_call.1} parent=1 // pred_check
      _
    $region51: #{tpu_custom_call.1} parent=1 // pred_check_branch
      %4218 = sbr.rel (0) target = $region53
    $region52: #{tpu_custom_call.1} parent=1 // pred_region
      %s4220 = ssub.s32 2048, 2048
      %4221 = vsyncadd [#allocation6], %s4220
      %s4222 = sshll.u32 [#allocation13], 4
      %s4223 = int_to_ptr.vmem [resolvable:$true] %s4222
      %4228 = dma.vmem_to_hbm [thread:$0]  %s4223, 2048, %s7, [#allocation6], 128, 128, 8
    $region53: #{tpu_custom_call.1} parent=1 // pred_fallthru
      _
    // Predicated region
    $region54: #{tpu_custom_call.1} parent=1 // pred_check
      _
    $region55: #{tpu_custom_call.1} parent=1 // pred_check_branch
      %4230 = sbr.rel (0) target = $region57
    $region56: #{tpu_custom_call.1} parent=1 // pred_region
      %4231 = dma.done [#allocation6], 2048
    $region57: #{tpu_custom_call.1} parent=1 // pred_fallthru
      _
    %4232 = vsyncpa [#allocation5], 1
    %4233 = vsyncpa [#allocation8], 1
    %4234 = vsyncpa [#allocation11], 1
    %4235 = vsyncpa [#allocation6], 1

</llo_original>
